<compile_context>
chip_gen: v7x
topology: tpu7x:2x2x1
jax: 0.10.0
libtpu: 0.0.40
codegen_flags: <defaults>
</compile_context>

<pallas_src>
import jax
import jax.numpy as jnp
from jax.experimental import pallas as pl
from jax.experimental.pallas import tpu as pltpu


# ---------------------------------------------------------------------------
# The single fused Pallas kernel (B images per grid step)
# ---------------------------------------------------------------------------
def _cnn_kernel(x_ref, b1_ref, t1_ref, b2_ref, t2_ref, wf_ref, bf_ref, o_ref):
    f32, bf16 = jnp.float32, jnp.bfloat16
    B = o_ref.shape[0]            # images per grid step
    R = x_ref.shape[2]            # 7 * B matmul rows (row = j*B + b)

    t1 = t1_ref[...]              # (1, 512) folded-BN shift, layer1
    t2 = t2_ref[...]              # (1, 512) folded-BN shift, layer2

    # ---- layer1: conv(5x5,p=2) + BN + ReLU.  One K=160 matmul per phase ----
    # Phase ph computes output rows h1 = ph + 4j (j = 0..6) for every image.
    b1 = b1_ref[...]              # (160, 512) bf16, kh folded into K
    cp1 = []
    for ph in range(4):
        acc = jnp.dot(x_ref[0, ph], b1, preferred_element_type=f32)  # (R,512)
        cp1.append(jnp.maximum(acc + t1, 0.0))

    # ---- maxpool1 (2x2): rows = phase pairs, cols = the two 256-halves ----
    p1e = jnp.maximum(cp1[0], cp1[1])                     # rows: h2 = 2j
    p1o = jnp.maximum(cp1[2], cp1[3])                     # rows: h2 = 2j + 1
    p1e = jnp.maximum(p1e[:, 0:256], p1e[:, 256:512])     # (R, 256)
    p1o = jnp.maximum(p1o[:, 0:256], p1o[:, 256:512])     # (R, 256)
    p1 = (p1e, p1o)

    # Shifted per-image 7-row windows built in-register (no VMEM scratch).
    # j-major layout makes an image-row shift a B-row (aligned) slice.
    zrow = jnp.zeros((B, 256), f32)

    def window(q, start):         # rows m = j + start - 1 of parity q
        if start == 0:
            return jnp.concatenate([zrow, p1[q][:R - B]], axis=0)
        if start == 1:
            return p1[q]
        return jnp.concatenate([p1[q][B:], zrow], axis=0)

    # ---- layer2: conv(5x5,p=2) + BN + ReLU.  One K=1280 matmul per phase ---
    b2 = b2_ref[...]              # (1280, 512) bf16, kh folded into K
    cp2 = []
    for p2 in range(2):           # phase p2 -> output rows h2out = p2 + 2j
        parts = []
        for kh in range(5):
            start, q = divmod(p2 + kh, 2)
            parts.append(window(q, start))
        lhs2 = jnp.concatenate(parts, axis=-1).astype(bf16)    # (R, 1280)
        acc2 = jnp.dot(lhs2, b2, preferred_element_type=f32)   # (R, 512)
        cp2.append(jnp.maximum(acc2 + t2, 0.0))

    # ---- maxpool2 (2x2) ----------------------------------------------------
    hp2 = jnp.maximum(cp2[0], cp2[1])                     # (R, 512)
    p2v = jnp.maximum(hp2[:, 0:256], hp2[:, 256:512])     # (R, 256): [jB+b, w3*32+c2]

    # ---- fc (PyTorch NCHW flatten order baked into wf_ref) -----------------
    out = jnp.dot(p2v[0:B].astype(bf16), wf_ref[0], preferred_element_type=f32)
    for h3 in range(1, 7):
        out = out + jnp.dot(p2v[h3 * B:(h3 + 1) * B].astype(bf16), wf_ref[h3],
                            preferred_element_type=f32)
    o_ref[...] = out + bf_ref[...]                        # (B, 128)


# ---------------------------------------------------------------------------
# Trace-time constant construction (BN folded, pool-friendly column order)
# ---------------------------------------------------------------------------
def _build_constants(p, eps=1e-5):
    f32, bf16 = jnp.float32, jnp.bfloat16

    # ----- layer 1: block-banded (kh*32 + wi) x [even-w1 |pad| odd-w1 |pad] -
    s1 = p["g1"] / jnp.sqrt(p["v1"] + eps)                    # (16,)
    t1 = (p["b1"] - p["m1"]) * s1 + p["be1"]                  # (16,)
    w1s = p["w1"] * s1[:, None, None, None]                   # (16,1,5,5)
    wk1 = jnp.transpose(w1s[:, 0, :, :], (1, 2, 0))           # (kh,kw,c1)
    wi = jnp.arange(32)[:, None]
    w1i = jnp.arange(28)[None, :]
    kw1 = wi - w1i                                            # (32,28)
    mask1 = (kw1 >= 0) & (kw1 <= 4)
    g1 = wk1[:, jnp.clip(kw1, 0, 4), :]                       # (5,32,28,16)
    g1 = jnp.where(mask1[None, :, :, None], g1, 0.0)
    g1e = g1[:, :, 0::2, :].reshape(5, 32, 224)               # even w1
    g1o = g1[:, :, 1::2, :].reshape(5, 32, 224)               # odd  w1
    z1 = jnp.zeros((5, 32, 32), f32)
    B1 = jnp.concatenate([g1e, z1, g1o, z1], axis=-1).reshape(160, 512)
    t1h = jnp.concatenate([jnp.tile(t1, 14), jnp.zeros((32,), f32)])
    T1 = jnp.concatenate([t1h, t1h]).reshape(1, 512)

    # ----- layer 2: (kh*256 + w2*16+ci) x [even-wout |pad| odd-wout |pad] ---
    s2 = p["g2"] / jnp.sqrt(p["v2"] + eps)                    # (32,)
    t2 = (p["b2"] - p["m2"]) * s2 + p["be2"]                  # (32,)
    w2s = p["w2"] * s2[:, None, None, None]                   # (32,16,5,5)
    wk2 = jnp.transpose(w2s, (2, 3, 1, 0))                    # (kh,kw,ci,c2)
    jj = jnp.arange(14)[:, None]
    w2i = jnp.arange(14)[None, :]
    kw2 = jj - w2i + 2                                        # (14,14)
    mask2 = (kw2 >= 0) & (kw2 <= 4)
    g2 = wk2[:, jnp.clip(kw2, 0, 4), :, :]                    # (5,14,14,16,32)
    g2 = jnp.where(mask2[None, :, :, None, None], g2, 0.0)
    g2 = jnp.transpose(g2, (0, 1, 3, 2, 4))                   # (kh,w2in,ci,wout,c2)
    g2 = g2.reshape(5, 224, 14, 32)
    g2 = jnp.pad(g2, ((0, 0), (0, 32), (0, 0), (0, 0)))       # rows -> 256
    g2e = g2[:, :, 0::2, :].reshape(5, 256, 224)
    g2o = g2[:, :, 1::2, :].reshape(5, 256, 224)
    z2 = jnp.zeros((5, 256, 32), f32)
    B2 = jnp.concatenate([g2e, z2, g2o, z2], axis=-1).reshape(1280, 512)
    t2h = jnp.concatenate([jnp.tile(t2, 7), jnp.zeros((32,), f32)])
    T2 = jnp.concatenate([t2h, t2h]).reshape(1, 512)

    # ----- fc (flatten order c2*49 + h3*7 + w3 baked in) --------------------
    wf = p["wf"].reshape(10, 32, 7, 7)                        # (co,c2,h3,w3)
    wf = jnp.transpose(wf, (2, 3, 1, 0)).reshape(7, 224, 10)  # (h3, w3*32+c2, co)
    WF = jnp.pad(wf, ((0, 0), (0, 32), (0, 118)))             # (7,256,128)
    bfp = jnp.pad(p["bf"], (0, 118)).reshape(1, 128)

    return (B1.astype(bf16), T1.astype(f32), B2.astype(bf16), T2.astype(f32),
            WF.astype(bf16), bfp.astype(f32))


def _prep_input(x_nchw, block_b):
    """NCHW (Cin=1) -> per-block conv1 LHS: (nb, 4 phases, 7*B rows, 160).

    Row = j*B + b (image b of the block, phase-output row j); lanes are the
    5 shifted input-row windows (kh*32 + wi) so conv1 is one matmul/phase.
    """
    N = x_nchw.shape[0]
    x = x_nchw[:, 0, :, :].astype(jnp.float32)                # (N,28,28)
    n_pad = -N % block_b
    if n_pad:
        x = jnp.pad(x, ((0, n_pad), (0, 0), (0, 0)))
    Np = x.shape[0]
    xpad = jnp.pad(x, ((0, 0), (2, 2), (2, 2)))               # (Np,32,32)
    ph = jnp.arange(4)[:, None, None]
    jj = jnp.arange(7)[None, :, None]
    kh = jnp.arange(5)[None, None, :]
    ridx = ph + 4 * jj + kh                                   # padded row index
    lhs = xpad[:, ridx, :]                                    # (Np,4,7,5,32)
    lhs = lhs.reshape(Np, 4, 7, 160)
    nb = Np // block_b
    lhs = lhs.reshape(nb, block_b, 4, 7, 160)
    lhs = jnp.transpose(lhs, (0, 2, 3, 1, 4))                 # (nb,4,7,B,160)
    lhs = lhs.reshape(nb, 4, 7 * block_b, 160)
    return lhs.astype(jnp.bfloat16), Np


# ---------------------------------------------------------------------------
# Forward
# ---------------------------------------------------------------------------
def cnn_forward(x_nchw, params, block_b=8):
    N = x_nchw.shape[0]
    xp, Np = _prep_input(x_nchw, block_b)
    nb = Np // block_b
    B1, T1, B2, T2, WF, BF = _build_constants(params)
    R = 7 * block_b

    out = pl.pallas_call(
        _cnn_kernel,
        out_shape=jax.ShapeDtypeStruct((Np, 128), jnp.float32),
        grid=(nb,),
        in_specs=[
            pl.BlockSpec((1, 4, R, 160), lambda n: (n, 0, 0, 0)),  # conv1 LHS
            pl.BlockSpec((160, 512), lambda n: (0, 0)),            # conv1 W (bf16)
            pl.BlockSpec((1, 512), lambda n: (0, 0)),              # conv1 BN shift
            pl.BlockSpec((1280, 512), lambda n: (0, 0)),           # conv2 W (bf16)
            pl.BlockSpec((1, 512), lambda n: (0, 0)),              # conv2 BN shift
            pl.BlockSpec((7, 256, 128), lambda n: (0, 0, 0)),      # fc W per h3
            pl.BlockSpec((1, 128), lambda n: (0, 0)),              # fc bias (padded)
        ],
        out_specs=pl.BlockSpec((block_b, 128), lambda n: (n, 0)),
        compiler_params=pltpu.CompilerParams(
            dimension_semantics=("parallel",)),
    )(xp, B1, T1, B2, T2, WF, BF)

    return out[:N, :10]


# ---------------------------------------------------------------------------
# Pure-JAX reference (eval-mode BN) for a correctness sanity check
# ---------------------------------------------------------------------------
def _reference_forward(x_nchw, p, eps=1e-5):
    hi = jax.lax.Precision.HIGHEST

    def block(x, w, b, g, be, m, v):
        y = jax.lax.conv_general_dilated(
            x, w, window_strides=(1, 1), padding=((2, 2), (2, 2)),
            dimension_numbers=("NCHW", "OIHW", "NCHW"), precision=hi)
        y = y + b[None, :, None, None]
        y = (y - m[None, :, None, None]) / jnp.sqrt(v[None, :, None, None] + eps)
        y = y * g[None, :, None, None] + be[None, :, None, None]
        y = jnp.maximum(y, 0.0)
        N, C, H, W = y.shape
        return y.reshape(N, C, H // 2, 2, W // 2, 2).max(axis=(3, 5))

    y = block(x_nchw, p["w1"], p["b1"], p["g1"], p["be1"], p["m1"], p["v1"])
    y = block(y, p["w2"], p["b2"], p["g2"], p["be2"], p["m2"], p["v2"])
    feat = y.reshape(y.shape[0], -1)
    return jnp.dot(feat, p["wf"].T, precision=hi) + p["bf"]


# ---------------------------------------------------------------------------
# Main
# ---------------------------------------------------------------------------
if __name__ == "__main__":
    key = jax.random.PRNGKey(0)
    ks = jax.random.split(key, 16)
    N = 16   # small demo; block_b=8 -> grid of 2 (keeps both v7x cores busy)

    # Input consistent with the module: fc expects 7*7*32 -> input is 1x28x28.
    x_nchw = jax.random.normal(ks[0], (N, 1, 28, 28), jnp.float32)

    params = dict(
        # layer1
        w1=0.10 * jax.random.normal(ks[1], (16, 1, 5, 5), jnp.float32),
        b1=0.10 * jax.random.normal(ks[2], (16,), jnp.float32),
        g1=1.0 + 0.1 * jax.random.normal(ks[3], (16,), jnp.float32),
        be1=0.10 * jax.random.normal(ks[4], (16,), jnp.float32),
        m1=0.05 * jax.random.normal(ks[5], (16,), jnp.float32),
        v1=1.0 + 0.1 * jnp.abs(jax.random.normal(ks[6], (16,), jnp.float32)),
        # layer2
        w2=0.05 * jax.random.normal(ks[7], (32, 16, 5, 5), jnp.float32),
        b2=0.10 * jax.random.normal(ks[8], (32,), jnp.float32),
        g2=1.0 + 0.1 * jax.random.normal(ks[9], (32,), jnp.float32),
        be2=0.10 * jax.random.normal(ks[10], (32,), jnp.float32),
        m2=0.05 * jax.random.normal(ks[11], (32,), jnp.float32),
        v2=1.0 + 0.1 * jnp.abs(jax.random.normal(ks[12], (32,), jnp.float32)),
        # fc
        wf=0.02 * jax.random.normal(ks[13], (10, 7 * 7 * 32), jnp.float32),
        bf=0.02 * jax.random.normal(ks[14], (10,), jnp.float32),
    )

    logits = jax.jit(cnn_forward)(x_nchw, params)
    jax.block_until_ready(logits)
    assert logits.shape == (N, 10) and logits.dtype == jnp.float32

    ref = _reference_forward(x_nchw, params)
    err = float(jnp.max(jnp.abs(logits - ref)))
    assert err < 2e-2, f"mismatch vs reference: max abs err = {err}"

    print("KERNEL_OK")
</pallas_src>

<mosaic_0001>
module attributes {stable_mosaic.version = 11 : i64} {
  func.func @_cnn_kernel(%arg0: i32, %arg1: memref<1x4x56x160xbf16, #tpu.memory_space<vmem>>, %arg2: memref<160x512xbf16, #tpu.memory_space<vmem>>, %arg3: memref<1x512xf32, #tpu.memory_space<vmem>>, %arg4: memref<1280x512xbf16, #tpu.memory_space<vmem>>, %arg5: memref<1x512xf32, #tpu.memory_space<vmem>>, %arg6: memref<7x256x128xbf16, #tpu.memory_space<vmem>>, %arg7: memref<1x128xf32, #tpu.memory_space<vmem>>, %arg8: memref<8x128xf32, #tpu.memory_space<vmem>>) attributes {dimension_semantics = [#tpu.dimension_semantics<parallel>], iteration_bounds = array<i64: 2>, scalar_prefetch = 0 : i64, scratch_operands = 0 : i64, tpu.core_type = #tpu.core_type<tc>, window_params = [{transform_indices = @transform_0, window_bounds = array<i64: 1, 4, 56, 160>}, {pipeline_mode = #tpu.pipeline_mode<synchronous>, transform_indices = @transform_1, window_bounds = array<i64: 160, 512>}, {pipeline_mode = #tpu.pipeline_mode<synchronous>, transform_indices = @transform_2, window_bounds = array<i64: 1, 512>}, {pipeline_mode = #tpu.pipeline_mode<synchronous>, transform_indices = @transform_3, window_bounds = array<i64: 1280, 512>}, {pipeline_mode = #tpu.pipeline_mode<synchronous>, transform_indices = @transform_4, window_bounds = array<i64: 1, 512>}, {pipeline_mode = #tpu.pipeline_mode<synchronous>, transform_indices = @transform_5, window_bounds = array<i64: 7, 256, 128>}, {pipeline_mode = #tpu.pipeline_mode<synchronous>, transform_indices = @transform_6, window_bounds = array<i64: 1, 128>}, {transform_indices = @transform_7, window_bounds = array<i64: 8, 128>}]} {
    %c0 = arith.constant 0 : index
    %c0_0 = arith.constant 0 : index
    %0 = vector.load %arg3[%c0, %c0_0] : memref<1x512xf32, #tpu.memory_space<vmem>>, vector<1x512xf32>
    %c0_1 = arith.constant 0 : index
    %c0_2 = arith.constant 0 : index
    %1 = vector.load %arg5[%c0_1, %c0_2] : memref<1x512xf32, #tpu.memory_space<vmem>>, vector<1x512xf32>
    %c0_3 = arith.constant 0 : index
    %c0_4 = arith.constant 0 : index
    %2 = vector.load %arg2[%c0_3, %c0_4] : memref<160x512xbf16, #tpu.memory_space<vmem>>, vector<160x512xbf16>
    %c0_5 = arith.constant 0 : index
    %c0_6 = arith.constant 0 : index
    %c0_7 = arith.constant 0 : index
    %c0_8 = arith.constant 0 : index
    %3 = vector.load %arg1[%c0_5, %c0_6, %c0_7, %c0_8] : memref<1x4x56x160xbf16, #tpu.memory_space<vmem>>, vector<1x1x56x160xbf16>
    %4 = vector.shape_cast %3 : vector<1x1x56x160xbf16> to vector<56x160xbf16>
    %cst = arith.constant dense<0.000000e+00> : vector<56x512xf32>
    %5 = tpu.matmul %4, %2, %cst {dimension_numbers = #tpu.dot_dimension_numbers<[1], [0], [0], [1], [0, 0, 1, 1], [], []>} : vector<56x160xbf16>, vector<160x512xbf16>, vector<56x512xf32> -> vector<56x512xf32>
    %6 = vector.broadcast %0 : vector<1x512xf32> to vector<56x512xf32>
    %7 = arith.addf %5, %6 : vector<56x512xf32>
    %cst_9 = arith.constant 0.000000e+00 : f32
    %8 = vector.broadcast %cst_9 : f32 to vector<56x512xf32>
    %9 = arith.maximumf %7, %8 : vector<56x512xf32>
    %c0_10 = arith.constant 0 : index
    %c1 = arith.constant 1 : index
    %c0_11 = arith.constant 0 : index
    %c0_12 = arith.constant 0 : index
    %10 = vector.load %arg1[%c0_10, %c1, %c0_11, %c0_12] : memref<1x4x56x160xbf16, #tpu.memory_space<vmem>>, vector<1x1x56x160xbf16>
    %11 = vector.shape_cast %10 : vector<1x1x56x160xbf16> to vector<56x160xbf16>
    %cst_13 = arith.constant dense<0.000000e+00> : vector<56x512xf32>
    %12 = tpu.matmul %11, %2, %cst_13 {dimension_numbers = #tpu.dot_dimension_numbers<[1], [0], [0], [1], [0, 0, 1, 1], [], []>} : vector<56x160xbf16>, vector<160x512xbf16>, vector<56x512xf32> -> vector<56x512xf32>
    %13 = vector.broadcast %0 : vector<1x512xf32> to vector<56x512xf32>
    %14 = arith.addf %12, %13 : vector<56x512xf32>
    %cst_14 = arith.constant 0.000000e+00 : f32
    %15 = vector.broadcast %cst_14 : f32 to vector<56x512xf32>
    %16 = arith.maximumf %14, %15 : vector<56x512xf32>
    %c0_15 = arith.constant 0 : index
    %c2 = arith.constant 2 : index
    %c0_16 = arith.constant 0 : index
    %c0_17 = arith.constant 0 : index
    %17 = vector.load %arg1[%c0_15, %c2, %c0_16, %c0_17] : memref<1x4x56x160xbf16, #tpu.memory_space<vmem>>, vector<1x1x56x160xbf16>
    %18 = vector.shape_cast %17 : vector<1x1x56x160xbf16> to vector<56x160xbf16>
    %cst_18 = arith.constant dense<0.000000e+00> : vector<56x512xf32>
    %19 = tpu.matmul %18, %2, %cst_18 {dimension_numbers = #tpu.dot_dimension_numbers<[1], [0], [0], [1], [0, 0, 1, 1], [], []>} : vector<56x160xbf16>, vector<160x512xbf16>, vector<56x512xf32> -> vector<56x512xf32>
    %20 = vector.broadcast %0 : vector<1x512xf32> to vector<56x512xf32>
    %21 = arith.addf %19, %20 : vector<56x512xf32>
    %cst_19 = arith.constant 0.000000e+00 : f32
    %22 = vector.broadcast %cst_19 : f32 to vector<56x512xf32>
    %23 = arith.maximumf %21, %22 : vector<56x512xf32>
    %c0_20 = arith.constant 0 : index
    %c3 = arith.constant 3 : index
    %c0_21 = arith.constant 0 : index
    %c0_22 = arith.constant 0 : index
    %24 = vector.load %arg1[%c0_20, %c3, %c0_21, %c0_22] : memref<1x4x56x160xbf16, #tpu.memory_space<vmem>>, vector<1x1x56x160xbf16>
    %25 = vector.shape_cast %24 : vector<1x1x56x160xbf16> to vector<56x160xbf16>
    %cst_23 = arith.constant dense<0.000000e+00> : vector<56x512xf32>
    %26 = tpu.matmul %25, %2, %cst_23 {dimension_numbers = #tpu.dot_dimension_numbers<[1], [0], [0], [1], [0, 0, 1, 1], [], []>} : vector<56x160xbf16>, vector<160x512xbf16>, vector<56x512xf32> -> vector<56x512xf32>
    %27 = vector.broadcast %0 : vector<1x512xf32> to vector<56x512xf32>
    %28 = arith.addf %26, %27 : vector<56x512xf32>
    %cst_24 = arith.constant 0.000000e+00 : f32
    %29 = vector.broadcast %cst_24 : f32 to vector<56x512xf32>
    %30 = arith.maximumf %28, %29 : vector<56x512xf32>
    %31 = arith.maximumf %9, %16 : vector<56x512xf32>
    %32 = arith.maximumf %23, %30 : vector<56x512xf32>
    %33 = vector.extract_strided_slice %31 {offsets = [0, 0], sizes = [56, 256], strides = [1, 1]} : vector<56x512xf32> to vector<56x256xf32>
    %34 = vector.extract_strided_slice %31 {offsets = [0, 256], sizes = [56, 256], strides = [1, 1]} : vector<56x512xf32> to vector<56x256xf32>
    %35 = arith.maximumf %33, %34 : vector<56x256xf32>
    %36 = vector.extract_strided_slice %32 {offsets = [0, 0], sizes = [56, 256], strides = [1, 1]} : vector<56x512xf32> to vector<56x256xf32>
    %37 = vector.extract_strided_slice %32 {offsets = [0, 256], sizes = [56, 256], strides = [1, 1]} : vector<56x512xf32> to vector<56x256xf32>
    %38 = arith.maximumf %36, %37 : vector<56x256xf32>
    %cst_25 = arith.constant 0.000000e+00 : f32
    %39 = vector.broadcast %cst_25 : f32 to vector<8x256xf32>
    %c0_26 = arith.constant 0 : index
    %c0_27 = arith.constant 0 : index
    %40 = vector.load %arg4[%c0_26, %c0_27] : memref<1280x512xbf16, #tpu.memory_space<vmem>>, vector<1280x512xbf16>
    %41 = vector.extract_strided_slice %35 {offsets = [0, 0], sizes = [48, 256], strides = [1, 1]} : vector<56x256xf32> to vector<48x256xf32>
    %42 = tpu.concatenate %39, %41 in 0 : vector<8x256xf32>, vector<48x256xf32> -> vector<56x256xf32>
    %43 = vector.extract_strided_slice %38 {offsets = [0, 0], sizes = [48, 256], strides = [1, 1]} : vector<56x256xf32> to vector<48x256xf32>
    %44 = tpu.concatenate %39, %43 in 0 : vector<8x256xf32>, vector<48x256xf32> -> vector<56x256xf32>
    %45 = vector.extract_strided_slice %35 {offsets = [8, 0], sizes = [48, 256], strides = [1, 1]} : vector<56x256xf32> to vector<48x256xf32>
    %46 = tpu.concatenate %45, %39 in 0 : vector<48x256xf32>, vector<8x256xf32> -> vector<56x256xf32>
    %47 = tpu.concatenate %42, %44, %35, %38, %46 in 1 : vector<56x256xf32>, vector<56x256xf32>, vector<56x256xf32>, vector<56x256xf32>, vector<56x256xf32> -> vector<56x1280xf32>
    %48 = arith.truncf %47 : vector<56x1280xf32> to vector<56x1280xbf16>
    %cst_28 = arith.constant dense<0.000000e+00> : vector<56x512xf32>
    %49 = tpu.matmul %48, %40, %cst_28 {dimension_numbers = #tpu.dot_dimension_numbers<[1], [0], [0], [1], [0, 0, 1, 1], [], []>} : vector<56x1280xbf16>, vector<1280x512xbf16>, vector<56x512xf32> -> vector<56x512xf32>
    %50 = vector.broadcast %1 : vector<1x512xf32> to vector<56x512xf32>
    %51 = arith.addf %49, %50 : vector<56x512xf32>
    %cst_29 = arith.constant 0.000000e+00 : f32
    %52 = vector.broadcast %cst_29 : f32 to vector<56x512xf32>
    %53 = arith.maximumf %51, %52 : vector<56x512xf32>
    %54 = vector.extract_strided_slice %38 {offsets = [0, 0], sizes = [48, 256], strides = [1, 1]} : vector<56x256xf32> to vector<48x256xf32>
    %55 = tpu.concatenate %39, %54 in 0 : vector<8x256xf32>, vector<48x256xf32> -> vector<56x256xf32>
    %56 = vector.extract_strided_slice %35 {offsets = [8, 0], sizes = [48, 256], strides = [1, 1]} : vector<56x256xf32> to vector<48x256xf32>
    %57 = tpu.concatenate %56, %39 in 0 : vector<48x256xf32>, vector<8x256xf32> -> vector<56x256xf32>
    %58 = vector.extract_strided_slice %38 {offsets = [8, 0], sizes = [48, 256], strides = [1, 1]} : vector<56x256xf32> to vector<48x256xf32>
    %59 = tpu.concatenate %58, %39 in 0 : vector<48x256xf32>, vector<8x256xf32> -> vector<56x256xf32>
    %60 = tpu.concatenate %55, %35, %38, %57, %59 in 1 : vector<56x256xf32>, vector<56x256xf32>, vector<56x256xf32>, vector<56x256xf32>, vector<56x256xf32> -> vector<56x1280xf32>
    %61 = arith.truncf %60 : vector<56x1280xf32> to vector<56x1280xbf16>
    %cst_30 = arith.constant dense<0.000000e+00> : vector<56x512xf32>
    %62 = tpu.matmul %61, %40, %cst_30 {dimension_numbers = #tpu.dot_dimension_numbers<[1], [0], [0], [1], [0, 0, 1, 1], [], []>} : vector<56x1280xbf16>, vector<1280x512xbf16>, vector<56x512xf32> -> vector<56x512xf32>
    %63 = vector.broadcast %1 : vector<1x512xf32> to vector<56x512xf32>
    %64 = arith.addf %62, %63 : vector<56x512xf32>
    %cst_31 = arith.constant 0.000000e+00 : f32
    %65 = vector.broadcast %cst_31 : f32 to vector<56x512xf32>
    %66 = arith.maximumf %64, %65 : vector<56x512xf32>
    %67 = arith.maximumf %53, %66 : vector<56x512xf32>
    %68 = vector.extract_strided_slice %67 {offsets = [0, 0], sizes = [56, 256], strides = [1, 1]} : vector<56x512xf32> to vector<56x256xf32>
    %69 = vector.extract_strided_slice %67 {offsets = [0, 256], sizes = [56, 256], strides = [1, 1]} : vector<56x512xf32> to vector<56x256xf32>
    %70 = arith.maximumf %68, %69 : vector<56x256xf32>
    %71 = vector.extract_strided_slice %70 {offsets = [0, 0], sizes = [8, 256], strides = [1, 1]} : vector<56x256xf32> to vector<8x256xf32>
    %72 = arith.truncf %71 : vector<8x256xf32> to vector<8x256xbf16>
    %c0_32 = arith.constant 0 : index
    %c0_33 = arith.constant 0 : index
    %c0_34 = arith.constant 0 : index
    %73 = vector.load %arg6[%c0_32, %c0_33, %c0_34] : memref<7x256x128xbf16, #tpu.memory_space<vmem>>, vector<1x256x128xbf16>
    %74 = vector.shape_cast %73 : vector<1x256x128xbf16> to vector<256x128xbf16>
    %cst_35 = arith.constant dense<0.000000e+00> : vector<8x128xf32>
    %75 = tpu.matmul %72, %74, %cst_35 {dimension_numbers = #tpu.dot_dimension_numbers<[1], [0], [0], [1], [0, 0, 1, 1], [], []>} : vector<8x256xbf16>, vector<256x128xbf16>, vector<8x128xf32> -> vector<8x128xf32>
    %76 = vector.extract_strided_slice %70 {offsets = [8, 0], sizes = [8, 256], strides = [1, 1]} : vector<56x256xf32> to vector<8x256xf32>
    %77 = arith.truncf %76 : vector<8x256xf32> to vector<8x256xbf16>
    %c1_36 = arith.constant 1 : index
    %c0_37 = arith.constant 0 : index
    %c0_38 = arith.constant 0 : index
    %78 = vector.load %arg6[%c1_36, %c0_37, %c0_38] : memref<7x256x128xbf16, #tpu.memory_space<vmem>>, vector<1x256x128xbf16>
    %79 = vector.shape_cast %78 : vector<1x256x128xbf16> to vector<256x128xbf16>
    %cst_39 = arith.constant dense<0.000000e+00> : vector<8x128xf32>
    %80 = tpu.matmul %77, %79, %cst_39 {dimension_numbers = #tpu.dot_dimension_numbers<[1], [0], [0], [1], [0, 0, 1, 1], [], []>} : vector<8x256xbf16>, vector<256x128xbf16>, vector<8x128xf32> -> vector<8x128xf32>
    %81 = arith.addf %75, %80 : vector<8x128xf32>
    %82 = vector.extract_strided_slice %70 {offsets = [16, 0], sizes = [8, 256], strides = [1, 1]} : vector<56x256xf32> to vector<8x256xf32>
    %83 = arith.truncf %82 : vector<8x256xf32> to vector<8x256xbf16>
    %c2_40 = arith.constant 2 : index
    %c0_41 = arith.constant 0 : index
    %c0_42 = arith.constant 0 : index
    %84 = vector.load %arg6[%c2_40, %c0_41, %c0_42] : memref<7x256x128xbf16, #tpu.memory_space<vmem>>, vector<1x256x128xbf16>
    %85 = vector.shape_cast %84 : vector<1x256x128xbf16> to vector<256x128xbf16>
    %cst_43 = arith.constant dense<0.000000e+00> : vector<8x128xf32>
    %86 = tpu.matmul %83, %85, %cst_43 {dimension_numbers = #tpu.dot_dimension_numbers<[1], [0], [0], [1], [0, 0, 1, 1], [], []>} : vector<8x256xbf16>, vector<256x128xbf16>, vector<8x128xf32> -> vector<8x128xf32>
    %87 = arith.addf %81, %86 : vector<8x128xf32>
    %88 = vector.extract_strided_slice %70 {offsets = [24, 0], sizes = [8, 256], strides = [1, 1]} : vector<56x256xf32> to vector<8x256xf32>
    %89 = arith.truncf %88 : vector<8x256xf32> to vector<8x256xbf16>
    %c3_44 = arith.constant 3 : index
    %c0_45 = arith.constant 0 : index
    %c0_46 = arith.constant 0 : index
    %90 = vector.load %arg6[%c3_44, %c0_45, %c0_46] : memref<7x256x128xbf16, #tpu.memory_space<vmem>>, vector<1x256x128xbf16>
    %91 = vector.shape_cast %90 : vector<1x256x128xbf16> to vector<256x128xbf16>
    %cst_47 = arith.constant dense<0.000000e+00> : vector<8x128xf32>
    %92 = tpu.matmul %89, %91, %cst_47 {dimension_numbers = #tpu.dot_dimension_numbers<[1], [0], [0], [1], [0, 0, 1, 1], [], []>} : vector<8x256xbf16>, vector<256x128xbf16>, vector<8x128xf32> -> vector<8x128xf32>
    %93 = arith.addf %87, %92 : vector<8x128xf32>
    %94 = vector.extract_strided_slice %70 {offsets = [32, 0], sizes = [8, 256], strides = [1, 1]} : vector<56x256xf32> to vector<8x256xf32>
    %95 = arith.truncf %94 : vector<8x256xf32> to vector<8x256xbf16>
    %c4 = arith.constant 4 : index
    %c0_48 = arith.constant 0 : index
    %c0_49 = arith.constant 0 : index
    %96 = vector.load %arg6[%c4, %c0_48, %c0_49] : memref<7x256x128xbf16, #tpu.memory_space<vmem>>, vector<1x256x128xbf16>
    %97 = vector.shape_cast %96 : vector<1x256x128xbf16> to vector<256x128xbf16>
    %cst_50 = arith.constant dense<0.000000e+00> : vector<8x128xf32>
    %98 = tpu.matmul %95, %97, %cst_50 {dimension_numbers = #tpu.dot_dimension_numbers<[1], [0], [0], [1], [0, 0, 1, 1], [], []>} : vector<8x256xbf16>, vector<256x128xbf16>, vector<8x128xf32> -> vector<8x128xf32>
    %99 = arith.addf %93, %98 : vector<8x128xf32>
    %100 = vector.extract_strided_slice %70 {offsets = [40, 0], sizes = [8, 256], strides = [1, 1]} : vector<56x256xf32> to vector<8x256xf32>
    %101 = arith.truncf %100 : vector<8x256xf32> to vector<8x256xbf16>
    %c5 = arith.constant 5 : index
    %c0_51 = arith.constant 0 : index
    %c0_52 = arith.constant 0 : index
    %102 = vector.load %arg6[%c5, %c0_51, %c0_52] : memref<7x256x128xbf16, #tpu.memory_space<vmem>>, vector<1x256x128xbf16>
    %103 = vector.shape_cast %102 : vector<1x256x128xbf16> to vector<256x128xbf16>
    %cst_53 = arith.constant dense<0.000000e+00> : vector<8x128xf32>
    %104 = tpu.matmul %101, %103, %cst_53 {dimension_numbers = #tpu.dot_dimension_numbers<[1], [0], [0], [1], [0, 0, 1, 1], [], []>} : vector<8x256xbf16>, vector<256x128xbf16>, vector<8x128xf32> -> vector<8x128xf32>
    %105 = arith.addf %99, %104 : vector<8x128xf32>
    %106 = vector.extract_strided_slice %70 {offsets = [48, 0], sizes = [8, 256], strides = [1, 1]} : vector<56x256xf32> to vector<8x256xf32>
    %107 = arith.truncf %106 : vector<8x256xf32> to vector<8x256xbf16>
    %c6 = arith.constant 6 : index
    %c0_54 = arith.constant 0 : index
    %c0_55 = arith.constant 0 : index
    %108 = vector.load %arg6[%c6, %c0_54, %c0_55] : memref<7x256x128xbf16, #tpu.memory_space<vmem>>, vector<1x256x128xbf16>
    %109 = vector.shape_cast %108 : vector<1x256x128xbf16> to vector<256x128xbf16>
    %cst_56 = arith.constant dense<0.000000e+00> : vector<8x128xf32>
    %110 = tpu.matmul %107, %109, %cst_56 {dimension_numbers = #tpu.dot_dimension_numbers<[1], [0], [0], [1], [0, 0, 1, 1], [], []>} : vector<8x256xbf16>, vector<256x128xbf16>, vector<8x128xf32> -> vector<8x128xf32>
    %111 = arith.addf %105, %110 : vector<8x128xf32>
    %c0_57 = arith.constant 0 : index
    %c0_58 = arith.constant 0 : index
    %112 = vector.load %arg7[%c0_57, %c0_58] : memref<1x128xf32, #tpu.memory_space<vmem>>, vector<1x128xf32>
    %113 = vector.broadcast %112 : vector<1x128xf32> to vector<8x128xf32>
    %114 = arith.addf %111, %113 : vector<8x128xf32>
    %c0_59 = arith.constant 0 : index
    %c0_60 = arith.constant 0 : index
    %115 = vector.load %arg8[%c0_59, %c0_60] : memref<8x128xf32, #tpu.memory_space<vmem>>, vector<8x128xf32>
    tpu.vector_store %arg8[%c0_59, %c0_60], %114 {strides = array<i32>} : memref<8x128xf32, #tpu.memory_space<vmem>>, vector<8x128xf32>,
    return
  }
  func.func @transform_0(%arg0: i32) -> (i32, i32, i32, i32) {
    %c0_i32 = arith.constant 0 : i32
    %c0_i32_0 = arith.constant 0 : i32
    %c0_i32_1 = arith.constant 0 : i32
    %c0_i32_2 = arith.constant 0 : i32
    return %arg0, %c0_i32, %c0_i32_0, %c0_i32_1 : i32, i32, i32, i32
  }
  func.func @transform_1(%arg0: i32) -> (i32, i32) {
    %c0_i32 = arith.constant 0 : i32
    %c0_i32_0 = arith.constant 0 : i32
    %c0_i32_1 = arith.constant 0 : i32
    return %c0_i32, %c0_i32_0 : i32, i32
  }
  func.func @transform_2(%arg0: i32) -> (i32, i32) {
    %c0_i32 = arith.constant 0 : i32
    %c0_i32_0 = arith.constant 0 : i32
    %c0_i32_1 = arith.constant 0 : i32
    return %c0_i32, %c0_i32_0 : i32, i32
  }
  func.func @transform_3(%arg0: i32) -> (i32, i32) {
    %c0_i32 = arith.constant 0 : i32
    %c0_i32_0 = arith.constant 0 : i32
    %c0_i32_1 = arith.constant 0 : i32
    return %c0_i32, %c0_i32_0 : i32, i32
  }
  func.func @transform_4(%arg0: i32) -> (i32, i32) {
    %c0_i32 = arith.constant 0 : i32
    %c0_i32_0 = arith.constant 0 : i32
    %c0_i32_1 = arith.constant 0 : i32
    return %c0_i32, %c0_i32_0 : i32, i32
  }
  func.func @transform_5(%arg0: i32) -> (i32, i32, i32) {
    %c0_i32 = arith.constant 0 : i32
    %c0_i32_0 = arith.constant 0 : i32
    %c0_i32_1 = arith.constant 0 : i32
    %c0_i32_2 = arith.constant 0 : i32
    return %c0_i32, %c0_i32_0, %c0_i32_1 : i32, i32, i32
  }
  func.func @transform_6(%arg0: i32) -> (i32, i32) {
    %c0_i32 = arith.constant 0 : i32
    %c0_i32_0 = arith.constant 0 : i32
    %c0_i32_1 = arith.constant 0 : i32
    return %c0_i32, %c0_i32_0 : i32, i32
  }
  func.func @transform_7(%arg0: i32) -> (i32, i32) {
    %c0_i32 = arith.constant 0 : i32
    %c0_i32_0 = arith.constant 0 : i32
    return %arg0, %c0_i32 : i32, i32
  }
}

</mosaic_0001>

<llo_original>
// kernel: tile.13
$region0: #{tile.13}
  #allocation0 [shape = 's32[1]{0}', space=sflag, size = 0x4, scoped, tag = 'scoped memory for tile.13']
  %s0 = inlined_call_operand.vmem [shape: f32[16], index: 0, kind: input, shape index: {}]
  %s1 = inlined_call_operand.vmem [shape: f32[14,16], index: 1, kind: output, shape index: {}]
  // Predicated region
  $region2: #{tile.13} parent=0 // pred_check
    _
  $region3: #{tile.13} parent=0 // pred_check_branch
    %3 = sbr.rel (0) target = $region5
  $region4: #{tile.13} parent=0 // pred_region
    _
  $region5: #{tile.13} parent=0 // pred_fallthru
    _
  %v4 = vld [vmem:[%s0] ss:$0 sm:$0xff]
  %5 = vst [vmem:[%s1] sm:$0xff] %v4
  %s6 = scalar_lea.vmem %s1, 8
  %7 = vst [vmem:[%s6] sm:$0xff] %v4

// kernel: tile.14
$region0: #{tile.14}
  %s0 = inlined_call_operand.vmem [shape: f32[14,16], index: 0, kind: input, shape index: {}]
  %s1 = inlined_call_operand.vmem [shape: f32[224], index: 1, kind: output, shape index: {}]
  $region1: #{tile.14} parent=0
    #allocation0 [shape = 'u8[4096]{0}', space=vmem, size = 0x1000, scoped, tag = 'scoped mem for output reshape']
    %s2 = smov 3
    %v3 = vld [vmem:[%s0] ss:$8 sm:%s2]
    %vm4 = vcmask 130048
    %5 = vst.msk [vmem:[#allocation0] sm:$0x3] %vm4, %v3
    %s6 = scalar_lea.vmem %s0, 7
    %v7 = vld [vmem:[%s6] sm:$0x1]
    %8 = vrot.lane.b32.xlu0 %v7, 112
    %v9 = vpop.permute.xlu0 %8
    %vm10 = vcmask 1048448
    %11 = vst.msk [vmem:[#allocation0] sm:$0x1] %vm10, %v9
    %s12 = scalar_lea.vmem %s0, 6
    %v13 = vld [vmem:[%s12] sm:$0x1]
    %14 = vrot.lane.b32.xlu0 %v13, 96
    %v15 = vpop.permute.xlu0 %14
    %vm16 = vcmask 917248
    %17 = vst.msk [vmem:[#allocation0] sm:$0x1] %vm16, %v15
    %s18 = scalar_lea.vmem %s0, 5
    %s19 = smov 3
    %v20 = vld [vmem:[%s18] ss:$8 sm:%s19]
    %21 = vrot.lane.b32.xlu0 %v20, 80
    %v22 = vpop.permute.xlu0 %21
    %vm23 = vcmask 786048
    %24 = vst.msk [vmem:[#allocation0] sm:$0x3] %vm23, %v22
    %s25 = scalar_lea.vmem %s0, 4
    %s26 = smov 3
    %v27 = vld [vmem:[%s25] ss:$8 sm:%s26]
    %28 = vrot.lane.b32.xlu0 %v27, 64
    %v29 = vpop.permute.xlu0 %28
    %vm30 = vcmask 654848
    %31 = vst.msk [vmem:[#allocation0] sm:$0x3] %vm30, %v29
    %s32 = scalar_lea.vmem %s0, 3
    %s33 = smov 3
    %v34 = vld [vmem:[%s32] ss:$8 sm:%s33]
    %35 = vrot.lane.b32.xlu0 %v34, 48
    %v36 = vpop.permute.xlu0 %35
    %vm37 = vcmask 523648
    %38 = vst.msk [vmem:[#allocation0] sm:$0x3] %vm37, %v36
    %s39 = scalar_lea.vmem %s0, 2
    %s40 = smov 3
    %v41 = vld [vmem:[%s39] ss:$8 sm:%s40]
    %42 = vrot.lane.b32.xlu0 %v41, 32
    %v43 = vpop.permute.xlu0 %42
    %vm44 = vcmask 392448
    %45 = vst.msk [vmem:[#allocation0] sm:$0x3] %vm44, %v43
    %s46 = scalar_lea.vmem %s0, 1
    %s47 = smov 3
    %v48 = vld [vmem:[%s46] ss:$8 sm:%s47]
    %49 = vrot.lane.b32.xlu0 %v48, 16
    %v50 = vpop.permute.xlu0 %49
    %vm51 = vcmask 261248
    %52 = vst.msk [vmem:[#allocation0] sm:$0x3] %vm51, %v50
    %s54 = sshllo.u32 0, 2
    %v56 = vld [vmem:[#allocation0] sm:%s54]
    %s57 = sshllo.u32 0, 2
    %58 = vst [vmem:[%s1] sm:%s57] %v56

// kernel: tile.18
$region0: #{tile.18}
  #allocation0 [shape = 's32[1]{0}', space=sflag, size = 0x4, scoped, tag = 'scoped memory for tile.18']
  %s0 = inlined_call_operand.vmem [shape: f32[32], index: 0, kind: input, shape index: {}]
  %s1 = inlined_call_operand.vmem [shape: f32[7,32], index: 1, kind: output, shape index: {}]
  // Predicated region
  $region2: #{tile.18} parent=0 // pred_check
    _
  $region3: #{tile.18} parent=0 // pred_check_branch
    %3 = sbr.rel (0) target = $region5
  $region4: #{tile.18} parent=0 // pred_region
    _
  $region5: #{tile.18} parent=0 // pred_fallthru
    _
  %v4 = vld [vmem:[%s0] ss:$0 sm:$0xff]
  %5 = vst [vmem:[%s1] sm:$0xff] %v4

// kernel: tile.19
$region0: #{tile.19}
  %s0 = inlined_call_operand.vmem [shape: f32[7,32], index: 0, kind: input, shape index: {}]
  %s1 = inlined_call_operand.vmem [shape: f32[224], index: 1, kind: output, shape index: {}]
  $region1: #{tile.19} parent=0
    #allocation0 [shape = 'u8[4096]{0}', space=vmem, size = 0x1000, scoped, tag = 'scoped mem for output reshape']
    %s2 = smov 3
    %v3 = vld [vmem:[%s0] ss:$4 sm:%s2]
    %vm4 = vcmask 261120
    %5 = vst.msk [vmem:[#allocation0] sm:$0x3] %vm4, %v3
    %s6 = scalar_lea.vmem %s0, 3
    %v7 = vld [vmem:[%s6] sm:$0x1]
    %8 = vrot.lane.b32.xlu0 %v7, 96
    %v9 = vpop.permute.xlu0 %8
    %vm10 = vcmask 1048320
    %11 = vst.msk [vmem:[#allocation0] sm:$0x1] %vm10, %v9
    %s12 = scalar_lea.vmem %s0, 2
    %s13 = smov 3
    %v14 = vld [vmem:[%s12] ss:$4 sm:%s13]
    %15 = vrot.lane.b32.xlu0 %v14, 64
    %v16 = vpop.permute.xlu0 %15
    %vm17 = vcmask 785920
    %18 = vst.msk [vmem:[#allocation0] sm:$0x3] %vm17, %v16
    %s19 = scalar_lea.vmem %s0, 1
    %s20 = smov 3
    %v21 = vld [vmem:[%s19] ss:$4 sm:%s20]
    %22 = vrot.lane.b32.xlu0 %v21, 32
    %v23 = vpop.permute.xlu0 %22
    %vm24 = vcmask 523520
    %25 = vst.msk [vmem:[#allocation0] sm:$0x3] %vm24, %v23
    %s27 = sshllo.u32 0, 2
    %v29 = vld [vmem:[#allocation0] sm:%s27]
    %s30 = sshllo.u32 0, 2
    %31 = vst [vmem:[%s1] sm:%s30] %v29

// kernel: cnn_forward.1
$region0: #{cnn_forward.1}
  #allocation0 [shape = 'u32[]', space=smem, size = 0x4, offset = 0x4, fixed_abs, tag = 'smem constant byte address 0x4 - core index']
  #allocation1 [shape = 'u32[144,128]{1,0:T(1,128)}', space=vmem, size = 0x12000, scoped, tag = 'internal scratch']
  %s0 = inlined_call_operand.vmem [shape: bf16[2,4,56,160], index: 0, kind: input, shape index: {}]
  %s1 = inlined_call_operand.vmem [shape: bf16[160,512], index: 1, kind: input, shape index: {}]
  %s2 = inlined_call_operand.vmem [shape: f32[1,512], index: 2, kind: input, shape index: {}]
  %s3 = inlined_call_operand.vmem [shape: bf16[1280,512], index: 3, kind: input, shape index: {}]
  %s4 = inlined_call_operand.vmem [shape: f32[1,512], index: 4, kind: input, shape index: {}]
  %s5 = inlined_call_operand.vmem [shape: bf16[7,256,128], index: 5, kind: input, shape index: {}]
  %s6 = inlined_call_operand.vmem [shape: f32[1,128], index: 6, kind: input, shape index: {}]
  %s7 = inlined_call_operand.hbm [shape: f32[16,128], index: 7, kind: output, shape index: {}]
  %s8 = sld [smem:[#allocation0]]
  $region61: #{cnn_forward.1} parent=0
    _
  %s10 = ssub.s32 1, %s8
  %s11 = scalar_select 0, %s10, %s8
  $region1: #{cnn_forward.1} parent=0
    #allocation2 [shape = 'u8[8192]{0}', space=vmem, size = 0x2000, scoped, tag = 'output window, operand 0']
    #allocation3 [shape = 's32[2]{0}', space=sflag, size = 0x8, scoped, tag = 'scoped memory for cnn_forward.1']
    %12 = vsyncpa [#allocation3], 0
    %s13 = scalar_lea.sflag [#allocation3], 1
    %14 = vsyncpa %s13, 0
    loop: start=0, step=1, limit=4
    $region2: #{cnn_forward.1} parent=1 // loop_pre_header
      _
    $region3: #{cnn_forward.1} parent=1 // loop_header
      %s16 = sphi 0, %s20
      %p17 = scmp.ge.s32.totalorder %s16, 4
      %s26 = sphi 0, %s28
      %s29 = sphi 0, %s26
      %s30 = sphi 0, %s29
      %s46 = sphi 0, %s30
      %s50 = sphi 0, %s50
      %s52 = sphi 0, %s50
      %s53 = sphi 0, %s52
      %s67 = sphi 0, %s53
      %s71 = sphi 0, %s71
      %s73 = sphi 0, %s71
      %s74 = sphi 0, %s73
      %s88 = sphi 0, %s74
      %s92 = sphi 0, %s92
      %s94 = sphi 0, %s92
      %s95 = sphi 0, %s94
      %s109 = sphi 0, %s95
      %s113 = sphi 0, %s113
      %s115 = sphi 0, %s113
      %s116 = sphi 0, %s115
      %s130 = sphi 0, %s116
      %s134 = sphi 0, %s134
      %s136 = sphi 0, %s134
      %s137 = sphi 0, %s136
      %s151 = sphi 0, %s137
      %s155 = sphi 0, %s155
      %s157 = sphi 0, %s155
      %s158 = sphi 0, %s157
      %s172 = sphi 0, %s158
      %s178 = sphi 0, %s180
      %s181 = sphi 0, %s178
      %s182 = sphi 0, %s181
      %s198 = sphi 0, %s182
    $region4: #{cnn_forward.1} parent=1 // loop_header_branch
      %19 = sbr.rel (%p17) target = $region8
    $region5: #{cnn_forward.1} parent=1 // loop_body
      %s21 = ssub.s32 %s16, 1
      %s22 = ssub.s32 %s16, 2
      %s23 = sadd.s32 %s16, 1
      %s24 = ssub.s32 %s16, %s23
      %p25 = scmp.eq.s32.totalorder %s24, 0
      %s27 = sadd.s32 %s26, 1
      %s28 = scalar_select %p25, %s26, %s27
      %p31 = pneg %p25
      %p32 = scmp.eq.s32.totalorder %s16, 1
      %p33 = por %p31, %p32
      %p34 = scmp.ne.s32.totalorder %s26, %s29
      %p35 = scmp.eq.s32.totalorder %s16, 0
      %p36 = por %p34, %p35
      %p37 = scmp.ne.s32.totalorder %s26, %s29
      %p38 = scmp.eq.s32.totalorder %s21, 1
      %p39 = por %p37, %p38
      %p40 = scmp.ne.s32.totalorder %s29, %s30
      %p41 = scmp.eq.s32.totalorder %s21, 0
      %p42 = por %p40, %p41
      %p43 = scmp.ne.s32.totalorder %s29, %s30
      %p44 = scmp.eq.s32.totalorder %s22, 1
      %p45 = por %p43, %p44
      %p47 = scmp.ne.s32.totalorder %s30, %s46
      %p48 = scmp.eq.s32.totalorder %s22, 0
      %p49 = por %p47, %p48
      %s51 = sadd.s32 %s50, 1
      %p54 = scmp.eq.s32.totalorder %s16, 1
      %p55 = scmp.ne.s32.totalorder %s50, %s52
      %p56 = scmp.eq.s32.totalorder %s16, 0
      %p57 = por %p55, %p56
      %p58 = scmp.ne.s32.totalorder %s50, %s52
      %p59 = scmp.eq.s32.totalorder %s21, 1
      %p60 = por %p58, %p59
      %p61 = scmp.ne.s32.totalorder %s52, %s53
      %p62 = scmp.eq.s32.totalorder %s21, 0
      %p63 = por %p61, %p62
      %p64 = scmp.ne.s32.totalorder %s52, %s53
      %p65 = scmp.eq.s32.totalorder %s22, 1
      %p66 = por %p64, %p65
      %p68 = scmp.ne.s32.totalorder %s53, %s67
      %p69 = scmp.eq.s32.totalorder %s22, 0
      %p70 = por %p68, %p69
      %s72 = sadd.s32 %s71, 1
      %p75 = scmp.eq.s32.totalorder %s16, 1
      %p76 = scmp.ne.s32.totalorder %s71, %s73
      %p77 = scmp.eq.s32.totalorder %s16, 0
      %p78 = por %p76, %p77
      %p79 = scmp.ne.s32.totalorder %s71, %s73
      %p80 = scmp.eq.s32.totalorder %s21, 1
      %p81 = por %p79, %p80
      %p82 = scmp.ne.s32.totalorder %s73, %s74
      %p83 = scmp.eq.s32.totalorder %s21, 0
      %p84 = por %p82, %p83
      %p85 = scmp.ne.s32.totalorder %s73, %s74
      %p86 = scmp.eq.s32.totalorder %s22, 1
      %p87 = por %p85, %p86
      %p89 = scmp.ne.s32.totalorder %s74, %s88
      %p90 = scmp.eq.s32.totalorder %s22, 0
      %p91 = por %p89, %p90
      %s93 = sadd.s32 %s92, 1
      %p96 = scmp.eq.s32.totalorder %s16, 1
      %p97 = scmp.ne.s32.totalorder %s92, %s94
      %p98 = scmp.eq.s32.totalorder %s16, 0
      %p99 = por %p97, %p98
      %p100 = scmp.ne.s32.totalorder %s92, %s94
      %p101 = scmp.eq.s32.totalorder %s21, 1
      %p102 = por %p100, %p101
      %p103 = scmp.ne.s32.totalorder %s94, %s95
      %p104 = scmp.eq.s32.totalorder %s21, 0
      %p105 = por %p103, %p104
      %p106 = scmp.ne.s32.totalorder %s94, %s95
      %p107 = scmp.eq.s32.totalorder %s22, 1
      %p108 = por %p106, %p107
      %p110 = scmp.ne.s32.totalorder %s95, %s109
      %p111 = scmp.eq.s32.totalorder %s22, 0
      %p112 = por %p110, %p111
      %s114 = sadd.s32 %s113, 1
      %p117 = scmp.eq.s32.totalorder %s16, 1
      %p118 = scmp.ne.s32.totalorder %s113, %s115
      %p119 = scmp.eq.s32.totalorder %s16, 0
      %p120 = por %p118, %p119
      %p121 = scmp.ne.s32.totalorder %s113, %s115
      %p122 = scmp.eq.s32.totalorder %s21, 1
      %p123 = por %p121, %p122
      %p124 = scmp.ne.s32.totalorder %s115, %s116
      %p125 = scmp.eq.s32.totalorder %s21, 0
      %p126 = por %p124, %p125
      %p127 = scmp.ne.s32.totalorder %s115, %s116
      %p128 = scmp.eq.s32.totalorder %s22, 1
      %p129 = por %p127, %p128
      %p131 = scmp.ne.s32.totalorder %s116, %s130
      %p132 = scmp.eq.s32.totalorder %s22, 0
      %p133 = por %p131, %p132
      %s135 = sadd.s32 %s134, 1
      %p138 = scmp.eq.s32.totalorder %s16, 1
      %p139 = scmp.ne.s32.totalorder %s134, %s136
      %p140 = scmp.eq.s32.totalorder %s16, 0
      %p141 = por %p139, %p140
      %p142 = scmp.ne.s32.totalorder %s134, %s136
      %p143 = scmp.eq.s32.totalorder %s21, 1
      %p144 = por %p142, %p143
      %p145 = scmp.ne.s32.totalorder %s136, %s137
      %p146 = scmp.eq.s32.totalorder %s21, 0
      %p147 = por %p145, %p146
      %p148 = scmp.ne.s32.totalorder %s136, %s137
      %p149 = scmp.eq.s32.totalorder %s22, 1
      %p150 = por %p148, %p149
      %p152 = scmp.ne.s32.totalorder %s137, %s151
      %p153 = scmp.eq.s32.totalorder %s22, 0
      %p154 = por %p152, %p153
      %s156 = sadd.s32 %s155, 1
      %p159 = scmp.eq.s32.totalorder %s16, 1
      %p160 = scmp.ne.s32.totalorder %s155, %s157
      %p161 = scmp.eq.s32.totalorder %s16, 0
      %p162 = por %p160, %p161
      %p163 = scmp.ne.s32.totalorder %s155, %s157
      %p164 = scmp.eq.s32.totalorder %s21, 1
      %p165 = por %p163, %p164
      %p166 = scmp.ne.s32.totalorder %s157, %s158
      %p167 = scmp.eq.s32.totalorder %s21, 0
      %p168 = por %p166, %p167
      %p169 = scmp.ne.s32.totalorder %s157, %s158
      %p170 = scmp.eq.s32.totalorder %s22, 1
      %p171 = por %p169, %p170
      %p173 = scmp.ne.s32.totalorder %s158, %s172
      %p174 = scmp.eq.s32.totalorder %s22, 0
      %p175 = por %p173, %p174
      %s176 = ssub.s32 %s16, %s23
      %p177 = scmp.eq.s32.totalorder %s176, 0
      %s179 = sadd.s32 %s178, 1
      %s180 = scalar_select %p177, %s178, %s179
      %p183 = pneg %p177
      %p184 = scmp.eq.s32.totalorder %s16, 1
      %p185 = por %p183, %p184
      %p186 = scmp.ne.s32.totalorder %s178, %s181
      %p187 = scmp.eq.s32.totalorder %s16, 0
      %p188 = por %p186, %p187
      %p189 = scmp.ne.s32.totalorder %s178, %s181
      %p190 = scmp.eq.s32.totalorder %s21, 1
      %p191 = por %p189, %p190
      %p192 = scmp.ne.s32.totalorder %s181, %s182
      %p193 = scmp.eq.s32.totalorder %s21, 0
      %p194 = por %p192, %p193
      %p195 = scmp.ne.s32.totalorder %s181, %s182
      %p196 = scmp.eq.s32.totalorder %s22, 1
      %p197 = por %p195, %p196
      %p199 = scmp.ne.s32.totalorder %s182, %s198
      %p200 = scmp.eq.s32.totalorder %s22, 0
      %p201 = por %p199, %p200
      %p202 = scmp.le.s32.totalorder 1, %s16
      %p203 = scmp.lt.s32.totalorder %s16, 3
      %p204 = pnand %p202, %p203
      %p205 = pneg %p204
      // Predicated region
      $region9: #{cnn_forward.1} parent=5 // pred_check
        _
      $region10: #{cnn_forward.1} parent=5 // pred_check_branch
        %207 = sbr.rel (%p204) target = $region12
      $region11: #{cnn_forward.1} parent=5 // pred_region
        %s208 = ssub.s32 %s16, 1
        // Predicated region
        $region13: #{cnn_forward.1} parent=11 // pred_check
          %p209 = pneg %p63
        $region14: #{cnn_forward.1} parent=11 // pred_check_branch
          %211 = sbr.rel (%p209) target = $region16
        $region15: #{cnn_forward.1} parent=11 // pred_region
          _
        $region16: #{cnn_forward.1} parent=11 // pred_fallthru
          _
        // Predicated region
        $region17: #{cnn_forward.1} parent=11 // pred_check
          %p212 = pneg %p84
        $region18: #{cnn_forward.1} parent=11 // pred_check_branch
          %214 = sbr.rel (%p212) target = $region20
        $region19: #{cnn_forward.1} parent=11 // pred_region
          _
        $region20: #{cnn_forward.1} parent=11 // pred_fallthru
          _
        // Predicated region
        $region21: #{cnn_forward.1} parent=11 // pred_check
          %p215 = pneg %p105
        $region22: #{cnn_forward.1} parent=11 // pred_check_branch
          %217 = sbr.rel (%p215) target = $region24
        $region23: #{cnn_forward.1} parent=11 // pred_region
          _
        $region24: #{cnn_forward.1} parent=11 // pred_fallthru
          _
        // Predicated region
        $region25: #{cnn_forward.1} parent=11 // pred_check
          %p218 = pneg %p126
        $region26: #{cnn_forward.1} parent=11 // pred_check_branch
          %220 = sbr.rel (%p218) target = $region28
        $region27: #{cnn_forward.1} parent=11 // pred_region
          _
        $region28: #{cnn_forward.1} parent=11 // pred_fallthru
          _
        // Predicated region
        $region29: #{cnn_forward.1} parent=11 // pred_check
          %p221 = pneg %p147
        $region30: #{cnn_forward.1} parent=11 // pred_check_branch
          %223 = sbr.rel (%p221) target = $region32
        $region31: #{cnn_forward.1} parent=11 // pred_region
          _
        $region32: #{cnn_forward.1} parent=11 // pred_fallthru
          _
        // Predicated region
        $region33: #{cnn_forward.1} parent=11 // pred_check
          %p224 = pneg %p168
        $region34: #{cnn_forward.1} parent=11 // pred_check_branch
          %226 = sbr.rel (%p224) target = $region36
        $region35: #{cnn_forward.1} parent=11 // pred_region
          _
        $region36: #{cnn_forward.1} parent=11 // pred_fallthru
          _
      $region12: #{cnn_forward.1} parent=5 // pred_fallthru
        _
      %p227 = scmp.lt.s32.totalorder %s16, 2
      // Predicated region
      $region37: #{cnn_forward.1} parent=5 // pred_check
        %p228 = pneg %p227
      $region38: #{cnn_forward.1} parent=5 // pred_check_branch
        %230 = sbr.rel (%p228) target = $region40
      $region39: #{cnn_forward.1} parent=5 // pred_region
        // Predicated region
        $region41: #{cnn_forward.1} parent=39 // pred_check
          %p231 = pneg %p36
        $region42: #{cnn_forward.1} parent=39 // pred_check_branch
          %233 = sbr.rel (%p231) target = $region44
        $region43: #{cnn_forward.1} parent=39 // pred_region
          %p234 = scmp.lt.s32.totalorder %s16, 1
          %s235 = scalar_select %p234, %s16, 1
          %s236 = smul.addr %s235, 56
          %s237 = smul.addr %s236, 4
          %s238 = scalar_lea.vmem %s0, %s237
        $region44: #{cnn_forward.1} parent=39 // pred_fallthru
          _
      $region40: #{cnn_forward.1} parent=5 // pred_fallthru
        _
      %p239 = scmp.le.s32.totalorder 1, %s16
      %p240 = scmp.lt.s32.totalorder %s16, 3
      %p241 = pnand %p239, %p240
      %p242 = pneg %p241
      // Predicated region
      $region45: #{cnn_forward.1} parent=5 // pred_check
        _
      $region46: #{cnn_forward.1} parent=5 // pred_check_branch
        %244 = sbr.rel (%p241) target = $region48
      $region47: #{cnn_forward.1} parent=5 // pred_region
        %s245 = ssub.s32 %s16, 1
        %p246 = scmp.lt.s32.totalorder %s21, 1
        %s247 = scalar_select %p246, %s21, 1
        %s248 = smul.addr %s247, 56
        %s249 = smul.addr %s248, 4
        %s250 = scalar_lea.vmem %s0, %s249
        %p251 = pneg %p42
        %p252 = pneg %p39
        %p253 = pneg %p63
        %p254 = pneg %p60
        %p255 = pneg %p84
        %p256 = pneg %p81
        %p257 = pneg %p105
        %p258 = pneg %p102
        %p259 = pneg %p126
        %p260 = pneg %p123
        %p261 = pneg %p147
        %p262 = pneg %p144
        %p263 = pneg %p168
        %p264 = pneg %p165
        %p265 = pneg %p194
        %p266 = pneg %p191
        %s267 = sand.u32 %s181, 1
        %s268 = scalar_lea.sflag [#allocation3], %s267
        %s269 = sand.u32 %s181, 1
        %s270 = smul.addr %s269, 8
        %s271 = scalar_lea.vmem [#allocation2], %s270
        %p272 = scmp.lt.s32.totalorder %s21, 1
        %s273 = scalar_select %p272, %s21, 1
        %s274 = smul.addr %s273, 56
        %s275 = smul.addr %s274, 4
        %s276 = scalar_lea.vmem %s0, %s275
        %v278 = vld [vmem:[%s2] sm:$0xf]
        %v279 = vld [vmem:[%s4] sm:$0xf]
        %v280 = vld [vmem:[%s1] sm:$0xff]
        %v281 = vld [vmem:[%s1 + $0x8] sm:$0xff]
        %v282 = vld [vmem:[%s1 + $0x10] sm:$0xff]
        %v283 = vld [vmem:[%s1 + $0x18] sm:$0xff]
        %v284 = vld [vmem:[%s1 + $0x20] sm:$0xff]
        %v285 = vld [vmem:[%s1 + $0x28] sm:$0xff]
        %v286 = vld [vmem:[%s1 + $0x30] sm:$0xff]
        %v287 = vld [vmem:[%s1 + $0x38] sm:$0xff]
        %v288 = vld [vmem:[%s1 + $0x40] sm:$0xff]
        %v289 = vld [vmem:[%s1 + $0x48] sm:$0xff]
        %v290 = vld [vmem:[%s1 + $0x50] sm:$0xff]
        %v291 = vld [vmem:[%s1 + $0x58] sm:$0xff]
        %v292 = vld [vmem:[%s1 + $0x60] sm:$0xff]
        %v293 = vld [vmem:[%s1 + $0x68] sm:$0xff]
        %v294 = vld [vmem:[%s1 + $0x70] sm:$0xff]
        %v295 = vld [vmem:[%s1 + $0x78] sm:$0xff]
        %v296 = vld [vmem:[%s1 + $0x80] sm:$0xff]
        %v297 = vld [vmem:[%s1 + $0x88] sm:$0xff]
        %v298 = vld [vmem:[%s1 + $0x90] sm:$0xff]
        %v299 = vld [vmem:[%s1 + $0x98] sm:$0xff]
        %v300 = vld [vmem:[%s1 + $0xa0] sm:$0xff]
        %v301 = vld [vmem:[%s1 + $0xa8] sm:$0xff]
        %v302 = vld [vmem:[%s1 + $0xb0] sm:$0xff]
        %v303 = vld [vmem:[%s1 + $0xb8] sm:$0xff]
        %v304 = vld [vmem:[%s1 + $0xc0] sm:$0xff]
        %v305 = vld [vmem:[%s1 + $0xc8] sm:$0xff]
        %v306 = vld [vmem:[%s1 + $0xd0] sm:$0xff]
        %v307 = vld [vmem:[%s1 + $0xd8] sm:$0xff]
        %v308 = vld [vmem:[%s1 + $0xe0] sm:$0xff]
        %v309 = vld [vmem:[%s1 + $0xe8] sm:$0xff]
        %v310 = vld [vmem:[%s1 + $0xf0] sm:$0xff]
        %v311 = vld [vmem:[%s1 + $0xf8] sm:$0xff]
        %v312 = vld [vmem:[%s1 + $0x100] sm:$0xff]
        %v313 = vld [vmem:[%s1 + $0x108] sm:$0xff]
        %v314 = vld [vmem:[%s1 + $0x110] sm:$0xff]
        %v315 = vld [vmem:[%s1 + $0x118] sm:$0xff]
        %v316 = vld [vmem:[%s1 + $0x120] sm:$0xff]
        %v317 = vld [vmem:[%s1 + $0x128] sm:$0xff]
        %v318 = vld [vmem:[%s1 + $0x130] sm:$0xff]
        %v319 = vld [vmem:[%s1 + $0x138] sm:$0xff]
        %v320 = vld [vmem:[%s276] sm:$0xff]
        %v321 = vld [vmem:[%s276 + $0x8] sm:$0xff]
        %v322 = vld [vmem:[%s276 + $0x10] sm:$0xff]
        %v323 = vld [vmem:[%s276 + $0x18] sm:$0xff]
        %v324 = vld [vmem:[%s276 + $0x20] sm:$0xff]
        %v325 = vld [vmem:[%s276 + $0x28] sm:$0xff]
        %v326 = vld [vmem:[%s276 + $0x30] sm:$0xff]
        %v328 = vlaneseq
        %v329 = vshrl.u32 %v328, 7
        %v330 = vsub.s32 0, %v329
        %v331 = vrot.slane %v278, %v330
        %v332 = vlaneseq
        %v333 = vshrl.u32 %v332, 7
        %v334 = vsub.s32 1, %v333
        %v335 = vrot.slane %v278, %v334
        %v336 = vlaneseq
        %v337 = vshrl.u32 %v336, 7
        %v338 = vsub.s32 2, %v337
        %v339 = vrot.slane %v278, %v338
        %v340 = vlaneseq
        %v341 = vshrl.u32 %v340, 7
        %v342 = vsub.s32 3, %v341
        %v343 = vrot.slane %v278, %v342
        %v355 = vunpack.c.l.b16 %v320
        %v356 = vunpack.c.h.b16 %v320
        %v357 = vunpack.c.l.b16 %v321
        %v358 = vunpack.c.h.b16 %v321
        %v359 = vunpack.c.l.b16 %v322
        %v360 = vunpack.c.h.b16 %v322
        %v361 = vunpack.c.l.b16 %v323
        %v362 = vunpack.c.h.b16 %v323
        %v363 = vunpack.c.l.b16 %v324
        %v364 = vunpack.c.h.b16 %v324
        %v365 = vunpack.c.l.b16 %v325
        %v366 = vunpack.c.h.b16 %v325
        %v367 = vunpack.c.l.b16 %v326
        %v368 = vunpack.c.h.b16 %v326
        %v369 = vpack.c.b16 %v357, %v355
        %v370 = vpack.c.b16 %v358, %v356
        %v371 = vpack.c.b16 %v361, %v359
        %v372 = vpack.c.b16 %v362, %v360
        %v373 = vpack.c.b16 %v365, %v363
        %v374 = vpack.c.b16 %v366, %v364
        %v375 = vpack.c.b16 %v367, %v367
        %v376 = vpack.c.b16 %v368, %v368
        %v421 = vunpack.c.l.b16 %v280
        %v422 = vunpack.c.h.b16 %v280
        %v423 = vunpack.c.l.b16 %v281
        %v424 = vunpack.c.h.b16 %v281
        %v425 = vunpack.c.l.b16 %v282
        %v426 = vunpack.c.h.b16 %v282
        %v427 = vunpack.c.l.b16 %v283
        %v428 = vunpack.c.h.b16 %v283
        %v429 = vunpack.c.l.b16 %v284
        %v430 = vunpack.c.h.b16 %v284
        %v431 = vunpack.c.l.b16 %v285
        %v432 = vunpack.c.h.b16 %v285
        %v433 = vunpack.c.l.b16 %v286
        %v434 = vunpack.c.h.b16 %v286
        %v435 = vunpack.c.l.b16 %v287
        %v436 = vunpack.c.h.b16 %v287
        %v437 = vunpack.c.l.b16 %v288
        %v438 = vunpack.c.h.b16 %v288
        %v439 = vunpack.c.l.b16 %v289
        %v440 = vunpack.c.h.b16 %v289
        %v441 = vunpack.c.l.b16 %v290
        %v442 = vunpack.c.h.b16 %v290
        %v443 = vunpack.c.l.b16 %v291
        %v444 = vunpack.c.h.b16 %v291
        %v445 = vunpack.c.l.b16 %v292
        %v446 = vunpack.c.h.b16 %v292
        %v447 = vunpack.c.l.b16 %v293
        %v448 = vunpack.c.h.b16 %v293
        %v449 = vunpack.c.l.b16 %v294
        %v450 = vunpack.c.h.b16 %v294
        %v451 = vunpack.c.l.b16 %v295
        %v452 = vunpack.c.h.b16 %v295
        %v453 = vunpack.c.l.b16 %v296
        %v454 = vunpack.c.h.b16 %v296
        %v455 = vunpack.c.l.b16 %v297
        %v456 = vunpack.c.h.b16 %v297
        %v457 = vunpack.c.l.b16 %v298
        %v458 = vunpack.c.h.b16 %v298
        %v459 = vunpack.c.l.b16 %v299
        %v460 = vunpack.c.h.b16 %v299
        %v461 = vunpack.c.l.b16 %v300
        %v462 = vunpack.c.h.b16 %v300
        %v463 = vunpack.c.l.b16 %v301
        %v464 = vunpack.c.h.b16 %v301
        %v465 = vunpack.c.l.b16 %v302
        %v466 = vunpack.c.h.b16 %v302
        %v467 = vunpack.c.l.b16 %v303
        %v468 = vunpack.c.h.b16 %v303
        %v469 = vunpack.c.l.b16 %v304
        %v470 = vunpack.c.h.b16 %v304
        %v471 = vunpack.c.l.b16 %v305
        %v472 = vunpack.c.h.b16 %v305
        %v473 = vunpack.c.l.b16 %v306
        %v474 = vunpack.c.h.b16 %v306
        %v475 = vunpack.c.l.b16 %v307
        %v476 = vunpack.c.h.b16 %v307
        %v477 = vunpack.c.l.b16 %v308
        %v478 = vunpack.c.h.b16 %v308
        %v479 = vunpack.c.l.b16 %v309
        %v480 = vunpack.c.h.b16 %v309
        %v481 = vunpack.c.l.b16 %v310
        %v482 = vunpack.c.h.b16 %v310
        %v483 = vunpack.c.l.b16 %v311
        %v484 = vunpack.c.h.b16 %v311
        %v485 = vunpack.c.l.b16 %v312
        %v486 = vunpack.c.h.b16 %v312
        %v487 = vunpack.c.l.b16 %v313
        %v488 = vunpack.c.h.b16 %v313
        %v489 = vunpack.c.l.b16 %v314
        %v490 = vunpack.c.h.b16 %v314
        %v491 = vunpack.c.l.b16 %v315
        %v492 = vunpack.c.h.b16 %v315
        %v493 = vunpack.c.l.b16 %v316
        %v494 = vunpack.c.h.b16 %v316
        %v495 = vunpack.c.l.b16 %v317
        %v496 = vunpack.c.h.b16 %v317
        %v497 = vunpack.c.l.b16 %v318
        %v498 = vunpack.c.h.b16 %v318
        %v499 = vunpack.c.l.b16 %v319
        %v500 = vunpack.c.h.b16 %v319
        %v501 = vpack.c.b16 %v425, %v421
        %v502 = vpack.c.b16 %v426, %v422
        %v503 = vpack.c.b16 %v427, %v423
        %v504 = vpack.c.b16 %v428, %v424
        %v505 = vpack.c.b16 %v433, %v429
        %v506 = vpack.c.b16 %v434, %v430
        %v507 = vpack.c.b16 %v435, %v431
        %v508 = vpack.c.b16 %v436, %v432
        %v509 = vpack.c.b16 %v441, %v437
        %v510 = vpack.c.b16 %v442, %v438
        %v511 = vpack.c.b16 %v443, %v439
        %v512 = vpack.c.b16 %v444, %v440
        %v513 = vpack.c.b16 %v449, %v445
        %v514 = vpack.c.b16 %v450, %v446
        %v515 = vpack.c.b16 %v451, %v447
        %v516 = vpack.c.b16 %v452, %v448
        %v517 = vpack.c.b16 %v457, %v453
        %v518 = vpack.c.b16 %v458, %v454
        %v519 = vpack.c.b16 %v459, %v455
        %v520 = vpack.c.b16 %v460, %v456
        %v521 = vpack.c.b16 %v465, %v461
        %v522 = vpack.c.b16 %v466, %v462
        %v523 = vpack.c.b16 %v467, %v463
        %v524 = vpack.c.b16 %v468, %v464
        %v525 = vpack.c.b16 %v473, %v469
        %v526 = vpack.c.b16 %v474, %v470
        %v527 = vpack.c.b16 %v475, %v471
        %v528 = vpack.c.b16 %v476, %v472
        %v529 = vpack.c.b16 %v481, %v477
        %v530 = vpack.c.b16 %v482, %v478
        %v531 = vpack.c.b16 %v483, %v479
        %v532 = vpack.c.b16 %v484, %v480
        %v533 = vpack.c.b16 %v489, %v485
        %v534 = vpack.c.b16 %v490, %v486
        %v535 = vpack.c.b16 %v491, %v487
        %v536 = vpack.c.b16 %v492, %v488
        %v537 = vpack.c.b16 %v497, %v493
        %v538 = vpack.c.b16 %v498, %v494
        %v539 = vpack.c.b16 %v499, %v495
        %v540 = vpack.c.b16 %v500, %v496
        %vm581 = vcmask 261120
        %v583 = vsel %vm581, %v370, 0
        %v586 = vsel %vm581, %v372, 0
        %v589 = vsel %vm581, %v374, 0
        %v592 = vsel %vm581, %v376, 0
        %594 = vmatprep.subr.bf16.mxu0 %v502
        %595 = vmatpush1.bf16.msra.mxu0 %v501
        %596 = vmatprep.subr.bf16.mxu0 %v506
        %597 = vmatpush1.bf16.msra.mxu0 %v505
        %598 = vmatprep.subr.bf16.mxu0 %v510
        %599 = vmatpush1.bf16.msra.mxu0 %v509
        %600 = vmatprep.subr.bf16.mxu0 %v514
        %601 = vmatpush1.bf16.msra.mxu0 %v513
        %602 = vmatprep.subr.bf16.mxu0 %v518
        %603 = vmatpush1.bf16.msra.mxu0 %v517
        %604 = vmatprep.subr.bf16.mxu0 %v522
        %605 = vmatpush1.bf16.msra.mxu0 %v521
        %606 = vmatprep.subr.bf16.mxu0 %v526
        %607 = vmatpush1.bf16.msra.mxu0 %v525
        %608 = vmatprep.subr.bf16.mxu0 %v530
        %609 = vmatpush1.bf16.msra.mxu0 %v529
        %610 = vmatprep.subr.bf16.mxu0 %v534
        %611 = vmatpush1.bf16.msra.mxu0 %v533
        %612 = vmatprep.subr.bf16.mxu0 %v538
        %613 = vmatpush1.bf16.msra.mxu0 %v537
        %614 = vmatprep.subr.bf16.mxu0 0
        %615 = vmatpush1.bf16.msra.mxu0 0
        %616 = vmatprep.subr.bf16.mxu0 0
        %617 = vmatpush1.bf16.msra.mxu0 0
        %618 = vmatprep.subr.bf16.mxu0 0
        %619 = vmatpush1.bf16.msra.mxu0 0
        %620 = vmatprep.subr.bf16.mxu0 0
        %621 = vmatpush1.bf16.msra.mxu0 0
        %622 = vmatprep.subr.bf16.mxu0 0
        %623 = vmatpush1.bf16.msra.mxu0 0
        %624 = vmatprep.subr.bf16.mxu0 0
        %625 = vmatpush1.bf16.msra.mxu0 0
        %626 = vmatprep.mubr.bf16.mxu0 %v583
        %627 = vmatmul.mubr.bf16.gmra.mrb[0].mxu0 %v369
        %v628 = vpop.f32.mrb[0].mxu0
        %v629 = vadd.f32 %v331, %v628
        %v630 = vpop.f32.mrb[0].mxu0
        %v631 = vadd.f32 %v335, %v630
        %v632 = vpop.f32.mrb[0].mxu0
        %v633 = vadd.f32 %v331, %v632
        %v634 = vpop.f32.mrb[0].mxu0
        %v635 = vadd.f32 %v335, %v634
        %636 = vmatprep.mubr.bf16.mxu0 %v586
        %637 = vmatmul.mubr.bf16.gmra.mrb[0].mxu0 %v371
        %v638 = vpop.f32.mrb[0].mxu0
        %v639 = vadd.f32 %v331, %v638
        %v640 = vpop.f32.mrb[0].mxu0
        %v641 = vadd.f32 %v335, %v640
        %v642 = vpop.f32.mrb[0].mxu0
        %v643 = vadd.f32 %v331, %v642
        %v644 = vpop.f32.mrb[0].mxu0
        %v645 = vadd.f32 %v335, %v644
        %646 = vmatprep.mubr.bf16.mxu0 %v589
        %647 = vmatmul.mubr.bf16.gmra.mrb[0].mxu0 %v373
        %v648 = vpop.f32.mrb[0].mxu0
        %v649 = vadd.f32 %v331, %v648
        %v650 = vpop.f32.mrb[0].mxu0
        %v651 = vadd.f32 %v335, %v650
        %v652 = vpop.f32.mrb[0].mxu0
        %v653 = vadd.f32 %v331, %v652
        %v654 = vpop.f32.mrb[0].mxu0
        %v655 = vadd.f32 %v335, %v654
        %656 = vmatprep.mubr.bf16.mxu0 %v592
        %657 = vmatmul.mubr.bf16.gmra.mrb[0].mxu0 %v375
        %v658 = vpop.f32.mrb[0].mxu0
        %v659 = vadd.f32 %v331, %v658
        %v660 = vpop.f32.mrb[0].mxu0
        %v661 = vadd.f32 %v335, %v660
        %v662 = vpop.f32.mrb[0].mxu0
        %v663 = vpop.f32.mrb[0].mxu0
        %664 = vdwg.mxu0
        %665 = vmatprep.subr.bf16.mxu0 %v504
        %666 = vmatpush1.bf16.msra.mxu0 %v503
        %667 = vmatprep.subr.bf16.mxu0 %v508
        %668 = vmatpush1.bf16.msra.mxu0 %v507
        %669 = vmatprep.subr.bf16.mxu0 %v512
        %670 = vmatpush1.bf16.msra.mxu0 %v511
        %671 = vmatprep.subr.bf16.mxu0 %v516
        %672 = vmatpush1.bf16.msra.mxu0 %v515
        %673 = vmatprep.subr.bf16.mxu0 %v520
        %674 = vmatpush1.bf16.msra.mxu0 %v519
        %675 = vmatprep.subr.bf16.mxu0 %v524
        %676 = vmatpush1.bf16.msra.mxu0 %v523
        %677 = vmatprep.subr.bf16.mxu0 %v528
        %678 = vmatpush1.bf16.msra.mxu0 %v527
        %679 = vmatprep.subr.bf16.mxu0 %v532
        %680 = vmatpush1.bf16.msra.mxu0 %v531
        %681 = vmatprep.subr.bf16.mxu0 %v536
        %682 = vmatpush1.bf16.msra.mxu0 %v535
        %683 = vmatprep.subr.bf16.mxu0 %v540
        %684 = vmatpush1.bf16.msra.mxu0 %v539
        %685 = vmatprep.subr.bf16.mxu0 0
        %686 = vmatpush1.bf16.msra.mxu0 0
        %687 = vmatprep.subr.bf16.mxu0 0
        %688 = vmatpush1.bf16.msra.mxu0 0
        %689 = vmatprep.subr.bf16.mxu0 0
        %690 = vmatpush1.bf16.msra.mxu0 0
        %691 = vmatprep.subr.bf16.mxu0 0
        %692 = vmatpush1.bf16.msra.mxu0 0
        %693 = vmatprep.subr.bf16.mxu0 0
        %694 = vmatpush1.bf16.msra.mxu0 0
        %695 = vmatprep.subr.bf16.mxu0 0
        %696 = vmatpush1.bf16.msra.mxu0 0
        %697 = vmatprep.mubr.bf16.mxu0 %v583
        %698 = vmatmul.mubr.bf16.gmra.mrb[0].mxu0 %v369
        %v699 = vpop.f32.mrb[0].mxu0
        %v700 = vadd.f32 %v339, %v699
        %v701 = vpop.f32.mrb[0].mxu0
        %v702 = vadd.f32 %v343, %v701
        %v703 = vpop.f32.mrb[0].mxu0
        %v704 = vadd.f32 %v339, %v703
        %v705 = vpop.f32.mrb[0].mxu0
        %v706 = vadd.f32 %v343, %v705
        %707 = vmatprep.mubr.bf16.mxu0 %v586
        %708 = vmatmul.mubr.bf16.gmra.mrb[0].mxu0 %v371
        %v709 = vpop.f32.mrb[0].mxu0
        %v710 = vadd.f32 %v339, %v709
        %v711 = vpop.f32.mrb[0].mxu0
        %v712 = vadd.f32 %v343, %v711
        %v713 = vpop.f32.mrb[0].mxu0
        %v714 = vadd.f32 %v339, %v713
        %v715 = vpop.f32.mrb[0].mxu0
        %v716 = vadd.f32 %v343, %v715
        %717 = vmatprep.mubr.bf16.mxu0 %v589
        %718 = vmatmul.mubr.bf16.gmra.mrb[0].mxu0 %v373
        %v719 = vpop.f32.mrb[0].mxu0
        %v720 = vadd.f32 %v339, %v719
        %v721 = vpop.f32.mrb[0].mxu0
        %v722 = vadd.f32 %v343, %v721
        %v723 = vpop.f32.mrb[0].mxu0
        %v724 = vadd.f32 %v339, %v723
        %v725 = vpop.f32.mrb[0].mxu0
        %v726 = vadd.f32 %v343, %v725
        %727 = vmatprep.mubr.bf16.mxu0 %v592
        %728 = vmatmul.mubr.bf16.gmra.mrb[0].mxu0 %v375
        %v729 = vpop.f32.mrb[0].mxu0
        %v730 = vadd.f32 %v339, %v729
        %v731 = vpop.f32.mrb[0].mxu0
        %v732 = vadd.f32 %v343, %v731
        %v733 = vpop.f32.mrb[0].mxu0
        %v734 = vpop.f32.mrb[0].mxu0
        %735 = vdwg.mxu0
        %v736 = vmax.f32 %v629, 0.0
        %v737 = vmax.f32 %v631, 0.0
        %v738 = vmax.f32 %v700, 0.0
        %v739 = vmax.f32 %v702, 0.0
        %v740 = vmax.f32 %v633, 0.0
        %v741 = vmax.f32 %v635, 0.0
        %v742 = vmax.f32 %v704, 0.0
        %v743 = vmax.f32 %v706, 0.0
        %v744 = vmax.f32 %v639, 0.0
        %v745 = vmax.f32 %v641, 0.0
        %v746 = vmax.f32 %v710, 0.0
        %v747 = vmax.f32 %v712, 0.0
        %v748 = vmax.f32 %v643, 0.0
        %v749 = vmax.f32 %v645, 0.0
        %v750 = vmax.f32 %v714, 0.0
        %v751 = vmax.f32 %v716, 0.0
        %v752 = vmax.f32 %v649, 0.0
        %v753 = vmax.f32 %v651, 0.0
        %v754 = vmax.f32 %v720, 0.0
        %v755 = vmax.f32 %v722, 0.0
        %v756 = vmax.f32 %v653, 0.0
        %v757 = vmax.f32 %v655, 0.0
        %v758 = vmax.f32 %v724, 0.0
        %v759 = vmax.f32 %v726, 0.0
        %v760 = vmax.f32 %v659, 0.0
        %v761 = vmax.f32 %v661, 0.0
        %v762 = vmax.f32 %v730, 0.0
        %v763 = vmax.f32 %v732, 0.0
        %s764 = scalar_lea.vmem %s276, 56
        %v765 = vld [vmem:[%s764] sm:$0xff]
        %v766 = vld [vmem:[%s764 + $0x8] sm:$0xff]
        %v767 = vld [vmem:[%s764 + $0x10] sm:$0xff]
        %v768 = vld [vmem:[%s764 + $0x18] sm:$0xff]
        %v769 = vld [vmem:[%s764 + $0x20] sm:$0xff]
        %v770 = vld [vmem:[%s764 + $0x28] sm:$0xff]
        %v771 = vld [vmem:[%s764 + $0x30] sm:$0xff]
        %v779 = vunpack.c.l.b16 %v765
        %v780 = vunpack.c.h.b16 %v765
        %v781 = vunpack.c.l.b16 %v766
        %v782 = vunpack.c.h.b16 %v766
        %v783 = vunpack.c.l.b16 %v767
        %v784 = vunpack.c.h.b16 %v767
        %v785 = vunpack.c.l.b16 %v768
        %v786 = vunpack.c.h.b16 %v768
        %v787 = vunpack.c.l.b16 %v769
        %v788 = vunpack.c.h.b16 %v769
        %v789 = vunpack.c.l.b16 %v770
        %v790 = vunpack.c.h.b16 %v770
        %v791 = vunpack.c.l.b16 %v771
        %v792 = vunpack.c.h.b16 %v771
        %v793 = vpack.c.b16 %v781, %v779
        %v794 = vpack.c.b16 %v782, %v780
        %v795 = vpack.c.b16 %v785, %v783
        %v796 = vpack.c.b16 %v786, %v784
        %v797 = vpack.c.b16 %v789, %v787
        %v798 = vpack.c.b16 %v790, %v788
        %v799 = vpack.c.b16 %v791, %v791
        %v800 = vpack.c.b16 %v792, %v792
        %v806 = vsel %vm581, %v794, 0
        %v809 = vsel %vm581, %v796, 0
        %v812 = vsel %vm581, %v798, 0
        %v815 = vsel %vm581, %v800, 0
        %817 = vmatprep.subr.bf16.mxu0 %v502
        %818 = vmatpush1.bf16.msra.mxu0 %v501
        %819 = vmatprep.subr.bf16.mxu0 %v506
        %820 = vmatpush1.bf16.msra.mxu0 %v505
        %821 = vmatprep.subr.bf16.mxu0 %v510
        %822 = vmatpush1.bf16.msra.mxu0 %v509
        %823 = vmatprep.subr.bf16.mxu0 %v514
        %824 = vmatpush1.bf16.msra.mxu0 %v513
        %825 = vmatprep.subr.bf16.mxu0 %v518
        %826 = vmatpush1.bf16.msra.mxu0 %v517
        %827 = vmatprep.subr.bf16.mxu0 %v522
        %828 = vmatpush1.bf16.msra.mxu0 %v521
        %829 = vmatprep.subr.bf16.mxu0 %v526
        %830 = vmatpush1.bf16.msra.mxu0 %v525
        %831 = vmatprep.subr.bf16.mxu0 %v530
        %832 = vmatpush1.bf16.msra.mxu0 %v529
        %833 = vmatprep.subr.bf16.mxu0 %v534
        %834 = vmatpush1.bf16.msra.mxu0 %v533
        %835 = vmatprep.subr.bf16.mxu0 %v538
        %836 = vmatpush1.bf16.msra.mxu0 %v537
        %837 = vmatprep.subr.bf16.mxu0 0
        %838 = vmatpush1.bf16.msra.mxu0 0
        %839 = vmatprep.subr.bf16.mxu0 0
        %840 = vmatpush1.bf16.msra.mxu0 0
        %841 = vmatprep.subr.bf16.mxu0 0
        %842 = vmatpush1.bf16.msra.mxu0 0
        %843 = vmatprep.subr.bf16.mxu0 0
        %844 = vmatpush1.bf16.msra.mxu0 0
        %845 = vmatprep.subr.bf16.mxu0 0
        %846 = vmatpush1.bf16.msra.mxu0 0
        %847 = vmatprep.subr.bf16.mxu0 0
        %848 = vmatpush1.bf16.msra.mxu0 0
        %849 = vmatprep.mubr.bf16.mxu0 %v806
        %850 = vmatmul.mubr.bf16.gmra.mrb[0].mxu0 %v793
        %v851 = vpop.f32.mrb[0].mxu0
        %v852 = vadd.f32 %v331, %v851
        %v853 = vpop.f32.mrb[0].mxu0
        %v854 = vadd.f32 %v335, %v853
        %v855 = vpop.f32.mrb[0].mxu0
        %v856 = vadd.f32 %v331, %v855
        %v857 = vpop.f32.mrb[0].mxu0
        %v858 = vadd.f32 %v335, %v857
        %859 = vmatprep.mubr.bf16.mxu0 %v809
        %860 = vmatmul.mubr.bf16.gmra.mrb[0].mxu0 %v795
        %v861 = vpop.f32.mrb[0].mxu0
        %v862 = vadd.f32 %v331, %v861
        %v863 = vpop.f32.mrb[0].mxu0
        %v864 = vadd.f32 %v335, %v863
        %v865 = vpop.f32.mrb[0].mxu0
        %v866 = vadd.f32 %v331, %v865
        %v867 = vpop.f32.mrb[0].mxu0
        %v868 = vadd.f32 %v335, %v867
        %869 = vmatprep.mubr.bf16.mxu0 %v812
        %870 = vmatmul.mubr.bf16.gmra.mrb[0].mxu0 %v797
        %v871 = vpop.f32.mrb[0].mxu0
        %v872 = vadd.f32 %v331, %v871
        %v873 = vpop.f32.mrb[0].mxu0
        %v874 = vadd.f32 %v335, %v873
        %v875 = vpop.f32.mrb[0].mxu0
        %v876 = vadd.f32 %v331, %v875
        %v877 = vpop.f32.mrb[0].mxu0
        %v878 = vadd.f32 %v335, %v877
        %879 = vmatprep.mubr.bf16.mxu0 %v815
        %880 = vmatmul.mubr.bf16.gmra.mrb[0].mxu0 %v799
        %v881 = vpop.f32.mrb[0].mxu0
        %v882 = vadd.f32 %v331, %v881
        %v883 = vpop.f32.mrb[0].mxu0
        %v884 = vadd.f32 %v335, %v883
        %v885 = vpop.f32.mrb[0].mxu0
        %v886 = vpop.f32.mrb[0].mxu0
        %887 = vdwg.mxu0
        %888 = vmatprep.subr.bf16.mxu0 %v504
        %889 = vmatpush1.bf16.msra.mxu0 %v503
        %890 = vmatprep.subr.bf16.mxu0 %v508
        %891 = vmatpush1.bf16.msra.mxu0 %v507
        %892 = vmatprep.subr.bf16.mxu0 %v512
        %893 = vmatpush1.bf16.msra.mxu0 %v511
        %894 = vmatprep.subr.bf16.mxu0 %v516
        %895 = vmatpush1.bf16.msra.mxu0 %v515
        %896 = vmatprep.subr.bf16.mxu0 %v520
        %897 = vmatpush1.bf16.msra.mxu0 %v519
        %898 = vmatprep.subr.bf16.mxu0 %v524
        %899 = vmatpush1.bf16.msra.mxu0 %v523
        %900 = vmatprep.subr.bf16.mxu0 %v528
        %901 = vmatpush1.bf16.msra.mxu0 %v527
        %902 = vmatprep.subr.bf16.mxu0 %v532
        %903 = vmatpush1.bf16.msra.mxu0 %v531
        %904 = vmatprep.subr.bf16.mxu0 %v536
        %905 = vmatpush1.bf16.msra.mxu0 %v535
        %906 = vmatprep.subr.bf16.mxu0 %v540
        %907 = vmatpush1.bf16.msra.mxu0 %v539
        %908 = vmatprep.subr.bf16.mxu0 0
        %909 = vmatpush1.bf16.msra.mxu0 0
        %910 = vmatprep.subr.bf16.mxu0 0
        %911 = vmatpush1.bf16.msra.mxu0 0
        %912 = vmatprep.subr.bf16.mxu0 0
        %913 = vmatpush1.bf16.msra.mxu0 0
        %914 = vmatprep.subr.bf16.mxu0 0
        %915 = vmatpush1.bf16.msra.mxu0 0
        %916 = vmatprep.subr.bf16.mxu0 0
        %917 = vmatpush1.bf16.msra.mxu0 0
        %918 = vmatprep.subr.bf16.mxu0 0
        %919 = vmatpush1.bf16.msra.mxu0 0
        %920 = vmatprep.mubr.bf16.mxu0 %v806
        %921 = vmatmul.mubr.bf16.gmra.mrb[0].mxu0 %v793
        %v922 = vpop.f32.mrb[0].mxu0
        %v923 = vadd.f32 %v339, %v922
        %v924 = vpop.f32.mrb[0].mxu0
        %v925 = vadd.f32 %v343, %v924
        %v926 = vpop.f32.mrb[0].mxu0
        %v927 = vadd.f32 %v339, %v926
        %v928 = vpop.f32.mrb[0].mxu0
        %v929 = vadd.f32 %v343, %v928
        %930 = vmatprep.mubr.bf16.mxu0 %v809
        %931 = vmatmul.mubr.bf16.gmra.mrb[0].mxu0 %v795
        %v932 = vpop.f32.mrb[0].mxu0
        %v933 = vadd.f32 %v339, %v932
        %v934 = vpop.f32.mrb[0].mxu0
        %v935 = vadd.f32 %v343, %v934
        %v936 = vpop.f32.mrb[0].mxu0
        %v937 = vadd.f32 %v339, %v936
        %v938 = vpop.f32.mrb[0].mxu0
        %v939 = vadd.f32 %v343, %v938
        %940 = vmatprep.mubr.bf16.mxu0 %v812
        %941 = vmatmul.mubr.bf16.gmra.mrb[0].mxu0 %v797
        %v942 = vpop.f32.mrb[0].mxu0
        %v943 = vadd.f32 %v339, %v942
        %v944 = vpop.f32.mrb[0].mxu0
        %v945 = vadd.f32 %v343, %v944
        %v946 = vpop.f32.mrb[0].mxu0
        %v947 = vadd.f32 %v339, %v946
        %v948 = vpop.f32.mrb[0].mxu0
        %v949 = vadd.f32 %v343, %v948
        %950 = vmatprep.mubr.bf16.mxu0 %v815
        %951 = vmatmul.mubr.bf16.gmra.mrb[0].mxu0 %v799
        %v952 = vpop.f32.mrb[0].mxu0
        %v953 = vadd.f32 %v339, %v952
        %v954 = vpop.f32.mrb[0].mxu0
        %v955 = vadd.f32 %v343, %v954
        %v956 = vpop.f32.mrb[0].mxu0
        %v957 = vpop.f32.mrb[0].mxu0
        %958 = vdwg.mxu0
        %v959 = vmax.f32 %v852, 0.0
        %v960 = vmax.f32 %v854, 0.0
        %v961 = vmax.f32 %v923, 0.0
        %v962 = vmax.f32 %v925, 0.0
        %v963 = vmax.f32 %v856, 0.0
        %v964 = vmax.f32 %v858, 0.0
        %v965 = vmax.f32 %v927, 0.0
        %v966 = vmax.f32 %v929, 0.0
        %v967 = vmax.f32 %v862, 0.0
        %v968 = vmax.f32 %v864, 0.0
        %v969 = vmax.f32 %v933, 0.0
        %v970 = vmax.f32 %v935, 0.0
        %v971 = vmax.f32 %v866, 0.0
        %v972 = vmax.f32 %v868, 0.0
        %v973 = vmax.f32 %v937, 0.0
        %v974 = vmax.f32 %v939, 0.0
        %v975 = vmax.f32 %v872, 0.0
        %v976 = vmax.f32 %v874, 0.0
        %v977 = vmax.f32 %v943, 0.0
        %v978 = vmax.f32 %v945, 0.0
        %v979 = vmax.f32 %v876, 0.0
        %v980 = vmax.f32 %v878, 0.0
        %v981 = vmax.f32 %v947, 0.0
        %v982 = vmax.f32 %v949, 0.0
        %v983 = vmax.f32 %v882, 0.0
        %v984 = vmax.f32 %v884, 0.0
        %v985 = vmax.f32 %v953, 0.0
        %v986 = vmax.f32 %v955, 0.0
        %s987 = scalar_lea.vmem %s276, 112
        %v988 = vld [vmem:[%s987] sm:$0xff]
        %v989 = vld [vmem:[%s987 + $0x8] sm:$0xff]
        %v990 = vld [vmem:[%s987 + $0x10] sm:$0xff]
        %v991 = vld [vmem:[%s987 + $0x18] sm:$0xff]
        %v992 = vld [vmem:[%s987 + $0x20] sm:$0xff]
        %v993 = vld [vmem:[%s987 + $0x28] sm:$0xff]
        %v994 = vld [vmem:[%s987 + $0x30] sm:$0xff]
        %v1002 = vunpack.c.l.b16 %v988
        %v1003 = vunpack.c.h.b16 %v988
        %v1004 = vunpack.c.l.b16 %v989
        %v1005 = vunpack.c.h.b16 %v989
        %v1006 = vunpack.c.l.b16 %v990
        %v1007 = vunpack.c.h.b16 %v990
        %v1008 = vunpack.c.l.b16 %v991
        %v1009 = vunpack.c.h.b16 %v991
        %v1010 = vunpack.c.l.b16 %v992
        %v1011 = vunpack.c.h.b16 %v992
        %v1012 = vunpack.c.l.b16 %v993
        %v1013 = vunpack.c.h.b16 %v993
        %v1014 = vunpack.c.l.b16 %v994
        %v1015 = vunpack.c.h.b16 %v994
        %v1016 = vpack.c.b16 %v1004, %v1002
        %v1017 = vpack.c.b16 %v1005, %v1003
        %v1018 = vpack.c.b16 %v1008, %v1006
        %v1019 = vpack.c.b16 %v1009, %v1007
        %v1020 = vpack.c.b16 %v1012, %v1010
        %v1021 = vpack.c.b16 %v1013, %v1011
        %v1022 = vpack.c.b16 %v1014, %v1014
        %v1023 = vpack.c.b16 %v1015, %v1015
        %v1029 = vsel %vm581, %v1017, 0
        %v1032 = vsel %vm581, %v1019, 0
        %v1035 = vsel %vm581, %v1021, 0
        %v1038 = vsel %vm581, %v1023, 0
        %1040 = vmatprep.subr.bf16.mxu0 %v502
        %1041 = vmatpush1.bf16.msra.mxu0 %v501
        %1042 = vmatprep.subr.bf16.mxu0 %v506
        %1043 = vmatpush1.bf16.msra.mxu0 %v505
        %1044 = vmatprep.subr.bf16.mxu0 %v510
        %1045 = vmatpush1.bf16.msra.mxu0 %v509
        %1046 = vmatprep.subr.bf16.mxu0 %v514
        %1047 = vmatpush1.bf16.msra.mxu0 %v513
        %1048 = vmatprep.subr.bf16.mxu0 %v518
        %1049 = vmatpush1.bf16.msra.mxu0 %v517
        %1050 = vmatprep.subr.bf16.mxu0 %v522
        %1051 = vmatpush1.bf16.msra.mxu0 %v521
        %1052 = vmatprep.subr.bf16.mxu0 %v526
        %1053 = vmatpush1.bf16.msra.mxu0 %v525
        %1054 = vmatprep.subr.bf16.mxu0 %v530
        %1055 = vmatpush1.bf16.msra.mxu0 %v529
        %1056 = vmatprep.subr.bf16.mxu0 %v534
        %1057 = vmatpush1.bf16.msra.mxu0 %v533
        %1058 = vmatprep.subr.bf16.mxu0 %v538
        %1059 = vmatpush1.bf16.msra.mxu0 %v537
        %1060 = vmatprep.subr.bf16.mxu0 0
        %1061 = vmatpush1.bf16.msra.mxu0 0
        %1062 = vmatprep.subr.bf16.mxu0 0
        %1063 = vmatpush1.bf16.msra.mxu0 0
        %1064 = vmatprep.subr.bf16.mxu0 0
        %1065 = vmatpush1.bf16.msra.mxu0 0
        %1066 = vmatprep.subr.bf16.mxu0 0
        %1067 = vmatpush1.bf16.msra.mxu0 0
        %1068 = vmatprep.subr.bf16.mxu0 0
        %1069 = vmatpush1.bf16.msra.mxu0 0
        %1070 = vmatprep.subr.bf16.mxu0 0
        %1071 = vmatpush1.bf16.msra.mxu0 0
        %1072 = vmatprep.mubr.bf16.mxu0 %v1029
        %1073 = vmatmul.mubr.bf16.gmra.mrb[0].mxu0 %v1016
        %v1074 = vpop.f32.mrb[0].mxu0
        %v1075 = vadd.f32 %v331, %v1074
        %v1076 = vpop.f32.mrb[0].mxu0
        %v1077 = vadd.f32 %v335, %v1076
        %v1078 = vpop.f32.mrb[0].mxu0
        %v1079 = vadd.f32 %v331, %v1078
        %v1080 = vpop.f32.mrb[0].mxu0
        %v1081 = vadd.f32 %v335, %v1080
        %1082 = vmatprep.mubr.bf16.mxu0 %v1032
        %1083 = vmatmul.mubr.bf16.gmra.mrb[0].mxu0 %v1018
        %v1084 = vpop.f32.mrb[0].mxu0
        %v1085 = vadd.f32 %v331, %v1084
        %v1086 = vpop.f32.mrb[0].mxu0
        %v1087 = vadd.f32 %v335, %v1086
        %v1088 = vpop.f32.mrb[0].mxu0
        %v1089 = vadd.f32 %v331, %v1088
        %v1090 = vpop.f32.mrb[0].mxu0
        %v1091 = vadd.f32 %v335, %v1090
        %1092 = vmatprep.mubr.bf16.mxu0 %v1035
        %1093 = vmatmul.mubr.bf16.gmra.mrb[0].mxu0 %v1020
        %v1094 = vpop.f32.mrb[0].mxu0
        %v1095 = vadd.f32 %v331, %v1094
        %v1096 = vpop.f32.mrb[0].mxu0
        %v1097 = vadd.f32 %v335, %v1096
        %v1098 = vpop.f32.mrb[0].mxu0
        %v1099 = vadd.f32 %v331, %v1098
        %v1100 = vpop.f32.mrb[0].mxu0
        %v1101 = vadd.f32 %v335, %v1100
        %1102 = vmatprep.mubr.bf16.mxu0 %v1038
        %1103 = vmatmul.mubr.bf16.gmra.mrb[0].mxu0 %v1022
        %v1104 = vpop.f32.mrb[0].mxu0
        %v1105 = vadd.f32 %v331, %v1104
        %v1106 = vpop.f32.mrb[0].mxu0
        %v1107 = vadd.f32 %v335, %v1106
        %v1108 = vpop.f32.mrb[0].mxu0
        %v1109 = vpop.f32.mrb[0].mxu0
        %1110 = vdwg.mxu0
        %1111 = vmatprep.subr.bf16.mxu0 %v504
        %1112 = vmatpush1.bf16.msra.mxu0 %v503
        %1113 = vmatprep.subr.bf16.mxu0 %v508
        %1114 = vmatpush1.bf16.msra.mxu0 %v507
        %1115 = vmatprep.subr.bf16.mxu0 %v512
        %1116 = vmatpush1.bf16.msra.mxu0 %v511
        %1117 = vmatprep.subr.bf16.mxu0 %v516
        %1118 = vmatpush1.bf16.msra.mxu0 %v515
        %1119 = vmatprep.subr.bf16.mxu0 %v520
        %1120 = vmatpush1.bf16.msra.mxu0 %v519
        %1121 = vmatprep.subr.bf16.mxu0 %v524
        %1122 = vmatpush1.bf16.msra.mxu0 %v523
        %1123 = vmatprep.subr.bf16.mxu0 %v528
        %1124 = vmatpush1.bf16.msra.mxu0 %v527
        %1125 = vmatprep.subr.bf16.mxu0 %v532
        %1126 = vmatpush1.bf16.msra.mxu0 %v531
        %1127 = vmatprep.subr.bf16.mxu0 %v536
        %1128 = vmatpush1.bf16.msra.mxu0 %v535
        %1129 = vmatprep.subr.bf16.mxu0 %v540
        %1130 = vmatpush1.bf16.msra.mxu0 %v539
        %1131 = vmatprep.subr.bf16.mxu0 0
        %1132 = vmatpush1.bf16.msra.mxu0 0
        %1133 = vmatprep.subr.bf16.mxu0 0
        %1134 = vmatpush1.bf16.msra.mxu0 0
        %1135 = vmatprep.subr.bf16.mxu0 0
        %1136 = vmatpush1.bf16.msra.mxu0 0
        %1137 = vmatprep.subr.bf16.mxu0 0
        %1138 = vmatpush1.bf16.msra.mxu0 0
        %1139 = vmatprep.subr.bf16.mxu0 0
        %1140 = vmatpush1.bf16.msra.mxu0 0
        %1141 = vmatprep.subr.bf16.mxu0 0
        %1142 = vmatpush1.bf16.msra.mxu0 0
        %1143 = vmatprep.mubr.bf16.mxu0 %v1029
        %1144 = vmatmul.mubr.bf16.gmra.mrb[0].mxu0 %v1016
        %v1145 = vpop.f32.mrb[0].mxu0
        %v1146 = vadd.f32 %v339, %v1145
        %v1147 = vpop.f32.mrb[0].mxu0
        %v1148 = vadd.f32 %v343, %v1147
        %v1149 = vpop.f32.mrb[0].mxu0
        %v1150 = vadd.f32 %v339, %v1149
        %v1151 = vpop.f32.mrb[0].mxu0
        %v1152 = vadd.f32 %v343, %v1151
        %1153 = vmatprep.mubr.bf16.mxu0 %v1032
        %1154 = vmatmul.mubr.bf16.gmra.mrb[0].mxu0 %v1018
        %v1155 = vpop.f32.mrb[0].mxu0
        %v1156 = vadd.f32 %v339, %v1155
        %v1157 = vpop.f32.mrb[0].mxu0
        %v1158 = vadd.f32 %v343, %v1157
        %v1159 = vpop.f32.mrb[0].mxu0
        %v1160 = vadd.f32 %v339, %v1159
        %v1161 = vpop.f32.mrb[0].mxu0
        %v1162 = vadd.f32 %v343, %v1161
        %1163 = vmatprep.mubr.bf16.mxu0 %v1035
        %1164 = vmatmul.mubr.bf16.gmra.mrb[0].mxu0 %v1020
        %v1165 = vpop.f32.mrb[0].mxu0
        %v1166 = vadd.f32 %v339, %v1165
        %v1167 = vpop.f32.mrb[0].mxu0
        %v1168 = vadd.f32 %v343, %v1167
        %v1169 = vpop.f32.mrb[0].mxu0
        %v1170 = vadd.f32 %v339, %v1169
        %v1171 = vpop.f32.mrb[0].mxu0
        %v1172 = vadd.f32 %v343, %v1171
        %1173 = vmatprep.mubr.bf16.mxu0 %v1038
        %1174 = vmatmul.mubr.bf16.gmra.mrb[0].mxu0 %v1022
        %v1175 = vpop.f32.mrb[0].mxu0
        %v1176 = vadd.f32 %v339, %v1175
        %v1177 = vpop.f32.mrb[0].mxu0
        %v1178 = vadd.f32 %v343, %v1177
        %v1179 = vpop.f32.mrb[0].mxu0
        %v1180 = vpop.f32.mrb[0].mxu0
        %1181 = vdwg.mxu0
        %v1182 = vmax.f32 %v1075, 0.0
        %v1183 = vmax.f32 %v1077, 0.0
        %v1184 = vmax.f32 %v1146, 0.0
        %v1185 = vmax.f32 %v1148, 0.0
        %v1186 = vmax.f32 %v1079, 0.0
        %v1187 = vmax.f32 %v1081, 0.0
        %v1188 = vmax.f32 %v1150, 0.0
        %v1189 = vmax.f32 %v1152, 0.0
        %v1190 = vmax.f32 %v1085, 0.0
        %v1191 = vmax.f32 %v1087, 0.0
        %v1192 = vmax.f32 %v1156, 0.0
        %v1193 = vmax.f32 %v1158, 0.0
        %v1194 = vmax.f32 %v1089, 0.0
        %v1195 = vmax.f32 %v1091, 0.0
        %v1196 = vmax.f32 %v1160, 0.0
        %v1197 = vmax.f32 %v1162, 0.0
        %v1198 = vmax.f32 %v1095, 0.0
        %v1199 = vmax.f32 %v1097, 0.0
        %v1200 = vmax.f32 %v1166, 0.0
        %v1201 = vmax.f32 %v1168, 0.0
        %v1202 = vmax.f32 %v1099, 0.0
        %v1203 = vmax.f32 %v1101, 0.0
        %v1204 = vmax.f32 %v1170, 0.0
        %v1205 = vmax.f32 %v1172, 0.0
        %v1206 = vmax.f32 %v1105, 0.0
        %v1207 = vmax.f32 %v1107, 0.0
        %v1208 = vmax.f32 %v1176, 0.0
        %v1209 = vmax.f32 %v1178, 0.0
        %s1210 = scalar_lea.vmem %s276, 168
        %v1211 = vld [vmem:[%s1210] sm:$0xff]
        %v1212 = vld [vmem:[%s1210 + $0x8] sm:$0xff]
        %v1213 = vld [vmem:[%s1210 + $0x10] sm:$0xff]
        %v1214 = vld [vmem:[%s1210 + $0x18] sm:$0xff]
        %v1215 = vld [vmem:[%s1210 + $0x20] sm:$0xff]
        %v1216 = vld [vmem:[%s1210 + $0x28] sm:$0xff]
        %v1217 = vld [vmem:[%s1210 + $0x30] sm:$0xff]
        %v1225 = vunpack.c.l.b16 %v1211
        %v1226 = vunpack.c.h.b16 %v1211
        %v1227 = vunpack.c.l.b16 %v1212
        %v1228 = vunpack.c.h.b16 %v1212
        %v1229 = vunpack.c.l.b16 %v1213
        %v1230 = vunpack.c.h.b16 %v1213
        %v1231 = vunpack.c.l.b16 %v1214
        %v1232 = vunpack.c.h.b16 %v1214
        %v1233 = vunpack.c.l.b16 %v1215
        %v1234 = vunpack.c.h.b16 %v1215
        %v1235 = vunpack.c.l.b16 %v1216
        %v1236 = vunpack.c.h.b16 %v1216
        %v1237 = vunpack.c.l.b16 %v1217
        %v1238 = vunpack.c.h.b16 %v1217
        %v1239 = vpack.c.b16 %v1227, %v1225
        %v1240 = vpack.c.b16 %v1228, %v1226
        %v1241 = vpack.c.b16 %v1231, %v1229
        %v1242 = vpack.c.b16 %v1232, %v1230
        %v1243 = vpack.c.b16 %v1235, %v1233
        %v1244 = vpack.c.b16 %v1236, %v1234
        %v1245 = vpack.c.b16 %v1237, %v1237
        %v1246 = vpack.c.b16 %v1238, %v1238
        %v1252 = vsel %vm581, %v1240, 0
        %v1255 = vsel %vm581, %v1242, 0
        %v1258 = vsel %vm581, %v1244, 0
        %v1261 = vsel %vm581, %v1246, 0
        %1263 = vmatprep.subr.bf16.mxu0 %v502
        %1264 = vmatpush1.bf16.msra.mxu0 %v501
        %1265 = vmatprep.subr.bf16.mxu0 %v506
        %1266 = vmatpush1.bf16.msra.mxu0 %v505
        %1267 = vmatprep.subr.bf16.mxu0 %v510
        %1268 = vmatpush1.bf16.msra.mxu0 %v509
        %1269 = vmatprep.subr.bf16.mxu0 %v514
        %1270 = vmatpush1.bf16.msra.mxu0 %v513
        %1271 = vmatprep.subr.bf16.mxu0 %v518
        %1272 = vmatpush1.bf16.msra.mxu0 %v517
        %1273 = vmatprep.subr.bf16.mxu0 %v522
        %1274 = vmatpush1.bf16.msra.mxu0 %v521
        %1275 = vmatprep.subr.bf16.mxu0 %v526
        %1276 = vmatpush1.bf16.msra.mxu0 %v525
        %1277 = vmatprep.subr.bf16.mxu0 %v530
        %1278 = vmatpush1.bf16.msra.mxu0 %v529
        %1279 = vmatprep.subr.bf16.mxu0 %v534
        %1280 = vmatpush1.bf16.msra.mxu0 %v533
        %1281 = vmatprep.subr.bf16.mxu0 %v538
        %1282 = vmatpush1.bf16.msra.mxu0 %v537
        %1283 = vmatprep.subr.bf16.mxu0 0
        %1284 = vmatpush1.bf16.msra.mxu0 0
        %1285 = vmatprep.subr.bf16.mxu0 0
        %1286 = vmatpush1.bf16.msra.mxu0 0
        %1287 = vmatprep.subr.bf16.mxu0 0
        %1288 = vmatpush1.bf16.msra.mxu0 0
        %1289 = vmatprep.subr.bf16.mxu0 0
        %1290 = vmatpush1.bf16.msra.mxu0 0
        %1291 = vmatprep.subr.bf16.mxu0 0
        %1292 = vmatpush1.bf16.msra.mxu0 0
        %1293 = vmatprep.subr.bf16.mxu0 0
        %1294 = vmatpush1.bf16.msra.mxu0 0
        %1295 = vmatprep.mubr.bf16.mxu0 %v1252
        %1296 = vmatmul.mubr.bf16.gmra.mrb[0].mxu0 %v1239
        %v1297 = vpop.f32.mrb[0].mxu0
        %v1298 = vadd.f32 %v331, %v1297
        %v1299 = vpop.f32.mrb[0].mxu0
        %v1300 = vadd.f32 %v335, %v1299
        %v1301 = vpop.f32.mrb[0].mxu0
        %v1302 = vadd.f32 %v331, %v1301
        %v1303 = vpop.f32.mrb[0].mxu0
        %v1304 = vadd.f32 %v335, %v1303
        %1305 = vmatprep.mubr.bf16.mxu0 %v1255
        %1306 = vmatmul.mubr.bf16.gmra.mrb[0].mxu0 %v1241
        %v1307 = vpop.f32.mrb[0].mxu0
        %v1308 = vadd.f32 %v331, %v1307
        %v1309 = vpop.f32.mrb[0].mxu0
        %v1310 = vadd.f32 %v335, %v1309
        %v1311 = vpop.f32.mrb[0].mxu0
        %v1312 = vadd.f32 %v331, %v1311
        %v1313 = vpop.f32.mrb[0].mxu0
        %v1314 = vadd.f32 %v335, %v1313
        %1315 = vmatprep.mubr.bf16.mxu0 %v1258
        %1316 = vmatmul.mubr.bf16.gmra.mrb[0].mxu0 %v1243
        %v1317 = vpop.f32.mrb[0].mxu0
        %v1318 = vadd.f32 %v331, %v1317
        %v1319 = vpop.f32.mrb[0].mxu0
        %v1320 = vadd.f32 %v335, %v1319
        %v1321 = vpop.f32.mrb[0].mxu0
        %v1322 = vadd.f32 %v331, %v1321
        %v1323 = vpop.f32.mrb[0].mxu0
        %v1324 = vadd.f32 %v335, %v1323
        %1325 = vmatprep.mubr.bf16.mxu0 %v1261
        %1326 = vmatmul.mubr.bf16.gmra.mrb[0].mxu0 %v1245
        %v1327 = vpop.f32.mrb[0].mxu0
        %v1328 = vadd.f32 %v331, %v1327
        %v1329 = vpop.f32.mrb[0].mxu0
        %v1330 = vadd.f32 %v335, %v1329
        %v1331 = vpop.f32.mrb[0].mxu0
        %v1332 = vpop.f32.mrb[0].mxu0
        %1333 = vdwg.mxu0
        %1334 = vmatprep.subr.bf16.mxu0 %v504
        %1335 = vmatpush1.bf16.msra.mxu0 %v503
        %1336 = vmatprep.subr.bf16.mxu0 %v508
        %1337 = vmatpush1.bf16.msra.mxu0 %v507
        %1338 = vmatprep.subr.bf16.mxu0 %v512
        %1339 = vmatpush1.bf16.msra.mxu0 %v511
        %1340 = vmatprep.subr.bf16.mxu0 %v516
        %1341 = vmatpush1.bf16.msra.mxu0 %v515
        %1342 = vmatprep.subr.bf16.mxu0 %v520
        %1343 = vmatpush1.bf16.msra.mxu0 %v519
        %1344 = vmatprep.subr.bf16.mxu0 %v524
        %1345 = vmatpush1.bf16.msra.mxu0 %v523
        %1346 = vmatprep.subr.bf16.mxu0 %v528
        %1347 = vmatpush1.bf16.msra.mxu0 %v527
        %1348 = vmatprep.subr.bf16.mxu0 %v532
        %1349 = vmatpush1.bf16.msra.mxu0 %v531
        %1350 = vmatprep.subr.bf16.mxu0 %v536
        %1351 = vmatpush1.bf16.msra.mxu0 %v535
        %1352 = vmatprep.subr.bf16.mxu0 %v540
        %1353 = vmatpush1.bf16.msra.mxu0 %v539
        %1354 = vmatprep.subr.bf16.mxu0 0
        %1355 = vmatpush1.bf16.msra.mxu0 0
        %1356 = vmatprep.subr.bf16.mxu0 0
        %1357 = vmatpush1.bf16.msra.mxu0 0
        %1358 = vmatprep.subr.bf16.mxu0 0
        %1359 = vmatpush1.bf16.msra.mxu0 0
        %1360 = vmatprep.subr.bf16.mxu0 0
        %1361 = vmatpush1.bf16.msra.mxu0 0
        %1362 = vmatprep.subr.bf16.mxu0 0
        %1363 = vmatpush1.bf16.msra.mxu0 0
        %1364 = vmatprep.subr.bf16.mxu0 0
        %1365 = vmatpush1.bf16.msra.mxu0 0
        %1366 = vmatprep.mubr.bf16.mxu0 %v1252
        %1367 = vmatmul.mubr.bf16.gmra.mrb[0].mxu0 %v1239
        %v1368 = vpop.f32.mrb[0].mxu0
        %v1369 = vadd.f32 %v339, %v1368
        %v1370 = vpop.f32.mrb[0].mxu0
        %v1371 = vadd.f32 %v343, %v1370
        %v1372 = vpop.f32.mrb[0].mxu0
        %v1373 = vadd.f32 %v339, %v1372
        %v1374 = vpop.f32.mrb[0].mxu0
        %v1375 = vadd.f32 %v343, %v1374
        %1376 = vmatprep.mubr.bf16.mxu0 %v1255
        %1377 = vmatmul.mubr.bf16.gmra.mrb[0].mxu0 %v1241
        %v1378 = vpop.f32.mrb[0].mxu0
        %v1379 = vadd.f32 %v339, %v1378
        %v1380 = vpop.f32.mrb[0].mxu0
        %v1381 = vadd.f32 %v343, %v1380
        %v1382 = vpop.f32.mrb[0].mxu0
        %v1383 = vadd.f32 %v339, %v1382
        %v1384 = vpop.f32.mrb[0].mxu0
        %v1385 = vadd.f32 %v343, %v1384
        %1386 = vmatprep.mubr.bf16.mxu0 %v1258
        %1387 = vmatmul.mubr.bf16.gmra.mrb[0].mxu0 %v1243
        %v1388 = vpop.f32.mrb[0].mxu0
        %v1389 = vadd.f32 %v339, %v1388
        %v1390 = vpop.f32.mrb[0].mxu0
        %v1391 = vadd.f32 %v343, %v1390
        %v1392 = vpop.f32.mrb[0].mxu0
        %v1393 = vadd.f32 %v339, %v1392
        %v1394 = vpop.f32.mrb[0].mxu0
        %v1395 = vadd.f32 %v343, %v1394
        %1396 = vmatprep.mubr.bf16.mxu0 %v1261
        %1397 = vmatmul.mubr.bf16.gmra.mrb[0].mxu0 %v1245
        %v1398 = vpop.f32.mrb[0].mxu0
        %v1399 = vadd.f32 %v339, %v1398
        %v1400 = vpop.f32.mrb[0].mxu0
        %v1401 = vadd.f32 %v343, %v1400
        %v1402 = vpop.f32.mrb[0].mxu0
        %v1403 = vpop.f32.mrb[0].mxu0
        %1404 = vdwg.mxu0
        %v1405 = vmax.f32 %v1298, 0.0
        %v1406 = vmax.f32 %v1300, 0.0
        %v1407 = vmax.f32 %v1369, 0.0
        %v1408 = vmax.f32 %v1371, 0.0
        %v1409 = vmax.f32 %v1302, 0.0
        %v1410 = vmax.f32 %v1304, 0.0
        %v1411 = vmax.f32 %v1373, 0.0
        %v1412 = vmax.f32 %v1375, 0.0
        %v1413 = vmax.f32 %v1308, 0.0
        %v1414 = vmax.f32 %v1310, 0.0
        %v1415 = vmax.f32 %v1379, 0.0
        %v1416 = vmax.f32 %v1381, 0.0
        %v1417 = vmax.f32 %v1312, 0.0
        %v1418 = vmax.f32 %v1314, 0.0
        %v1419 = vmax.f32 %v1383, 0.0
        %v1420 = vmax.f32 %v1385, 0.0
        %v1421 = vmax.f32 %v1318, 0.0
        %v1422 = vmax.f32 %v1320, 0.0
        %v1423 = vmax.f32 %v1389, 0.0
        %v1424 = vmax.f32 %v1391, 0.0
        %v1425 = vmax.f32 %v1322, 0.0
        %v1426 = vmax.f32 %v1324, 0.0
        %v1427 = vmax.f32 %v1393, 0.0
        %v1428 = vmax.f32 %v1395, 0.0
        %v1429 = vmax.f32 %v1328, 0.0
        %v1430 = vmax.f32 %v1330, 0.0
        %v1431 = vmax.f32 %v1399, 0.0
        %v1432 = vmax.f32 %v1401, 0.0
        %v1433 = vmax.f32 %v736, %v959
        %v1434 = vmax.f32 %v737, %v960
        %v1435 = vmax.f32 %v738, %v961
        %v1436 = vmax.f32 %v739, %v962
        %v1437 = vmax.f32 %v740, %v963
        %v1438 = vmax.f32 %v741, %v964
        %v1439 = vmax.f32 %v742, %v965
        %v1440 = vmax.f32 %v743, %v966
        %v1441 = vmax.f32 %v744, %v967
        %v1442 = vmax.f32 %v745, %v968
        %v1443 = vmax.f32 %v746, %v969
        %v1444 = vmax.f32 %v747, %v970
        %v1445 = vmax.f32 %v748, %v971
        %v1446 = vmax.f32 %v749, %v972
        %v1447 = vmax.f32 %v750, %v973
        %v1448 = vmax.f32 %v751, %v974
        %v1449 = vmax.f32 %v752, %v975
        %v1450 = vmax.f32 %v753, %v976
        %v1451 = vmax.f32 %v754, %v977
        %v1452 = vmax.f32 %v755, %v978
        %v1453 = vmax.f32 %v756, %v979
        %v1454 = vmax.f32 %v757, %v980
        %v1455 = vmax.f32 %v758, %v981
        %v1456 = vmax.f32 %v759, %v982
        %v1457 = vmax.f32 %v760, %v983
        %v1458 = vmax.f32 %v761, %v984
        %v1459 = vmax.f32 %v762, %v985
        %v1460 = vmax.f32 %v763, %v986
        %v1461 = vmax.f32 %v1182, %v1405
        %v1462 = vmax.f32 %v1183, %v1406
        %v1463 = vmax.f32 %v1184, %v1407
        %v1464 = vmax.f32 %v1185, %v1408
        %v1465 = vmax.f32 %v1186, %v1409
        %v1466 = vmax.f32 %v1187, %v1410
        %v1467 = vmax.f32 %v1188, %v1411
        %v1468 = vmax.f32 %v1189, %v1412
        %v1469 = vmax.f32 %v1190, %v1413
        %v1470 = vmax.f32 %v1191, %v1414
        %v1471 = vmax.f32 %v1192, %v1415
        %v1472 = vmax.f32 %v1193, %v1416
        %v1473 = vmax.f32 %v1194, %v1417
        %v1474 = vmax.f32 %v1195, %v1418
        %v1475 = vmax.f32 %v1196, %v1419
        %v1476 = vmax.f32 %v1197, %v1420
        %v1477 = vmax.f32 %v1198, %v1421
        %v1478 = vmax.f32 %v1199, %v1422
        %v1479 = vmax.f32 %v1200, %v1423
        %v1480 = vmax.f32 %v1201, %v1424
        %v1481 = vmax.f32 %v1202, %v1425
        %v1482 = vmax.f32 %v1203, %v1426
        %v1483 = vmax.f32 %v1204, %v1427
        %v1484 = vmax.f32 %v1205, %v1428
        %v1485 = vmax.f32 %v1206, %v1429
        %v1486 = vmax.f32 %v1207, %v1430
        %v1487 = vmax.f32 %v1208, %v1431
        %v1488 = vmax.f32 %v1209, %v1432
        %v1489 = vmax.f32 %v1433, %v1435
        %v1490 = vmax.f32 %v1434, %v1436
        %v1491 = vmax.f32 %v1437, %v1439
        %v1492 = vmax.f32 %v1438, %v1440
        %v1493 = vmax.f32 %v1441, %v1443
        %v1494 = vmax.f32 %v1442, %v1444
        %v1495 = vmax.f32 %v1445, %v1447
        %v1496 = vmax.f32 %v1446, %v1448
        %v1497 = vmax.f32 %v1449, %v1451
        %v1498 = vmax.f32 %v1450, %v1452
        %v1499 = vmax.f32 %v1453, %v1455
        %v1500 = vmax.f32 %v1454, %v1456
        %v1501 = vmax.f32 %v1457, %v1459
        %v1502 = vmax.f32 %v1458, %v1460
        %v1503 = vmax.f32 %v1461, %v1463
        %v1504 = vmax.f32 %v1462, %v1464
        %v1505 = vmax.f32 %v1465, %v1467
        %v1506 = vmax.f32 %v1466, %v1468
        %v1507 = vmax.f32 %v1469, %v1471
        %v1508 = vmax.f32 %v1470, %v1472
        %v1509 = vmax.f32 %v1473, %v1475
        %v1510 = vmax.f32 %v1474, %v1476
        %v1511 = vmax.f32 %v1477, %v1479
        %v1512 = vmax.f32 %v1478, %v1480
        %v1513 = vmax.f32 %v1481, %v1483
        %v1514 = vmax.f32 %v1482, %v1484
        %v1515 = vmax.f32 %v1485, %v1487
        %v1516 = vmax.f32 %v1486, %v1488
        %v1517 = vld [vmem:[%s3] sm:$0xff]
        %v1518 = vld [vmem:[%s3 + $0x8] sm:$0xff]
        %v1519 = vld [vmem:[%s3 + $0x10] sm:$0xff]
        %v1520 = vld [vmem:[%s3 + $0x18] sm:$0xff]
        %v1521 = vld [vmem:[%s3 + $0x20] sm:$0xff]
        %v1522 = vld [vmem:[%s3 + $0x28] sm:$0xff]
        %v1523 = vld [vmem:[%s3 + $0x30] sm:$0xff]
        %v1524 = vld [vmem:[%s3 + $0x38] sm:$0xff]
        %v1525 = vld [vmem:[%s3 + $0x40] sm:$0xff]
        %v1526 = vld [vmem:[%s3 + $0x48] sm:$0xff]
        %v1527 = vld [vmem:[%s3 + $0x50] sm:$0xff]
        %v1528 = vld [vmem:[%s3 + $0x58] sm:$0xff]
        %v1529 = vld [vmem:[%s3 + $0x60] sm:$0xff]
        %v1530 = vld [vmem:[%s3 + $0x68] sm:$0xff]
        %v1531 = vld [vmem:[%s3 + $0x70] sm:$0xff]
        %v1532 = vld [vmem:[%s3 + $0x78] sm:$0xff]
        %v1533 = vld [vmem:[%s3 + $0x80] sm:$0xff]
        %v1534 = vld [vmem:[%s3 + $0x88] sm:$0xff]
        %v1535 = vld [vmem:[%s3 + $0x90] sm:$0xff]
        %v1536 = vld [vmem:[%s3 + $0x98] sm:$0xff]
        %v1537 = vld [vmem:[%s3 + $0xa0] sm:$0xff]
        %v1538 = vld [vmem:[%s3 + $0xa8] sm:$0xff]
        %v1539 = vld [vmem:[%s3 + $0xb0] sm:$0xff]
        %v1540 = vld [vmem:[%s3 + $0xb8] sm:$0xff]
        %v1541 = vld [vmem:[%s3 + $0xc0] sm:$0xff]
        %v1542 = vld [vmem:[%s3 + $0xc8] sm:$0xff]
        %v1543 = vld [vmem:[%s3 + $0xd0] sm:$0xff]
        %v1544 = vld [vmem:[%s3 + $0xd8] sm:$0xff]
        %v1545 = vld [vmem:[%s3 + $0xe0] sm:$0xff]
        %v1546 = vld [vmem:[%s3 + $0xe8] sm:$0xff]
        %v1547 = vld [vmem:[%s3 + $0xf0] sm:$0xff]
        %v1548 = vld [vmem:[%s3 + $0xf8] sm:$0xff]
        %v1549 = vld [vmem:[%s3 + $0x100] sm:$0xff]
        %v1550 = vld [vmem:[%s3 + $0x108] sm:$0xff]
        %v1551 = vld [vmem:[%s3 + $0x110] sm:$0xff]
        %v1552 = vld [vmem:[%s3 + $0x118] sm:$0xff]
        %v1553 = vld [vmem:[%s3 + $0x120] sm:$0xff]
        %v1554 = vld [vmem:[%s3 + $0x128] sm:$0xff]
        %v1555 = vld [vmem:[%s3 + $0x130] sm:$0xff]
        %v1556 = vld [vmem:[%s3 + $0x138] sm:$0xff]
        %v1557 = vld [vmem:[%s3 + $0x140] sm:$0xff]
        %v1558 = vld [vmem:[%s3 + $0x148] sm:$0xff]
        %v1559 = vld [vmem:[%s3 + $0x150] sm:$0xff]
        %v1560 = vld [vmem:[%s3 + $0x158] sm:$0xff]
        %v1561 = vld [vmem:[%s3 + $0x160] sm:$0xff]
        %v1562 = vld [vmem:[%s3 + $0x168] sm:$0xff]
        %v1563 = vld [vmem:[%s3 + $0x170] sm:$0xff]
        %v1564 = vld [vmem:[%s3 + $0x178] sm:$0xff]
        %v1565 = vld [vmem:[%s3 + $0x180] sm:$0xff]
        %v1566 = vld [vmem:[%s3 + $0x188] sm:$0xff]
        %v1567 = vld [vmem:[%s3 + $0x190] sm:$0xff]
        %v1568 = vld [vmem:[%s3 + $0x198] sm:$0xff]
        %v1569 = vld [vmem:[%s3 + $0x1a0] sm:$0xff]
        %v1570 = vld [vmem:[%s3 + $0x1a8] sm:$0xff]
        %v1571 = vld [vmem:[%s3 + $0x1b0] sm:$0xff]
        %v1572 = vld [vmem:[%s3 + $0x1b8] sm:$0xff]
        %v1573 = vld [vmem:[%s3 + $0x1c0] sm:$0xff]
        %v1574 = vld [vmem:[%s3 + $0x1c8] sm:$0xff]
        %v1575 = vld [vmem:[%s3 + $0x1d0] sm:$0xff]
        %v1576 = vld [vmem:[%s3 + $0x1d8] sm:$0xff]
        %v1577 = vld [vmem:[%s3 + $0x1e0] sm:$0xff]
        %v1578 = vld [vmem:[%s3 + $0x1e8] sm:$0xff]
        %v1579 = vld [vmem:[%s3 + $0x1f0] sm:$0xff]
        %v1580 = vld [vmem:[%s3 + $0x1f8] sm:$0xff]
        %v1581 = vld [vmem:[%s3 + $0x200] sm:$0xff]
        %v1582 = vld [vmem:[%s3 + $0x208] sm:$0xff]
        %v1583 = vld [vmem:[%s3 + $0x210] sm:$0xff]
        %v1584 = vld [vmem:[%s3 + $0x218] sm:$0xff]
        %v1585 = vld [vmem:[%s3 + $0x220] sm:$0xff]
        %v1586 = vld [vmem:[%s3 + $0x228] sm:$0xff]
        %v1587 = vld [vmem:[%s3 + $0x230] sm:$0xff]
        %v1588 = vld [vmem:[%s3 + $0x238] sm:$0xff]
        %v1589 = vld [vmem:[%s3 + $0x240] sm:$0xff]
        %v1590 = vld [vmem:[%s3 + $0x248] sm:$0xff]
        %v1591 = vld [vmem:[%s3 + $0x250] sm:$0xff]
        %v1592 = vld [vmem:[%s3 + $0x258] sm:$0xff]
        %v1593 = vld [vmem:[%s3 + $0x260] sm:$0xff]
        %v1594 = vld [vmem:[%s3 + $0x268] sm:$0xff]
        %v1595 = vld [vmem:[%s3 + $0x270] sm:$0xff]
        %v1596 = vld [vmem:[%s3 + $0x278] sm:$0xff]
        %v1597 = vld [vmem:[%s3 + $0x280] sm:$0xff]
        %v1598 = vld [vmem:[%s3 + $0x288] sm:$0xff]
        %v1599 = vld [vmem:[%s3 + $0x290] sm:$0xff]
        %v1600 = vld [vmem:[%s3 + $0x298] sm:$0xff]
        %v1601 = vld [vmem:[%s3 + $0x2a0] sm:$0xff]
        %v1602 = vld [vmem:[%s3 + $0x2a8] sm:$0xff]
        %v1603 = vld [vmem:[%s3 + $0x2b0] sm:$0xff]
        %v1604 = vld [vmem:[%s3 + $0x2b8] sm:$0xff]
        %v1605 = vld [vmem:[%s3 + $0x2c0] sm:$0xff]
        %v1606 = vld [vmem:[%s3 + $0x2c8] sm:$0xff]
        %v1607 = vld [vmem:[%s3 + $0x2d0] sm:$0xff]
        %v1608 = vld [vmem:[%s3 + $0x2d8] sm:$0xff]
        %v1609 = vld [vmem:[%s3 + $0x2e0] sm:$0xff]
        %v1610 = vld [vmem:[%s3 + $0x2e8] sm:$0xff]
        %v1611 = vld [vmem:[%s3 + $0x2f0] sm:$0xff]
        %v1612 = vld [vmem:[%s3 + $0x2f8] sm:$0xff]
        %v1613 = vld [vmem:[%s3 + $0x300] sm:$0xff]
        %v1614 = vld [vmem:[%s3 + $0x308] sm:$0xff]
        %v1615 = vld [vmem:[%s3 + $0x310] sm:$0xff]
        %v1616 = vld [vmem:[%s3 + $0x318] sm:$0xff]
        %v1617 = vld [vmem:[%s3 + $0x320] sm:$0xff]
        %v1618 = vld [vmem:[%s3 + $0x328] sm:$0xff]
        %v1619 = vld [vmem:[%s3 + $0x330] sm:$0xff]
        %v1620 = vld [vmem:[%s3 + $0x338] sm:$0xff]
        %v1621 = vld [vmem:[%s3 + $0x340] sm:$0xff]
        %v1622 = vld [vmem:[%s3 + $0x348] sm:$0xff]
        %v1623 = vld [vmem:[%s3 + $0x350] sm:$0xff]
        %v1624 = vld [vmem:[%s3 + $0x358] sm:$0xff]
        %v1625 = vld [vmem:[%s3 + $0x360] sm:$0xff]
        %v1626 = vld [vmem:[%s3 + $0x368] sm:$0xff]
        %v1627 = vld [vmem:[%s3 + $0x370] sm:$0xff]
        %v1628 = vld [vmem:[%s3 + $0x378] sm:$0xff]
        %v1629 = vld [vmem:[%s3 + $0x380] sm:$0xff]
        %v1630 = vld [vmem:[%s3 + $0x388] sm:$0xff]
        %v1631 = vld [vmem:[%s3 + $0x390] sm:$0xff]
        %v1632 = vld [vmem:[%s3 + $0x398] sm:$0xff]
        %v1633 = vld [vmem:[%s3 + $0x3a0] sm:$0xff]
        %v1634 = vld [vmem:[%s3 + $0x3a8] sm:$0xff]
        %v1635 = vld [vmem:[%s3 + $0x3b0] sm:$0xff]
        %v1636 = vld [vmem:[%s3 + $0x3b8] sm:$0xff]
        %v1637 = vld [vmem:[%s3 + $0x3c0] sm:$0xff]
        %v1638 = vld [vmem:[%s3 + $0x3c8] sm:$0xff]
        %v1639 = vld [vmem:[%s3 + $0x3d0] sm:$0xff]
        %v1640 = vld [vmem:[%s3 + $0x3d8] sm:$0xff]
        %v1641 = vld [vmem:[%s3 + $0x3e0] sm:$0xff]
        %v1642 = vld [vmem:[%s3 + $0x3e8] sm:$0xff]
        %v1643 = vld [vmem:[%s3 + $0x3f0] sm:$0xff]
        %v1644 = vld [vmem:[%s3 + $0x3f8] sm:$0xff]
        %v1645 = vld [vmem:[%s3 + $0x400] sm:$0xff]
        %v1646 = vld [vmem:[%s3 + $0x408] sm:$0xff]
        %v1647 = vld [vmem:[%s3 + $0x410] sm:$0xff]
        %v1648 = vld [vmem:[%s3 + $0x418] sm:$0xff]
        %v1649 = vld [vmem:[%s3 + $0x420] sm:$0xff]
        %v1650 = vld [vmem:[%s3 + $0x428] sm:$0xff]
        %v1651 = vld [vmem:[%s3 + $0x430] sm:$0xff]
        %v1652 = vld [vmem:[%s3 + $0x438] sm:$0xff]
        %v1653 = vld [vmem:[%s3 + $0x440] sm:$0xff]
        %v1654 = vld [vmem:[%s3 + $0x448] sm:$0xff]
        %v1655 = vld [vmem:[%s3 + $0x450] sm:$0xff]
        %v1656 = vld [vmem:[%s3 + $0x458] sm:$0xff]
        %v1657 = vld [vmem:[%s3 + $0x460] sm:$0xff]
        %v1658 = vld [vmem:[%s3 + $0x468] sm:$0xff]
        %v1659 = vld [vmem:[%s3 + $0x470] sm:$0xff]
        %v1660 = vld [vmem:[%s3 + $0x478] sm:$0xff]
        %v1661 = vld [vmem:[%s3 + $0x480] sm:$0xff]
        %v1662 = vld [vmem:[%s3 + $0x488] sm:$0xff]
        %v1663 = vld [vmem:[%s3 + $0x490] sm:$0xff]
        %v1664 = vld [vmem:[%s3 + $0x498] sm:$0xff]
        %v1665 = vld [vmem:[%s3 + $0x4a0] sm:$0xff]
        %v1666 = vld [vmem:[%s3 + $0x4a8] sm:$0xff]
        %v1667 = vld [vmem:[%s3 + $0x4b0] sm:$0xff]
        %v1668 = vld [vmem:[%s3 + $0x4b8] sm:$0xff]
        %v1669 = vld [vmem:[%s3 + $0x4c0] sm:$0xff]
        %v1670 = vld [vmem:[%s3 + $0x4c8] sm:$0xff]
        %v1671 = vld [vmem:[%s3 + $0x4d0] sm:$0xff]
        %v1672 = vld [vmem:[%s3 + $0x4d8] sm:$0xff]
        %v1673 = vld [vmem:[%s3 + $0x4e0] sm:$0xff]
        %v1674 = vld [vmem:[%s3 + $0x4e8] sm:$0xff]
        %v1675 = vld [vmem:[%s3 + $0x4f0] sm:$0xff]
        %v1676 = vld [vmem:[%s3 + $0x4f8] sm:$0xff]
        %v1677 = vld [vmem:[%s3 + $0x500] sm:$0xff]
        %v1678 = vld [vmem:[%s3 + $0x508] sm:$0xff]
        %v1679 = vld [vmem:[%s3 + $0x510] sm:$0xff]
        %v1680 = vld [vmem:[%s3 + $0x518] sm:$0xff]
        %v1681 = vld [vmem:[%s3 + $0x520] sm:$0xff]
        %v1682 = vld [vmem:[%s3 + $0x528] sm:$0xff]
        %v1683 = vld [vmem:[%s3 + $0x530] sm:$0xff]
        %v1684 = vld [vmem:[%s3 + $0x538] sm:$0xff]
        %v1685 = vld [vmem:[%s3 + $0x540] sm:$0xff]
        %v1686 = vld [vmem:[%s3 + $0x548] sm:$0xff]
        %v1687 = vld [vmem:[%s3 + $0x550] sm:$0xff]
        %v1688 = vld [vmem:[%s3 + $0x558] sm:$0xff]
        %v1689 = vld [vmem:[%s3 + $0x560] sm:$0xff]
        %v1690 = vld [vmem:[%s3 + $0x568] sm:$0xff]
        %v1691 = vld [vmem:[%s3 + $0x570] sm:$0xff]
        %v1692 = vld [vmem:[%s3 + $0x578] sm:$0xff]
        %v1693 = vld [vmem:[%s3 + $0x580] sm:$0xff]
        %v1694 = vld [vmem:[%s3 + $0x588] sm:$0xff]
        %v1695 = vld [vmem:[%s3 + $0x590] sm:$0xff]
        %v1696 = vld [vmem:[%s3 + $0x598] sm:$0xff]
        %v1697 = vld [vmem:[%s3 + $0x5a0] sm:$0xff]
        %v1698 = vld [vmem:[%s3 + $0x5a8] sm:$0xff]
        %v1699 = vld [vmem:[%s3 + $0x5b0] sm:$0xff]
        %v1700 = vld [vmem:[%s3 + $0x5b8] sm:$0xff]
        %v1701 = vld [vmem:[%s3 + $0x5c0] sm:$0xff]
        %v1702 = vld [vmem:[%s3 + $0x5c8] sm:$0xff]
        %v1703 = vld [vmem:[%s3 + $0x5d0] sm:$0xff]
        %v1704 = vld [vmem:[%s3 + $0x5d8] sm:$0xff]
        %v1705 = vld [vmem:[%s3 + $0x5e0] sm:$0xff]
        %v1706 = vld [vmem:[%s3 + $0x5e8] sm:$0xff]
        %v1707 = vld [vmem:[%s3 + $0x5f0] sm:$0xff]
        %v1708 = vld [vmem:[%s3 + $0x5f8] sm:$0xff]
        %v1709 = vld [vmem:[%s3 + $0x600] sm:$0xff]
        %v1710 = vld [vmem:[%s3 + $0x608] sm:$0xff]
        %v1711 = vld [vmem:[%s3 + $0x610] sm:$0xff]
        %v1712 = vld [vmem:[%s3 + $0x618] sm:$0xff]
        %v1713 = vld [vmem:[%s3 + $0x620] sm:$0xff]
        %v1714 = vld [vmem:[%s3 + $0x628] sm:$0xff]
        %v1715 = vld [vmem:[%s3 + $0x630] sm:$0xff]
        %v1716 = vld [vmem:[%s3 + $0x638] sm:$0xff]
        %v1717 = vld [vmem:[%s3 + $0x640] sm:$0xff]
        %v1718 = vld [vmem:[%s3 + $0x648] sm:$0xff]
        %v1719 = vld [vmem:[%s3 + $0x650] sm:$0xff]
        %v1720 = vld [vmem:[%s3 + $0x658] sm:$0xff]
        %v1721 = vld [vmem:[%s3 + $0x660] sm:$0xff]
        %v1722 = vld [vmem:[%s3 + $0x668] sm:$0xff]
        %v1723 = vld [vmem:[%s3 + $0x670] sm:$0xff]
        %v1724 = vld [vmem:[%s3 + $0x678] sm:$0xff]
        %v1725 = vld [vmem:[%s3 + $0x680] sm:$0xff]
        %v1726 = vld [vmem:[%s3 + $0x688] sm:$0xff]
        %v1727 = vld [vmem:[%s3 + $0x690] sm:$0xff]
        %v1728 = vld [vmem:[%s3 + $0x698] sm:$0xff]
        %v1729 = vld [vmem:[%s3 + $0x6a0] sm:$0xff]
        %v1730 = vld [vmem:[%s3 + $0x6a8] sm:$0xff]
        %v1731 = vld [vmem:[%s3 + $0x6b0] sm:$0xff]
        %v1732 = vld [vmem:[%s3 + $0x6b8] sm:$0xff]
        %v1733 = vld [vmem:[%s3 + $0x6c0] sm:$0xff]
        %v1734 = vld [vmem:[%s3 + $0x6c8] sm:$0xff]
        %v1735 = vld [vmem:[%s3 + $0x6d0] sm:$0xff]
        %v1736 = vld [vmem:[%s3 + $0x6d8] sm:$0xff]
        %v1737 = vld [vmem:[%s3 + $0x6e0] sm:$0xff]
        %v1738 = vld [vmem:[%s3 + $0x6e8] sm:$0xff]
        %v1739 = vld [vmem:[%s3 + $0x6f0] sm:$0xff]
        %v1740 = vld [vmem:[%s3 + $0x6f8] sm:$0xff]
        %v1741 = vld [vmem:[%s3 + $0x700] sm:$0xff]
        %v1742 = vld [vmem:[%s3 + $0x708] sm:$0xff]
        %v1743 = vld [vmem:[%s3 + $0x710] sm:$0xff]
        %v1744 = vld [vmem:[%s3 + $0x718] sm:$0xff]
        %v1745 = vld [vmem:[%s3 + $0x720] sm:$0xff]
        %v1746 = vld [vmem:[%s3 + $0x728] sm:$0xff]
        %v1747 = vld [vmem:[%s3 + $0x730] sm:$0xff]
        %v1748 = vld [vmem:[%s3 + $0x738] sm:$0xff]
        %v1749 = vld [vmem:[%s3 + $0x740] sm:$0xff]
        %v1750 = vld [vmem:[%s3 + $0x748] sm:$0xff]
        %v1751 = vld [vmem:[%s3 + $0x750] sm:$0xff]
        %v1752 = vld [vmem:[%s3 + $0x758] sm:$0xff]
        %v1753 = vld [vmem:[%s3 + $0x760] sm:$0xff]
        %v1754 = vld [vmem:[%s3 + $0x768] sm:$0xff]
        %v1755 = vld [vmem:[%s3 + $0x770] sm:$0xff]
        %v1756 = vld [vmem:[%s3 + $0x778] sm:$0xff]
        %v1757 = vld [vmem:[%s3 + $0x780] sm:$0xff]
        %v1758 = vld [vmem:[%s3 + $0x788] sm:$0xff]
        %v1759 = vld [vmem:[%s3 + $0x790] sm:$0xff]
        %v1760 = vld [vmem:[%s3 + $0x798] sm:$0xff]
        %v1761 = vld [vmem:[%s3 + $0x7a0] sm:$0xff]
        %v1762 = vld [vmem:[%s3 + $0x7a8] sm:$0xff]
        %v1763 = vld [vmem:[%s3 + $0x7b0] sm:$0xff]
        %v1764 = vld [vmem:[%s3 + $0x7b8] sm:$0xff]
        %v1765 = vld [vmem:[%s3 + $0x7c0] sm:$0xff]
        %v1766 = vld [vmem:[%s3 + $0x7c8] sm:$0xff]
        %v1767 = vld [vmem:[%s3 + $0x7d0] sm:$0xff]
        %v1768 = vld [vmem:[%s3 + $0x7d8] sm:$0xff]
        %v1769 = vld [vmem:[%s3 + $0x7e0] sm:$0xff]
        %v1770 = vld [vmem:[%s3 + $0x7e8] sm:$0xff]
        %v1771 = vld [vmem:[%s3 + $0x7f0] sm:$0xff]
        %v1772 = vld [vmem:[%s3 + $0x7f8] sm:$0xff]
        %v1773 = vld [vmem:[%s3 + $0x800] sm:$0xff]
        %v1774 = vld [vmem:[%s3 + $0x808] sm:$0xff]
        %v1775 = vld [vmem:[%s3 + $0x810] sm:$0xff]
        %v1776 = vld [vmem:[%s3 + $0x818] sm:$0xff]
        %v1777 = vld [vmem:[%s3 + $0x820] sm:$0xff]
        %v1778 = vld [vmem:[%s3 + $0x828] sm:$0xff]
        %v1779 = vld [vmem:[%s3 + $0x830] sm:$0xff]
        %v1780 = vld [vmem:[%s3 + $0x838] sm:$0xff]
        %v1781 = vld [vmem:[%s3 + $0x840] sm:$0xff]
        %v1782 = vld [vmem:[%s3 + $0x848] sm:$0xff]
        %v1783 = vld [vmem:[%s3 + $0x850] sm:$0xff]
        %v1784 = vld [vmem:[%s3 + $0x858] sm:$0xff]
        %v1785 = vld [vmem:[%s3 + $0x860] sm:$0xff]
        %v1786 = vld [vmem:[%s3 + $0x868] sm:$0xff]
        %v1787 = vld [vmem:[%s3 + $0x870] sm:$0xff]
        %v1788 = vld [vmem:[%s3 + $0x878] sm:$0xff]
        %v1789 = vld [vmem:[%s3 + $0x880] sm:$0xff]
        %v1790 = vld [vmem:[%s3 + $0x888] sm:$0xff]
        %v1791 = vld [vmem:[%s3 + $0x890] sm:$0xff]
        %v1792 = vld [vmem:[%s3 + $0x898] sm:$0xff]
        %v1793 = vld [vmem:[%s3 + $0x8a0] sm:$0xff]
        %v1794 = vld [vmem:[%s3 + $0x8a8] sm:$0xff]
        %v1795 = vld [vmem:[%s3 + $0x8b0] sm:$0xff]
        %v1796 = vld [vmem:[%s3 + $0x8b8] sm:$0xff]
        %v1797 = vld [vmem:[%s3 + $0x8c0] sm:$0xff]
        %v1798 = vld [vmem:[%s3 + $0x8c8] sm:$0xff]
        %v1799 = vld [vmem:[%s3 + $0x8d0] sm:$0xff]
        %v1800 = vld [vmem:[%s3 + $0x8d8] sm:$0xff]
        %v1801 = vld [vmem:[%s3 + $0x8e0] sm:$0xff]
        %v1802 = vld [vmem:[%s3 + $0x8e8] sm:$0xff]
        %v1803 = vld [vmem:[%s3 + $0x8f0] sm:$0xff]
        %v1804 = vld [vmem:[%s3 + $0x8f8] sm:$0xff]
        %v1805 = vld [vmem:[%s3 + $0x900] sm:$0xff]
        %v1806 = vld [vmem:[%s3 + $0x908] sm:$0xff]
        %v1807 = vld [vmem:[%s3 + $0x910] sm:$0xff]
        %v1808 = vld [vmem:[%s3 + $0x918] sm:$0xff]
        %v1809 = vld [vmem:[%s3 + $0x920] sm:$0xff]
        %v1810 = vld [vmem:[%s3 + $0x928] sm:$0xff]
        %v1811 = vld [vmem:[%s3 + $0x930] sm:$0xff]
        %v1812 = vld [vmem:[%s3 + $0x938] sm:$0xff]
        %v1813 = vld [vmem:[%s3 + $0x940] sm:$0xff]
        %v1814 = vld [vmem:[%s3 + $0x948] sm:$0xff]
        %v1815 = vld [vmem:[%s3 + $0x950] sm:$0xff]
        %v1816 = vld [vmem:[%s3 + $0x958] sm:$0xff]
        %v1817 = vld [vmem:[%s3 + $0x960] sm:$0xff]
        %v1818 = vld [vmem:[%s3 + $0x968] sm:$0xff]
        %v1819 = vld [vmem:[%s3 + $0x970] sm:$0xff]
        %v1820 = vld [vmem:[%s3 + $0x978] sm:$0xff]
        %v1821 = vld [vmem:[%s3 + $0x980] sm:$0xff]
        %v1822 = vld [vmem:[%s3 + $0x988] sm:$0xff]
        %v1823 = vld [vmem:[%s3 + $0x990] sm:$0xff]
        %v1824 = vld [vmem:[%s3 + $0x998] sm:$0xff]
        %v1825 = vld [vmem:[%s3 + $0x9a0] sm:$0xff]
        %v1826 = vld [vmem:[%s3 + $0x9a8] sm:$0xff]
        %v1827 = vld [vmem:[%s3 + $0x9b0] sm:$0xff]
        %v1828 = vld [vmem:[%s3 + $0x9b8] sm:$0xff]
        %v1829 = vld [vmem:[%s3 + $0x9c0] sm:$0xff]
        %v1830 = vld [vmem:[%s3 + $0x9c8] sm:$0xff]
        %v1831 = vld [vmem:[%s3 + $0x9d0] sm:$0xff]
        %v1832 = vld [vmem:[%s3 + $0x9d8] sm:$0xff]
        %v1833 = vld [vmem:[%s3 + $0x9e0] sm:$0xff]
        %v1834 = vld [vmem:[%s3 + $0x9e8] sm:$0xff]
        %v1835 = vld [vmem:[%s3 + $0x9f0] sm:$0xff]
        %v1836 = vld [vmem:[%s3 + $0x9f8] sm:$0xff]
        %v1837 = vpack.c.bf16 %v1489, 0.0
        %v1838 = vpack.c.bf16 %v1490, 0.0
        %v1839 = vpack.c.bf16 %v1503, 0.0
        %v1840 = vpack.c.bf16 %v1504, 0.0
        %v1841 = vpack.c.bf16 %v1491, %v1489
        %v1842 = vpack.c.bf16 %v1492, %v1490
        %v1843 = vpack.c.bf16 %v1505, %v1503
        %v1844 = vpack.c.bf16 %v1506, %v1504
        %v1845 = vpack.c.bf16 %v1493, %v1491
        %v1846 = vpack.c.bf16 %v1494, %v1492
        %v1847 = vpack.c.bf16 %v1507, %v1505
        %v1848 = vpack.c.bf16 %v1508, %v1506
        %v1849 = vpack.c.bf16 %v1495, %v1493
        %v1850 = vpack.c.bf16 %v1496, %v1494
        %v1851 = vpack.c.bf16 %v1509, %v1507
        %v1852 = vpack.c.bf16 %v1510, %v1508
        %v1853 = vpack.c.bf16 %v1497, %v1495
        %v1854 = vpack.c.bf16 %v1498, %v1496
        %v1855 = vpack.c.bf16 %v1511, %v1509
        %v1856 = vpack.c.bf16 %v1512, %v1510
        %v1857 = vpack.c.bf16 %v1499, %v1497
        %v1858 = vpack.c.bf16 %v1500, %v1498
        %v1859 = vpack.c.bf16 %v1513, %v1511
        %v1860 = vpack.c.bf16 %v1514, %v1512
        %v1861 = vpack.c.bf16 %v1501, %v1499
        %v1862 = vpack.c.bf16 %v1502, %v1500
        %v1863 = vpack.c.bf16 %v1499, %v1499
        %v1864 = vpack.c.bf16 %v1500, %v1500
        %v1865 = vpack.c.bf16 %v1513, %v1513
        %v1866 = vpack.c.bf16 %v1514, %v1514
        %v1867 = vpack.c.bf16 %v1501, %v1501
        %v1868 = vpack.c.bf16 %v1502, %v1502
        %v1869 = vpack.c.bf16 %v1515, %v1515
        %v1870 = vpack.c.bf16 %v1516, %v1516
        %v1871 = vpack.c.bf16 0.0, 0.0
        %v1873 = vlaneseq
        %v1874 = vshrl.u32 %v1873, 7
        %v1875 = vsub.s32 0, %v1874
        %v1876 = vrot.slane %v279, %v1875
        %v1877 = vlaneseq
        %v1878 = vshrl.u32 %v1877, 7
        %v1879 = vsub.s32 1, %v1878
        %v1880 = vrot.slane %v279, %v1879
        %v1881 = vlaneseq
        %v1882 = vshrl.u32 %v1881, 7
        %v1883 = vsub.s32 2, %v1882
        %v1884 = vrot.slane %v279, %v1883
        %v1885 = vlaneseq
        %v1886 = vshrl.u32 %v1885, 7
        %v1887 = vsub.s32 3, %v1886
        %v1888 = vrot.slane %v279, %v1887
        %v2213 = vunpack.c.l.b16 %v1517
        %v2214 = vunpack.c.h.b16 %v1517
        %v2215 = vunpack.c.l.b16 %v1518
        %v2216 = vunpack.c.h.b16 %v1518
        %v2217 = vunpack.c.l.b16 %v1519
        %v2218 = vunpack.c.h.b16 %v1519
        %v2219 = vunpack.c.l.b16 %v1520
        %v2220 = vunpack.c.h.b16 %v1520
        %v2221 = vunpack.c.l.b16 %v1521
        %v2222 = vunpack.c.h.b16 %v1521
        %v2223 = vunpack.c.l.b16 %v1522
        %v2224 = vunpack.c.h.b16 %v1522
        %v2225 = vunpack.c.l.b16 %v1523
        %v2226 = vunpack.c.h.b16 %v1523
        %v2227 = vunpack.c.l.b16 %v1524
        %v2228 = vunpack.c.h.b16 %v1524
        %v2229 = vunpack.c.l.b16 %v1525
        %v2230 = vunpack.c.h.b16 %v1525
        %v2231 = vunpack.c.l.b16 %v1526
        %v2232 = vunpack.c.h.b16 %v1526
        %v2233 = vunpack.c.l.b16 %v1527
        %v2234 = vunpack.c.h.b16 %v1527
        %v2235 = vunpack.c.l.b16 %v1528
        %v2236 = vunpack.c.h.b16 %v1528
        %v2237 = vunpack.c.l.b16 %v1529
        %v2238 = vunpack.c.h.b16 %v1529
        %v2239 = vunpack.c.l.b16 %v1530
        %v2240 = vunpack.c.h.b16 %v1530
        %v2241 = vunpack.c.l.b16 %v1531
        %v2242 = vunpack.c.h.b16 %v1531
        %v2243 = vunpack.c.l.b16 %v1532
        %v2244 = vunpack.c.h.b16 %v1532
        %v2245 = vunpack.c.l.b16 %v1533
        %v2246 = vunpack.c.h.b16 %v1533
        %v2247 = vunpack.c.l.b16 %v1534
        %v2248 = vunpack.c.h.b16 %v1534
        %v2249 = vunpack.c.l.b16 %v1535
        %v2250 = vunpack.c.h.b16 %v1535
        %v2251 = vunpack.c.l.b16 %v1536
        %v2252 = vunpack.c.h.b16 %v1536
        %v2253 = vunpack.c.l.b16 %v1537
        %v2254 = vunpack.c.h.b16 %v1537
        %v2255 = vunpack.c.l.b16 %v1538
        %v2256 = vunpack.c.h.b16 %v1538
        %v2257 = vunpack.c.l.b16 %v1539
        %v2258 = vunpack.c.h.b16 %v1539
        %v2259 = vunpack.c.l.b16 %v1540
        %v2260 = vunpack.c.h.b16 %v1540
        %v2261 = vunpack.c.l.b16 %v1541
        %v2262 = vunpack.c.h.b16 %v1541
        %v2263 = vunpack.c.l.b16 %v1542
        %v2264 = vunpack.c.h.b16 %v1542
        %v2265 = vunpack.c.l.b16 %v1543
        %v2266 = vunpack.c.h.b16 %v1543
        %v2267 = vunpack.c.l.b16 %v1544
        %v2268 = vunpack.c.h.b16 %v1544
        %v2269 = vunpack.c.l.b16 %v1545
        %v2270 = vunpack.c.h.b16 %v1545
        %v2271 = vunpack.c.l.b16 %v1546
        %v2272 = vunpack.c.h.b16 %v1546
        %v2273 = vunpack.c.l.b16 %v1547
        %v2274 = vunpack.c.h.b16 %v1547
        %v2275 = vunpack.c.l.b16 %v1548
        %v2276 = vunpack.c.h.b16 %v1548
        %v2277 = vunpack.c.l.b16 %v1549
        %v2278 = vunpack.c.h.b16 %v1549
        %v2279 = vunpack.c.l.b16 %v1550
        %v2280 = vunpack.c.h.b16 %v1550
        %v2281 = vunpack.c.l.b16 %v1551
        %v2282 = vunpack.c.h.b16 %v1551
        %v2283 = vunpack.c.l.b16 %v1552
        %v2284 = vunpack.c.h.b16 %v1552
        %v2285 = vunpack.c.l.b16 %v1553
        %v2286 = vunpack.c.h.b16 %v1553
        %v2287 = vunpack.c.l.b16 %v1554
        %v2288 = vunpack.c.h.b16 %v1554
        %v2289 = vunpack.c.l.b16 %v1555
        %v2290 = vunpack.c.h.b16 %v1555
        %v2291 = vunpack.c.l.b16 %v1556
        %v2292 = vunpack.c.h.b16 %v1556
        %v2293 = vunpack.c.l.b16 %v1557
        %v2294 = vunpack.c.h.b16 %v1557
        %v2295 = vunpack.c.l.b16 %v1558
        %v2296 = vunpack.c.h.b16 %v1558
        %v2297 = vunpack.c.l.b16 %v1559
        %v2298 = vunpack.c.h.b16 %v1559
        %v2299 = vunpack.c.l.b16 %v1560
        %v2300 = vunpack.c.h.b16 %v1560
        %v2301 = vunpack.c.l.b16 %v1561
        %v2302 = vunpack.c.h.b16 %v1561
        %v2303 = vunpack.c.l.b16 %v1562
        %v2304 = vunpack.c.h.b16 %v1562
        %v2305 = vunpack.c.l.b16 %v1563
        %v2306 = vunpack.c.h.b16 %v1563
        %v2307 = vunpack.c.l.b16 %v1564
        %v2308 = vunpack.c.h.b16 %v1564
        %v2309 = vunpack.c.l.b16 %v1565
        %v2310 = vunpack.c.h.b16 %v1565
        %v2311 = vunpack.c.l.b16 %v1566
        %v2312 = vunpack.c.h.b16 %v1566
        %v2313 = vunpack.c.l.b16 %v1567
        %v2314 = vunpack.c.h.b16 %v1567
        %v2315 = vunpack.c.l.b16 %v1568
        %v2316 = vunpack.c.h.b16 %v1568
        %v2317 = vunpack.c.l.b16 %v1569
        %v2318 = vunpack.c.h.b16 %v1569
        %v2319 = vunpack.c.l.b16 %v1570
        %v2320 = vunpack.c.h.b16 %v1570
        %v2321 = vunpack.c.l.b16 %v1571
        %v2322 = vunpack.c.h.b16 %v1571
        %v2323 = vunpack.c.l.b16 %v1572
        %v2324 = vunpack.c.h.b16 %v1572
        %v2325 = vunpack.c.l.b16 %v1573
        %v2326 = vunpack.c.h.b16 %v1573
        %v2327 = vunpack.c.l.b16 %v1574
        %v2328 = vunpack.c.h.b16 %v1574
        %v2329 = vunpack.c.l.b16 %v1575
        %v2330 = vunpack.c.h.b16 %v1575
        %v2331 = vunpack.c.l.b16 %v1576
        %v2332 = vunpack.c.h.b16 %v1576
        %v2333 = vunpack.c.l.b16 %v1577
        %v2334 = vunpack.c.h.b16 %v1577
        %v2335 = vunpack.c.l.b16 %v1578
        %v2336 = vunpack.c.h.b16 %v1578
        %v2337 = vunpack.c.l.b16 %v1579
        %v2338 = vunpack.c.h.b16 %v1579
        %v2339 = vunpack.c.l.b16 %v1580
        %v2340 = vunpack.c.h.b16 %v1580
        %v2341 = vunpack.c.l.b16 %v1581
        %v2342 = vunpack.c.h.b16 %v1581
        %v2343 = vunpack.c.l.b16 %v1582
        %v2344 = vunpack.c.h.b16 %v1582
        %v2345 = vunpack.c.l.b16 %v1583
        %v2346 = vunpack.c.h.b16 %v1583
        %v2347 = vunpack.c.l.b16 %v1584
        %v2348 = vunpack.c.h.b16 %v1584
        %v2349 = vunpack.c.l.b16 %v1585
        %v2350 = vunpack.c.h.b16 %v1585
        %v2351 = vunpack.c.l.b16 %v1586
        %v2352 = vunpack.c.h.b16 %v1586
        %v2353 = vunpack.c.l.b16 %v1587
        %v2354 = vunpack.c.h.b16 %v1587
        %v2355 = vunpack.c.l.b16 %v1588
        %v2356 = vunpack.c.h.b16 %v1588
        %v2357 = vunpack.c.l.b16 %v1589
        %v2358 = vunpack.c.h.b16 %v1589
        %v2359 = vunpack.c.l.b16 %v1590
        %v2360 = vunpack.c.h.b16 %v1590
        %v2361 = vunpack.c.l.b16 %v1591
        %v2362 = vunpack.c.h.b16 %v1591
        %v2363 = vunpack.c.l.b16 %v1592
        %v2364 = vunpack.c.h.b16 %v1592
        %v2365 = vunpack.c.l.b16 %v1593
        %v2366 = vunpack.c.h.b16 %v1593
        %v2367 = vunpack.c.l.b16 %v1594
        %v2368 = vunpack.c.h.b16 %v1594
        %v2369 = vunpack.c.l.b16 %v1595
        %v2370 = vunpack.c.h.b16 %v1595
        %v2371 = vunpack.c.l.b16 %v1596
        %v2372 = vunpack.c.h.b16 %v1596
        %v2373 = vunpack.c.l.b16 %v1597
        %v2374 = vunpack.c.h.b16 %v1597
        %v2375 = vunpack.c.l.b16 %v1598
        %v2376 = vunpack.c.h.b16 %v1598
        %v2377 = vunpack.c.l.b16 %v1599
        %v2378 = vunpack.c.h.b16 %v1599
        %v2379 = vunpack.c.l.b16 %v1600
        %v2380 = vunpack.c.h.b16 %v1600
        %v2381 = vunpack.c.l.b16 %v1601
        %v2382 = vunpack.c.h.b16 %v1601
        %v2383 = vunpack.c.l.b16 %v1602
        %v2384 = vunpack.c.h.b16 %v1602
        %v2385 = vunpack.c.l.b16 %v1603
        %v2386 = vunpack.c.h.b16 %v1603
        %v2387 = vunpack.c.l.b16 %v1604
        %v2388 = vunpack.c.h.b16 %v1604
        %v2389 = vunpack.c.l.b16 %v1605
        %v2390 = vunpack.c.h.b16 %v1605
        %v2391 = vunpack.c.l.b16 %v1606
        %v2392 = vunpack.c.h.b16 %v1606
        %v2393 = vunpack.c.l.b16 %v1607
        %v2394 = vunpack.c.h.b16 %v1607
        %v2395 = vunpack.c.l.b16 %v1608
        %v2396 = vunpack.c.h.b16 %v1608
        %v2397 = vunpack.c.l.b16 %v1609
        %v2398 = vunpack.c.h.b16 %v1609
        %v2399 = vunpack.c.l.b16 %v1610
        %v2400 = vunpack.c.h.b16 %v1610
        %v2401 = vunpack.c.l.b16 %v1611
        %v2402 = vunpack.c.h.b16 %v1611
        %v2403 = vunpack.c.l.b16 %v1612
        %v2404 = vunpack.c.h.b16 %v1612
        %v2405 = vunpack.c.l.b16 %v1613
        %v2406 = vunpack.c.h.b16 %v1613
        %v2407 = vunpack.c.l.b16 %v1614
        %v2408 = vunpack.c.h.b16 %v1614
        %v2409 = vunpack.c.l.b16 %v1615
        %v2410 = vunpack.c.h.b16 %v1615
        %v2411 = vunpack.c.l.b16 %v1616
        %v2412 = vunpack.c.h.b16 %v1616
        %v2413 = vunpack.c.l.b16 %v1617
        %v2414 = vunpack.c.h.b16 %v1617
        %v2415 = vunpack.c.l.b16 %v1618
        %v2416 = vunpack.c.h.b16 %v1618
        %v2417 = vunpack.c.l.b16 %v1619
        %v2418 = vunpack.c.h.b16 %v1619
        %v2419 = vunpack.c.l.b16 %v1620
        %v2420 = vunpack.c.h.b16 %v1620
        %v2421 = vunpack.c.l.b16 %v1621
        %v2422 = vunpack.c.h.b16 %v1621
        %v2423 = vunpack.c.l.b16 %v1622
        %v2424 = vunpack.c.h.b16 %v1622
        %v2425 = vunpack.c.l.b16 %v1623
        %v2426 = vunpack.c.h.b16 %v1623
        %v2427 = vunpack.c.l.b16 %v1624
        %v2428 = vunpack.c.h.b16 %v1624
        %v2429 = vunpack.c.l.b16 %v1625
        %v2430 = vunpack.c.h.b16 %v1625
        %v2431 = vunpack.c.l.b16 %v1626
        %v2432 = vunpack.c.h.b16 %v1626
        %v2433 = vunpack.c.l.b16 %v1627
        %v2434 = vunpack.c.h.b16 %v1627
        %v2435 = vunpack.c.l.b16 %v1628
        %v2436 = vunpack.c.h.b16 %v1628
        %v2437 = vunpack.c.l.b16 %v1629
        %v2438 = vunpack.c.h.b16 %v1629
        %v2439 = vunpack.c.l.b16 %v1630
        %v2440 = vunpack.c.h.b16 %v1630
        %v2441 = vunpack.c.l.b16 %v1631
        %v2442 = vunpack.c.h.b16 %v1631
        %v2443 = vunpack.c.l.b16 %v1632
        %v2444 = vunpack.c.h.b16 %v1632
        %v2445 = vunpack.c.l.b16 %v1633
        %v2446 = vunpack.c.h.b16 %v1633
        %v2447 = vunpack.c.l.b16 %v1634
        %v2448 = vunpack.c.h.b16 %v1634
        %v2449 = vunpack.c.l.b16 %v1635
        %v2450 = vunpack.c.h.b16 %v1635
        %v2451 = vunpack.c.l.b16 %v1636
        %v2452 = vunpack.c.h.b16 %v1636
        %v2453 = vunpack.c.l.b16 %v1637
        %v2454 = vunpack.c.h.b16 %v1637
        %v2455 = vunpack.c.l.b16 %v1638
        %v2456 = vunpack.c.h.b16 %v1638
        %v2457 = vunpack.c.l.b16 %v1639
        %v2458 = vunpack.c.h.b16 %v1639
        %v2459 = vunpack.c.l.b16 %v1640
        %v2460 = vunpack.c.h.b16 %v1640
        %v2461 = vunpack.c.l.b16 %v1641
        %v2462 = vunpack.c.h.b16 %v1641
        %v2463 = vunpack.c.l.b16 %v1642
        %v2464 = vunpack.c.h.b16 %v1642
        %v2465 = vunpack.c.l.b16 %v1643
        %v2466 = vunpack.c.h.b16 %v1643
        %v2467 = vunpack.c.l.b16 %v1644
        %v2468 = vunpack.c.h.b16 %v1644
        %v2469 = vunpack.c.l.b16 %v1645
        %v2470 = vunpack.c.h.b16 %v1645
        %v2471 = vunpack.c.l.b16 %v1646
        %v2472 = vunpack.c.h.b16 %v1646
        %v2473 = vunpack.c.l.b16 %v1647
        %v2474 = vunpack.c.h.b16 %v1647
        %v2475 = vunpack.c.l.b16 %v1648
        %v2476 = vunpack.c.h.b16 %v1648
        %v2477 = vunpack.c.l.b16 %v1649
        %v2478 = vunpack.c.h.b16 %v1649
        %v2479 = vunpack.c.l.b16 %v1650
        %v2480 = vunpack.c.h.b16 %v1650
        %v2481 = vunpack.c.l.b16 %v1651
        %v2482 = vunpack.c.h.b16 %v1651
        %v2483 = vunpack.c.l.b16 %v1652
        %v2484 = vunpack.c.h.b16 %v1652
        %v2485 = vunpack.c.l.b16 %v1653
        %v2486 = vunpack.c.h.b16 %v1653
        %v2487 = vunpack.c.l.b16 %v1654
        %v2488 = vunpack.c.h.b16 %v1654
        %v2489 = vunpack.c.l.b16 %v1655
        %v2490 = vunpack.c.h.b16 %v1655
        %v2491 = vunpack.c.l.b16 %v1656
        %v2492 = vunpack.c.h.b16 %v1656
        %v2493 = vunpack.c.l.b16 %v1657
        %v2494 = vunpack.c.h.b16 %v1657
        %v2495 = vunpack.c.l.b16 %v1658
        %v2496 = vunpack.c.h.b16 %v1658
        %v2497 = vunpack.c.l.b16 %v1659
        %v2498 = vunpack.c.h.b16 %v1659
        %v2499 = vunpack.c.l.b16 %v1660
        %v2500 = vunpack.c.h.b16 %v1660
        %v2501 = vunpack.c.l.b16 %v1661
        %v2502 = vunpack.c.h.b16 %v1661
        %v2503 = vunpack.c.l.b16 %v1662
        %v2504 = vunpack.c.h.b16 %v1662
        %v2505 = vunpack.c.l.b16 %v1663
        %v2506 = vunpack.c.h.b16 %v1663
        %v2507 = vunpack.c.l.b16 %v1664
        %v2508 = vunpack.c.h.b16 %v1664
        %v2509 = vunpack.c.l.b16 %v1665
        %v2510 = vunpack.c.h.b16 %v1665
        %v2511 = vunpack.c.l.b16 %v1666
        %v2512 = vunpack.c.h.b16 %v1666
        %v2513 = vunpack.c.l.b16 %v1667
        %v2514 = vunpack.c.h.b16 %v1667
        %v2515 = vunpack.c.l.b16 %v1668
        %v2516 = vunpack.c.h.b16 %v1668
        %v2517 = vunpack.c.l.b16 %v1669
        %v2518 = vunpack.c.h.b16 %v1669
        %v2519 = vunpack.c.l.b16 %v1670
        %v2520 = vunpack.c.h.b16 %v1670
        %v2521 = vunpack.c.l.b16 %v1671
        %v2522 = vunpack.c.h.b16 %v1671
        %v2523 = vunpack.c.l.b16 %v1672
        %v2524 = vunpack.c.h.b16 %v1672
        %v2525 = vunpack.c.l.b16 %v1673
        %v2526 = vunpack.c.h.b16 %v1673
        %v2527 = vunpack.c.l.b16 %v1674
        %v2528 = vunpack.c.h.b16 %v1674
        %v2529 = vunpack.c.l.b16 %v1675
        %v2530 = vunpack.c.h.b16 %v1675
        %v2531 = vunpack.c.l.b16 %v1676
        %v2532 = vunpack.c.h.b16 %v1676
        %v2533 = vunpack.c.l.b16 %v1677
        %v2534 = vunpack.c.h.b16 %v1677
        %v2535 = vunpack.c.l.b16 %v1678
        %v2536 = vunpack.c.h.b16 %v1678
        %v2537 = vunpack.c.l.b16 %v1679
        %v2538 = vunpack.c.h.b16 %v1679
        %v2539 = vunpack.c.l.b16 %v1680
        %v2540 = vunpack.c.h.b16 %v1680
        %v2541 = vunpack.c.l.b16 %v1681
        %v2542 = vunpack.c.h.b16 %v1681
        %v2543 = vunpack.c.l.b16 %v1682
        %v2544 = vunpack.c.h.b16 %v1682
        %v2545 = vunpack.c.l.b16 %v1683
        %v2546 = vunpack.c.h.b16 %v1683
        %v2547 = vunpack.c.l.b16 %v1684
        %v2548 = vunpack.c.h.b16 %v1684
        %v2549 = vunpack.c.l.b16 %v1685
        %v2550 = vunpack.c.h.b16 %v1685
        %v2551 = vunpack.c.l.b16 %v1686
        %v2552 = vunpack.c.h.b16 %v1686
        %v2553 = vunpack.c.l.b16 %v1687
        %v2554 = vunpack.c.h.b16 %v1687
        %v2555 = vunpack.c.l.b16 %v1688
        %v2556 = vunpack.c.h.b16 %v1688
        %v2557 = vunpack.c.l.b16 %v1689
        %v2558 = vunpack.c.h.b16 %v1689
        %v2559 = vunpack.c.l.b16 %v1690
        %v2560 = vunpack.c.h.b16 %v1690
        %v2561 = vunpack.c.l.b16 %v1691
        %v2562 = vunpack.c.h.b16 %v1691
        %v2563 = vunpack.c.l.b16 %v1692
        %v2564 = vunpack.c.h.b16 %v1692
        %v2565 = vunpack.c.l.b16 %v1693
        %v2566 = vunpack.c.h.b16 %v1693
        %v2567 = vunpack.c.l.b16 %v1694
        %v2568 = vunpack.c.h.b16 %v1694
        %v2569 = vunpack.c.l.b16 %v1695
        %v2570 = vunpack.c.h.b16 %v1695
        %v2571 = vunpack.c.l.b16 %v1696
        %v2572 = vunpack.c.h.b16 %v1696
        %v2573 = vunpack.c.l.b16 %v1697
        %v2574 = vunpack.c.h.b16 %v1697
        %v2575 = vunpack.c.l.b16 %v1698
        %v2576 = vunpack.c.h.b16 %v1698
        %v2577 = vunpack.c.l.b16 %v1699
        %v2578 = vunpack.c.h.b16 %v1699
        %v2579 = vunpack.c.l.b16 %v1700
        %v2580 = vunpack.c.h.b16 %v1700
        %v2581 = vunpack.c.l.b16 %v1701
        %v2582 = vunpack.c.h.b16 %v1701
        %v2583 = vunpack.c.l.b16 %v1702
        %v2584 = vunpack.c.h.b16 %v1702
        %v2585 = vunpack.c.l.b16 %v1703
        %v2586 = vunpack.c.h.b16 %v1703
        %v2587 = vunpack.c.l.b16 %v1704
        %v2588 = vunpack.c.h.b16 %v1704
        %v2589 = vunpack.c.l.b16 %v1705
        %v2590 = vunpack.c.h.b16 %v1705
        %v2591 = vunpack.c.l.b16 %v1706
        %v2592 = vunpack.c.h.b16 %v1706
        %v2593 = vunpack.c.l.b16 %v1707
        %v2594 = vunpack.c.h.b16 %v1707
        %v2595 = vunpack.c.l.b16 %v1708
        %v2596 = vunpack.c.h.b16 %v1708
        %v2597 = vunpack.c.l.b16 %v1709
        %v2598 = vunpack.c.h.b16 %v1709
        %v2599 = vunpack.c.l.b16 %v1710
        %v2600 = vunpack.c.h.b16 %v1710
        %v2601 = vunpack.c.l.b16 %v1711
        %v2602 = vunpack.c.h.b16 %v1711
        %v2603 = vunpack.c.l.b16 %v1712
        %v2604 = vunpack.c.h.b16 %v1712
        %v2605 = vunpack.c.l.b16 %v1713
        %v2606 = vunpack.c.h.b16 %v1713
        %v2607 = vunpack.c.l.b16 %v1714
        %v2608 = vunpack.c.h.b16 %v1714
        %v2609 = vunpack.c.l.b16 %v1715
        %v2610 = vunpack.c.h.b16 %v1715
        %v2611 = vunpack.c.l.b16 %v1716
        %v2612 = vunpack.c.h.b16 %v1716
        %v2613 = vunpack.c.l.b16 %v1717
        %v2614 = vunpack.c.h.b16 %v1717
        %v2615 = vunpack.c.l.b16 %v1718
        %v2616 = vunpack.c.h.b16 %v1718
        %v2617 = vunpack.c.l.b16 %v1719
        %v2618 = vunpack.c.h.b16 %v1719
        %v2619 = vunpack.c.l.b16 %v1720
        %v2620 = vunpack.c.h.b16 %v1720
        %v2621 = vunpack.c.l.b16 %v1721
        %v2622 = vunpack.c.h.b16 %v1721
        %v2623 = vunpack.c.l.b16 %v1722
        %v2624 = vunpack.c.h.b16 %v1722
        %v2625 = vunpack.c.l.b16 %v1723
        %v2626 = vunpack.c.h.b16 %v1723
        %v2627 = vunpack.c.l.b16 %v1724
        %v2628 = vunpack.c.h.b16 %v1724
        %v2629 = vunpack.c.l.b16 %v1725
        %v2630 = vunpack.c.h.b16 %v1725
        %v2631 = vunpack.c.l.b16 %v1726
        %v2632 = vunpack.c.h.b16 %v1726
        %v2633 = vunpack.c.l.b16 %v1727
        %v2634 = vunpack.c.h.b16 %v1727
        %v2635 = vunpack.c.l.b16 %v1728
        %v2636 = vunpack.c.h.b16 %v1728
        %v2637 = vunpack.c.l.b16 %v1729
        %v2638 = vunpack.c.h.b16 %v1729
        %v2639 = vunpack.c.l.b16 %v1730
        %v2640 = vunpack.c.h.b16 %v1730
        %v2641 = vunpack.c.l.b16 %v1731
        %v2642 = vunpack.c.h.b16 %v1731
        %v2643 = vunpack.c.l.b16 %v1732
        %v2644 = vunpack.c.h.b16 %v1732
        %v2645 = vunpack.c.l.b16 %v1733
        %v2646 = vunpack.c.h.b16 %v1733
        %v2647 = vunpack.c.l.b16 %v1734
        %v2648 = vunpack.c.h.b16 %v1734
        %v2649 = vunpack.c.l.b16 %v1735
        %v2650 = vunpack.c.h.b16 %v1735
        %v2651 = vunpack.c.l.b16 %v1736
        %v2652 = vunpack.c.h.b16 %v1736
        %v2653 = vunpack.c.l.b16 %v1737
        %v2654 = vunpack.c.h.b16 %v1737
        %v2655 = vunpack.c.l.b16 %v1738
        %v2656 = vunpack.c.h.b16 %v1738
        %v2657 = vunpack.c.l.b16 %v1739
        %v2658 = vunpack.c.h.b16 %v1739
        %v2659 = vunpack.c.l.b16 %v1740
        %v2660 = vunpack.c.h.b16 %v1740
        %v2661 = vunpack.c.l.b16 %v1741
        %v2662 = vunpack.c.h.b16 %v1741
        %v2663 = vunpack.c.l.b16 %v1742
        %v2664 = vunpack.c.h.b16 %v1742
        %v2665 = vunpack.c.l.b16 %v1743
        %v2666 = vunpack.c.h.b16 %v1743
        %v2667 = vunpack.c.l.b16 %v1744
        %v2668 = vunpack.c.h.b16 %v1744
        %v2669 = vunpack.c.l.b16 %v1745
        %v2670 = vunpack.c.h.b16 %v1745
        %v2671 = vunpack.c.l.b16 %v1746
        %v2672 = vunpack.c.h.b16 %v1746
        %v2673 = vunpack.c.l.b16 %v1747
        %v2674 = vunpack.c.h.b16 %v1747
        %v2675 = vunpack.c.l.b16 %v1748
        %v2676 = vunpack.c.h.b16 %v1748
        %v2677 = vunpack.c.l.b16 %v1749
        %v2678 = vunpack.c.h.b16 %v1749
        %v2679 = vunpack.c.l.b16 %v1750
        %v2680 = vunpack.c.h.b16 %v1750
        %v2681 = vunpack.c.l.b16 %v1751
        %v2682 = vunpack.c.h.b16 %v1751
        %v2683 = vunpack.c.l.b16 %v1752
        %v2684 = vunpack.c.h.b16 %v1752
        %v2685 = vunpack.c.l.b16 %v1753
        %v2686 = vunpack.c.h.b16 %v1753
        %v2687 = vunpack.c.l.b16 %v1754
        %v2688 = vunpack.c.h.b16 %v1754
        %v2689 = vunpack.c.l.b16 %v1755
        %v2690 = vunpack.c.h.b16 %v1755
        %v2691 = vunpack.c.l.b16 %v1756
        %v2692 = vunpack.c.h.b16 %v1756
        %v2693 = vunpack.c.l.b16 %v1757
        %v2694 = vunpack.c.h.b16 %v1757
        %v2695 = vunpack.c.l.b16 %v1758
        %v2696 = vunpack.c.h.b16 %v1758
        %v2697 = vunpack.c.l.b16 %v1759
        %v2698 = vunpack.c.h.b16 %v1759
        %v2699 = vunpack.c.l.b16 %v1760
        %v2700 = vunpack.c.h.b16 %v1760
        %v2701 = vunpack.c.l.b16 %v1761
        %v2702 = vunpack.c.h.b16 %v1761
        %v2703 = vunpack.c.l.b16 %v1762
        %v2704 = vunpack.c.h.b16 %v1762
        %v2705 = vunpack.c.l.b16 %v1763
        %v2706 = vunpack.c.h.b16 %v1763
        %v2707 = vunpack.c.l.b16 %v1764
        %v2708 = vunpack.c.h.b16 %v1764
        %v2709 = vunpack.c.l.b16 %v1765
        %v2710 = vunpack.c.h.b16 %v1765
        %v2711 = vunpack.c.l.b16 %v1766
        %v2712 = vunpack.c.h.b16 %v1766
        %v2713 = vunpack.c.l.b16 %v1767
        %v2714 = vunpack.c.h.b16 %v1767
        %v2715 = vunpack.c.l.b16 %v1768
        %v2716 = vunpack.c.h.b16 %v1768
        %v2717 = vunpack.c.l.b16 %v1769
        %v2718 = vunpack.c.h.b16 %v1769
        %v2719 = vunpack.c.l.b16 %v1770
        %v2720 = vunpack.c.h.b16 %v1770
        %v2721 = vunpack.c.l.b16 %v1771
        %v2722 = vunpack.c.h.b16 %v1771
        %v2723 = vunpack.c.l.b16 %v1772
        %v2724 = vunpack.c.h.b16 %v1772
        %v2725 = vunpack.c.l.b16 %v1773
        %v2726 = vunpack.c.h.b16 %v1773
        %v2727 = vunpack.c.l.b16 %v1774
        %v2728 = vunpack.c.h.b16 %v1774
        %v2729 = vunpack.c.l.b16 %v1775
        %v2730 = vunpack.c.h.b16 %v1775
        %v2731 = vunpack.c.l.b16 %v1776
        %v2732 = vunpack.c.h.b16 %v1776
        %v2733 = vunpack.c.l.b16 %v1777
        %v2734 = vunpack.c.h.b16 %v1777
        %v2735 = vunpack.c.l.b16 %v1778
        %v2736 = vunpack.c.h.b16 %v1778
        %v2737 = vunpack.c.l.b16 %v1779
        %v2738 = vunpack.c.h.b16 %v1779
        %v2739 = vunpack.c.l.b16 %v1780
        %v2740 = vunpack.c.h.b16 %v1780
        %v2741 = vunpack.c.l.b16 %v1781
        %v2742 = vunpack.c.h.b16 %v1781
        %v2743 = vunpack.c.l.b16 %v1782
        %v2744 = vunpack.c.h.b16 %v1782
        %v2745 = vunpack.c.l.b16 %v1783
        %v2746 = vunpack.c.h.b16 %v1783
        %v2747 = vunpack.c.l.b16 %v1784
        %v2748 = vunpack.c.h.b16 %v1784
        %v2749 = vunpack.c.l.b16 %v1785
        %v2750 = vunpack.c.h.b16 %v1785
        %v2751 = vunpack.c.l.b16 %v1786
        %v2752 = vunpack.c.h.b16 %v1786
        %v2753 = vunpack.c.l.b16 %v1787
        %v2754 = vunpack.c.h.b16 %v1787
        %v2755 = vunpack.c.l.b16 %v1788
        %v2756 = vunpack.c.h.b16 %v1788
        %v2757 = vunpack.c.l.b16 %v1789
        %v2758 = vunpack.c.h.b16 %v1789
        %v2759 = vunpack.c.l.b16 %v1790
        %v2760 = vunpack.c.h.b16 %v1790
        %v2761 = vunpack.c.l.b16 %v1791
        %v2762 = vunpack.c.h.b16 %v1791
        %v2763 = vunpack.c.l.b16 %v1792
        %v2764 = vunpack.c.h.b16 %v1792
        %v2765 = vunpack.c.l.b16 %v1793
        %v2766 = vunpack.c.h.b16 %v1793
        %v2767 = vunpack.c.l.b16 %v1794
        %v2768 = vunpack.c.h.b16 %v1794
        %v2769 = vunpack.c.l.b16 %v1795
        %v2770 = vunpack.c.h.b16 %v1795
        %v2771 = vunpack.c.l.b16 %v1796
        %v2772 = vunpack.c.h.b16 %v1796
        %v2773 = vunpack.c.l.b16 %v1797
        %v2774 = vunpack.c.h.b16 %v1797
        %v2775 = vunpack.c.l.b16 %v1798
        %v2776 = vunpack.c.h.b16 %v1798
        %v2777 = vunpack.c.l.b16 %v1799
        %v2778 = vunpack.c.h.b16 %v1799
        %v2779 = vunpack.c.l.b16 %v1800
        %v2780 = vunpack.c.h.b16 %v1800
        %v2781 = vunpack.c.l.b16 %v1801
        %v2782 = vunpack.c.h.b16 %v1801
        %v2783 = vunpack.c.l.b16 %v1802
        %v2784 = vunpack.c.h.b16 %v1802
        %v2785 = vunpack.c.l.b16 %v1803
        %v2786 = vunpack.c.h.b16 %v1803
        %v2787 = vunpack.c.l.b16 %v1804
        %v2788 = vunpack.c.h.b16 %v1804
        %v2789 = vunpack.c.l.b16 %v1805
        %v2790 = vunpack.c.h.b16 %v1805
        %v2791 = vunpack.c.l.b16 %v1806
        %v2792 = vunpack.c.h.b16 %v1806
        %v2793 = vunpack.c.l.b16 %v1807
        %v2794 = vunpack.c.h.b16 %v1807
        %v2795 = vunpack.c.l.b16 %v1808
        %v2796 = vunpack.c.h.b16 %v1808
        %v2797 = vunpack.c.l.b16 %v1809
        %v2798 = vunpack.c.h.b16 %v1809
        %v2799 = vunpack.c.l.b16 %v1810
        %v2800 = vunpack.c.h.b16 %v1810
        %v2801 = vunpack.c.l.b16 %v1811
        %v2802 = vunpack.c.h.b16 %v1811
        %v2803 = vunpack.c.l.b16 %v1812
        %v2804 = vunpack.c.h.b16 %v1812
        %v2805 = vunpack.c.l.b16 %v1813
        %v2806 = vunpack.c.h.b16 %v1813
        %v2807 = vunpack.c.l.b16 %v1814
        %v2808 = vunpack.c.h.b16 %v1814
        %v2809 = vunpack.c.l.b16 %v1815
        %v2810 = vunpack.c.h.b16 %v1815
        %v2811 = vunpack.c.l.b16 %v1816
        %v2812 = vunpack.c.h.b16 %v1816
        %v2813 = vunpack.c.l.b16 %v1817
        %v2814 = vunpack.c.h.b16 %v1817
        %v2815 = vunpack.c.l.b16 %v1818
        %v2816 = vunpack.c.h.b16 %v1818
        %v2817 = vunpack.c.l.b16 %v1819
        %v2818 = vunpack.c.h.b16 %v1819
        %v2819 = vunpack.c.l.b16 %v1820
        %v2820 = vunpack.c.h.b16 %v1820
        %v2821 = vunpack.c.l.b16 %v1821
        %v2822 = vunpack.c.h.b16 %v1821
        %v2823 = vunpack.c.l.b16 %v1822
        %v2824 = vunpack.c.h.b16 %v1822
        %v2825 = vunpack.c.l.b16 %v1823
        %v2826 = vunpack.c.h.b16 %v1823
        %v2827 = vunpack.c.l.b16 %v1824
        %v2828 = vunpack.c.h.b16 %v1824
        %v2829 = vunpack.c.l.b16 %v1825
        %v2830 = vunpack.c.h.b16 %v1825
        %v2831 = vunpack.c.l.b16 %v1826
        %v2832 = vunpack.c.h.b16 %v1826
        %v2833 = vunpack.c.l.b16 %v1827
        %v2834 = vunpack.c.h.b16 %v1827
        %v2835 = vunpack.c.l.b16 %v1828
        %v2836 = vunpack.c.h.b16 %v1828
        %v2837 = vunpack.c.l.b16 %v1829
        %v2838 = vunpack.c.h.b16 %v1829
        %v2839 = vunpack.c.l.b16 %v1830
        %v2840 = vunpack.c.h.b16 %v1830
        %v2841 = vunpack.c.l.b16 %v1831
        %v2842 = vunpack.c.h.b16 %v1831
        %v2843 = vunpack.c.l.b16 %v1832
        %v2844 = vunpack.c.h.b16 %v1832
        %v2845 = vunpack.c.l.b16 %v1833
        %v2846 = vunpack.c.h.b16 %v1833
        %v2847 = vunpack.c.l.b16 %v1834
        %v2848 = vunpack.c.h.b16 %v1834
        %v2849 = vunpack.c.l.b16 %v1835
        %v2850 = vunpack.c.h.b16 %v1835
        %v2851 = vunpack.c.l.b16 %v1836
        %v2852 = vunpack.c.h.b16 %v1836
        %v2853 = vpack.c.b16 %v2217, %v2213
        %v2854 = vpack.c.b16 %v2218, %v2214
        %v2855 = vpack.c.b16 %v2219, %v2215
        %v2856 = vpack.c.b16 %v2220, %v2216
        %v2857 = vpack.c.b16 %v2225, %v2221
        %v2858 = vpack.c.b16 %v2226, %v2222
        %v2859 = vpack.c.b16 %v2227, %v2223
        %v2860 = vpack.c.b16 %v2228, %v2224
        %v2861 = vpack.c.b16 %v2233, %v2229
        %v2862 = vpack.c.b16 %v2234, %v2230
        %v2863 = vpack.c.b16 %v2235, %v2231
        %v2864 = vpack.c.b16 %v2236, %v2232
        %v2865 = vpack.c.b16 %v2241, %v2237
        %v2866 = vpack.c.b16 %v2242, %v2238
        %v2867 = vpack.c.b16 %v2243, %v2239
        %v2868 = vpack.c.b16 %v2244, %v2240
        %v2869 = vpack.c.b16 %v2249, %v2245
        %v2870 = vpack.c.b16 %v2250, %v2246
        %v2871 = vpack.c.b16 %v2251, %v2247
        %v2872 = vpack.c.b16 %v2252, %v2248
        %v2873 = vpack.c.b16 %v2257, %v2253
        %v2874 = vpack.c.b16 %v2258, %v2254
        %v2875 = vpack.c.b16 %v2259, %v2255
        %v2876 = vpack.c.b16 %v2260, %v2256
        %v2877 = vpack.c.b16 %v2265, %v2261
        %v2878 = vpack.c.b16 %v2266, %v2262
        %v2879 = vpack.c.b16 %v2267, %v2263
        %v2880 = vpack.c.b16 %v2268, %v2264
        %v2881 = vpack.c.b16 %v2273, %v2269
        %v2882 = vpack.c.b16 %v2274, %v2270
        %v2883 = vpack.c.b16 %v2275, %v2271
        %v2884 = vpack.c.b16 %v2276, %v2272
        %v2885 = vpack.c.b16 %v2281, %v2277
        %v2886 = vpack.c.b16 %v2282, %v2278
        %v2887 = vpack.c.b16 %v2283, %v2279
        %v2888 = vpack.c.b16 %v2284, %v2280
        %v2889 = vpack.c.b16 %v2289, %v2285
        %v2890 = vpack.c.b16 %v2290, %v2286
        %v2891 = vpack.c.b16 %v2291, %v2287
        %v2892 = vpack.c.b16 %v2292, %v2288
        %v2893 = vpack.c.b16 %v2297, %v2293
        %v2894 = vpack.c.b16 %v2298, %v2294
        %v2895 = vpack.c.b16 %v2299, %v2295
        %v2896 = vpack.c.b16 %v2300, %v2296
        %v2897 = vpack.c.b16 %v2305, %v2301
        %v2898 = vpack.c.b16 %v2306, %v2302
        %v2899 = vpack.c.b16 %v2307, %v2303
        %v2900 = vpack.c.b16 %v2308, %v2304
        %v2901 = vpack.c.b16 %v2313, %v2309
        %v2902 = vpack.c.b16 %v2314, %v2310
        %v2903 = vpack.c.b16 %v2315, %v2311
        %v2904 = vpack.c.b16 %v2316, %v2312
        %v2905 = vpack.c.b16 %v2321, %v2317
        %v2906 = vpack.c.b16 %v2322, %v2318
        %v2907 = vpack.c.b16 %v2323, %v2319
        %v2908 = vpack.c.b16 %v2324, %v2320
        %v2909 = vpack.c.b16 %v2329, %v2325
        %v2910 = vpack.c.b16 %v2330, %v2326
        %v2911 = vpack.c.b16 %v2331, %v2327
        %v2912 = vpack.c.b16 %v2332, %v2328
        %v2913 = vpack.c.b16 %v2337, %v2333
        %v2914 = vpack.c.b16 %v2338, %v2334
        %v2915 = vpack.c.b16 %v2339, %v2335
        %v2916 = vpack.c.b16 %v2340, %v2336
        %v2917 = vpack.c.b16 %v2345, %v2341
        %v2918 = vpack.c.b16 %v2346, %v2342
        %v2919 = vpack.c.b16 %v2347, %v2343
        %v2920 = vpack.c.b16 %v2348, %v2344
        %v2921 = vpack.c.b16 %v2353, %v2349
        %v2922 = vpack.c.b16 %v2354, %v2350
        %v2923 = vpack.c.b16 %v2355, %v2351
        %v2924 = vpack.c.b16 %v2356, %v2352
        %v2925 = vpack.c.b16 %v2361, %v2357
        %v2926 = vpack.c.b16 %v2362, %v2358
        %v2927 = vpack.c.b16 %v2363, %v2359
        %v2928 = vpack.c.b16 %v2364, %v2360
        %v2929 = vpack.c.b16 %v2369, %v2365
        %v2930 = vpack.c.b16 %v2370, %v2366
        %v2931 = vpack.c.b16 %v2371, %v2367
        %v2932 = vpack.c.b16 %v2372, %v2368
        %v2933 = vpack.c.b16 %v2377, %v2373
        %v2934 = vpack.c.b16 %v2378, %v2374
        %v2935 = vpack.c.b16 %v2379, %v2375
        %v2936 = vpack.c.b16 %v2380, %v2376
        %v2937 = vpack.c.b16 %v2385, %v2381
        %v2938 = vpack.c.b16 %v2386, %v2382
        %v2939 = vpack.c.b16 %v2387, %v2383
        %v2940 = vpack.c.b16 %v2388, %v2384
        %v2941 = vpack.c.b16 %v2393, %v2389
        %v2942 = vpack.c.b16 %v2394, %v2390
        %v2943 = vpack.c.b16 %v2395, %v2391
        %v2944 = vpack.c.b16 %v2396, %v2392
        %v2945 = vpack.c.b16 %v2401, %v2397
        %v2946 = vpack.c.b16 %v2402, %v2398
        %v2947 = vpack.c.b16 %v2403, %v2399
        %v2948 = vpack.c.b16 %v2404, %v2400
        %v2949 = vpack.c.b16 %v2409, %v2405
        %v2950 = vpack.c.b16 %v2410, %v2406
        %v2951 = vpack.c.b16 %v2411, %v2407
        %v2952 = vpack.c.b16 %v2412, %v2408
        %v2953 = vpack.c.b16 %v2417, %v2413
        %v2954 = vpack.c.b16 %v2418, %v2414
        %v2955 = vpack.c.b16 %v2419, %v2415
        %v2956 = vpack.c.b16 %v2420, %v2416
        %v2957 = vpack.c.b16 %v2425, %v2421
        %v2958 = vpack.c.b16 %v2426, %v2422
        %v2959 = vpack.c.b16 %v2427, %v2423
        %v2960 = vpack.c.b16 %v2428, %v2424
        %v2961 = vpack.c.b16 %v2433, %v2429
        %v2962 = vpack.c.b16 %v2434, %v2430
        %v2963 = vpack.c.b16 %v2435, %v2431
        %v2964 = vpack.c.b16 %v2436, %v2432
        %v2965 = vpack.c.b16 %v2441, %v2437
        %v2966 = vpack.c.b16 %v2442, %v2438
        %v2967 = vpack.c.b16 %v2443, %v2439
        %v2968 = vpack.c.b16 %v2444, %v2440
        %v2969 = vpack.c.b16 %v2449, %v2445
        %v2970 = vpack.c.b16 %v2450, %v2446
        %v2971 = vpack.c.b16 %v2451, %v2447
        %v2972 = vpack.c.b16 %v2452, %v2448
        %v2973 = vpack.c.b16 %v2457, %v2453
        %v2974 = vpack.c.b16 %v2458, %v2454
        %v2975 = vpack.c.b16 %v2459, %v2455
        %v2976 = vpack.c.b16 %v2460, %v2456
        %v2977 = vpack.c.b16 %v2465, %v2461
        %v2978 = vpack.c.b16 %v2466, %v2462
        %v2979 = vpack.c.b16 %v2467, %v2463
        %v2980 = vpack.c.b16 %v2468, %v2464
        %v2981 = vpack.c.b16 %v2473, %v2469
        %v2982 = vpack.c.b16 %v2474, %v2470
        %v2983 = vpack.c.b16 %v2475, %v2471
        %v2984 = vpack.c.b16 %v2476, %v2472
        %v2985 = vpack.c.b16 %v2481, %v2477
        %v2986 = vpack.c.b16 %v2482, %v2478
        %v2987 = vpack.c.b16 %v2483, %v2479
        %v2988 = vpack.c.b16 %v2484, %v2480
        %v2989 = vpack.c.b16 %v2489, %v2485
        %v2990 = vpack.c.b16 %v2490, %v2486
        %v2991 = vpack.c.b16 %v2491, %v2487
        %v2992 = vpack.c.b16 %v2492, %v2488
        %v2993 = vpack.c.b16 %v2497, %v2493
        %v2994 = vpack.c.b16 %v2498, %v2494
        %v2995 = vpack.c.b16 %v2499, %v2495
        %v2996 = vpack.c.b16 %v2500, %v2496
        %v2997 = vpack.c.b16 %v2505, %v2501
        %v2998 = vpack.c.b16 %v2506, %v2502
        %v2999 = vpack.c.b16 %v2507, %v2503
        %v3000 = vpack.c.b16 %v2508, %v2504
        %v3001 = vpack.c.b16 %v2513, %v2509
        %v3002 = vpack.c.b16 %v2514, %v2510
        %v3003 = vpack.c.b16 %v2515, %v2511
        %v3004 = vpack.c.b16 %v2516, %v2512
        %v3005 = vpack.c.b16 %v2521, %v2517
        %v3006 = vpack.c.b16 %v2522, %v2518
        %v3007 = vpack.c.b16 %v2523, %v2519
        %v3008 = vpack.c.b16 %v2524, %v2520
        %v3009 = vpack.c.b16 %v2529, %v2525
        %v3010 = vpack.c.b16 %v2530, %v2526
        %v3011 = vpack.c.b16 %v2531, %v2527
        %v3012 = vpack.c.b16 %v2532, %v2528
        %v3013 = vpack.c.b16 %v2537, %v2533
        %v3014 = vpack.c.b16 %v2538, %v2534
        %v3015 = vpack.c.b16 %v2539, %v2535
        %v3016 = vpack.c.b16 %v2540, %v2536
        %v3017 = vpack.c.b16 %v2545, %v2541
        %v3018 = vpack.c.b16 %v2546, %v2542
        %v3019 = vpack.c.b16 %v2547, %v2543
        %v3020 = vpack.c.b16 %v2548, %v2544
        %v3021 = vpack.c.b16 %v2553, %v2549
        %v3022 = vpack.c.b16 %v2554, %v2550
        %v3023 = vpack.c.b16 %v2555, %v2551
        %v3024 = vpack.c.b16 %v2556, %v2552
        %v3025 = vpack.c.b16 %v2561, %v2557
        %v3026 = vpack.c.b16 %v2562, %v2558
        %v3027 = vpack.c.b16 %v2563, %v2559
        %v3028 = vpack.c.b16 %v2564, %v2560
        %v3029 = vpack.c.b16 %v2569, %v2565
        %v3030 = vpack.c.b16 %v2570, %v2566
        %v3031 = vpack.c.b16 %v2571, %v2567
        %v3032 = vpack.c.b16 %v2572, %v2568
        %v3033 = vpack.c.b16 %v2577, %v2573
        %v3034 = vpack.c.b16 %v2578, %v2574
        %v3035 = vpack.c.b16 %v2579, %v2575
        %v3036 = vpack.c.b16 %v2580, %v2576
        %v3037 = vpack.c.b16 %v2585, %v2581
        %v3038 = vpack.c.b16 %v2586, %v2582
        %v3039 = vpack.c.b16 %v2587, %v2583
        %v3040 = vpack.c.b16 %v2588, %v2584
        %v3041 = vpack.c.b16 %v2593, %v2589
        %v3042 = vpack.c.b16 %v2594, %v2590
        %v3043 = vpack.c.b16 %v2595, %v2591
        %v3044 = vpack.c.b16 %v2596, %v2592
        %v3045 = vpack.c.b16 %v2601, %v2597
        %v3046 = vpack.c.b16 %v2602, %v2598
        %v3047 = vpack.c.b16 %v2603, %v2599
        %v3048 = vpack.c.b16 %v2604, %v2600
        %v3049 = vpack.c.b16 %v2609, %v2605
        %v3050 = vpack.c.b16 %v2610, %v2606
        %v3051 = vpack.c.b16 %v2611, %v2607
        %v3052 = vpack.c.b16 %v2612, %v2608
        %v3053 = vpack.c.b16 %v2617, %v2613
        %v3054 = vpack.c.b16 %v2618, %v2614
        %v3055 = vpack.c.b16 %v2619, %v2615
        %v3056 = vpack.c.b16 %v2620, %v2616
        %v3057 = vpack.c.b16 %v2625, %v2621
        %v3058 = vpack.c.b16 %v2626, %v2622
        %v3059 = vpack.c.b16 %v2627, %v2623
        %v3060 = vpack.c.b16 %v2628, %v2624
        %v3061 = vpack.c.b16 %v2633, %v2629
        %v3062 = vpack.c.b16 %v2634, %v2630
        %v3063 = vpack.c.b16 %v2635, %v2631
        %v3064 = vpack.c.b16 %v2636, %v2632
        %v3065 = vpack.c.b16 %v2641, %v2637
        %v3066 = vpack.c.b16 %v2642, %v2638
        %v3067 = vpack.c.b16 %v2643, %v2639
        %v3068 = vpack.c.b16 %v2644, %v2640
        %v3069 = vpack.c.b16 %v2649, %v2645
        %v3070 = vpack.c.b16 %v2650, %v2646
        %v3071 = vpack.c.b16 %v2651, %v2647
        %v3072 = vpack.c.b16 %v2652, %v2648
        %v3073 = vpack.c.b16 %v2657, %v2653
        %v3074 = vpack.c.b16 %v2658, %v2654
        %v3075 = vpack.c.b16 %v2659, %v2655
        %v3076 = vpack.c.b16 %v2660, %v2656
        %v3077 = vpack.c.b16 %v2665, %v2661
        %v3078 = vpack.c.b16 %v2666, %v2662
        %v3079 = vpack.c.b16 %v2667, %v2663
        %v3080 = vpack.c.b16 %v2668, %v2664
        %v3081 = vpack.c.b16 %v2673, %v2669
        %v3082 = vpack.c.b16 %v2674, %v2670
        %v3083 = vpack.c.b16 %v2675, %v2671
        %v3084 = vpack.c.b16 %v2676, %v2672
        %v3085 = vpack.c.b16 %v2681, %v2677
        %v3086 = vpack.c.b16 %v2682, %v2678
        %v3087 = vpack.c.b16 %v2683, %v2679
        %v3088 = vpack.c.b16 %v2684, %v2680
        %v3089 = vpack.c.b16 %v2689, %v2685
        %v3090 = vpack.c.b16 %v2690, %v2686
        %v3091 = vpack.c.b16 %v2691, %v2687
        %v3092 = vpack.c.b16 %v2692, %v2688
        %v3093 = vpack.c.b16 %v2697, %v2693
        %v3094 = vpack.c.b16 %v2698, %v2694
        %v3095 = vpack.c.b16 %v2699, %v2695
        %v3096 = vpack.c.b16 %v2700, %v2696
        %v3097 = vpack.c.b16 %v2705, %v2701
        %v3098 = vpack.c.b16 %v2706, %v2702
        %v3099 = vpack.c.b16 %v2707, %v2703
        %v3100 = vpack.c.b16 %v2708, %v2704
        %v3101 = vpack.c.b16 %v2713, %v2709
        %v3102 = vpack.c.b16 %v2714, %v2710
        %v3103 = vpack.c.b16 %v2715, %v2711
        %v3104 = vpack.c.b16 %v2716, %v2712
        %v3105 = vpack.c.b16 %v2721, %v2717
        %v3106 = vpack.c.b16 %v2722, %v2718
        %v3107 = vpack.c.b16 %v2723, %v2719
        %v3108 = vpack.c.b16 %v2724, %v2720
        %v3109 = vpack.c.b16 %v2729, %v2725
        %v3110 = vpack.c.b16 %v2730, %v2726
        %v3111 = vpack.c.b16 %v2731, %v2727
        %v3112 = vpack.c.b16 %v2732, %v2728
        %v3113 = vpack.c.b16 %v2737, %v2733
        %v3114 = vpack.c.b16 %v2738, %v2734
        %v3115 = vpack.c.b16 %v2739, %v2735
        %v3116 = vpack.c.b16 %v2740, %v2736
        %v3117 = vpack.c.b16 %v2745, %v2741
        %v3118 = vpack.c.b16 %v2746, %v2742
        %v3119 = vpack.c.b16 %v2747, %v2743
        %v3120 = vpack.c.b16 %v2748, %v2744
        %v3121 = vpack.c.b16 %v2753, %v2749
        %v3122 = vpack.c.b16 %v2754, %v2750
        %v3123 = vpack.c.b16 %v2755, %v2751
        %v3124 = vpack.c.b16 %v2756, %v2752
        %v3125 = vpack.c.b16 %v2761, %v2757
        %v3126 = vpack.c.b16 %v2762, %v2758
        %v3127 = vpack.c.b16 %v2763, %v2759
        %v3128 = vpack.c.b16 %v2764, %v2760
        %v3129 = vpack.c.b16 %v2769, %v2765
        %v3130 = vpack.c.b16 %v2770, %v2766
        %v3131 = vpack.c.b16 %v2771, %v2767
        %v3132 = vpack.c.b16 %v2772, %v2768
        %v3133 = vpack.c.b16 %v2777, %v2773
        %v3134 = vpack.c.b16 %v2778, %v2774
        %v3135 = vpack.c.b16 %v2779, %v2775
        %v3136 = vpack.c.b16 %v2780, %v2776
        %v3137 = vpack.c.b16 %v2785, %v2781
        %v3138 = vpack.c.b16 %v2786, %v2782
        %v3139 = vpack.c.b16 %v2787, %v2783
        %v3140 = vpack.c.b16 %v2788, %v2784
        %v3141 = vpack.c.b16 %v2793, %v2789
        %v3142 = vpack.c.b16 %v2794, %v2790
        %v3143 = vpack.c.b16 %v2795, %v2791
        %v3144 = vpack.c.b16 %v2796, %v2792
        %v3145 = vpack.c.b16 %v2801, %v2797
        %v3146 = vpack.c.b16 %v2802, %v2798
        %v3147 = vpack.c.b16 %v2803, %v2799
        %v3148 = vpack.c.b16 %v2804, %v2800
        %v3149 = vpack.c.b16 %v2809, %v2805
        %v3150 = vpack.c.b16 %v2810, %v2806
        %v3151 = vpack.c.b16 %v2811, %v2807
        %v3152 = vpack.c.b16 %v2812, %v2808
        %v3153 = vpack.c.b16 %v2817, %v2813
        %v3154 = vpack.c.b16 %v2818, %v2814
        %v3155 = vpack.c.b16 %v2819, %v2815
        %v3156 = vpack.c.b16 %v2820, %v2816
        %v3157 = vpack.c.b16 %v2825, %v2821
        %v3158 = vpack.c.b16 %v2826, %v2822
        %v3159 = vpack.c.b16 %v2827, %v2823
        %v3160 = vpack.c.b16 %v2828, %v2824
        %v3161 = vpack.c.b16 %v2833, %v2829
        %v3162 = vpack.c.b16 %v2834, %v2830
        %v3163 = vpack.c.b16 %v2835, %v2831
        %v3164 = vpack.c.b16 %v2836, %v2832
        %v3165 = vpack.c.b16 %v2841, %v2837
        %v3166 = vpack.c.b16 %v2842, %v2838
        %v3167 = vpack.c.b16 %v2843, %v2839
        %v3168 = vpack.c.b16 %v2844, %v2840
        %v3169 = vpack.c.b16 %v2849, %v2845
        %v3170 = vpack.c.b16 %v2850, %v2846
        %v3171 = vpack.c.b16 %v2851, %v2847
        %v3172 = vpack.c.b16 %v2852, %v2848
        %3493 = vmatprep.subr.bf16.mxu0 %v2854
        %3494 = vmatpush1.bf16.msra.mxu0 %v2853
        %3495 = vmatprep.subr.bf16.mxu0 %v2858
        %3496 = vmatpush1.bf16.msra.mxu0 %v2857
        %3497 = vmatprep.subr.bf16.mxu0 %v2862
        %3498 = vmatpush1.bf16.msra.mxu0 %v2861
        %3499 = vmatprep.subr.bf16.mxu0 %v2866
        %3500 = vmatpush1.bf16.msra.mxu0 %v2865
        %3501 = vmatprep.subr.bf16.mxu0 %v2870
        %3502 = vmatpush1.bf16.msra.mxu0 %v2869
        %3503 = vmatprep.subr.bf16.mxu0 %v2874
        %3504 = vmatpush1.bf16.msra.mxu0 %v2873
        %3505 = vmatprep.subr.bf16.mxu0 %v2878
        %3506 = vmatpush1.bf16.msra.mxu0 %v2877
        %3507 = vmatprep.subr.bf16.mxu0 %v2882
        %3508 = vmatpush1.bf16.msra.mxu0 %v2881
        %3509 = vmatprep.subr.bf16.mxu0 %v2886
        %3510 = vmatpush1.bf16.msra.mxu0 %v2885
        %3511 = vmatprep.subr.bf16.mxu0 %v2890
        %3512 = vmatpush1.bf16.msra.mxu0 %v2889
        %3513 = vmatprep.subr.bf16.mxu0 %v2894
        %3514 = vmatpush1.bf16.msra.mxu0 %v2893
        %3515 = vmatprep.subr.bf16.mxu0 %v2898
        %3516 = vmatpush1.bf16.msra.mxu0 %v2897
        %3517 = vmatprep.subr.bf16.mxu0 %v2902
        %3518 = vmatpush1.bf16.msra.mxu0 %v2901
        %3519 = vmatprep.subr.bf16.mxu0 %v2906
        %3520 = vmatpush1.bf16.msra.mxu0 %v2905
        %3521 = vmatprep.subr.bf16.mxu0 %v2910
        %3522 = vmatpush1.bf16.msra.mxu0 %v2909
        %3523 = vmatprep.subr.bf16.mxu0 %v2914
        %3524 = vmatpush1.bf16.msra.mxu0 %v2913
        %3525 = vmatprep.mubr.bf16.mxu0 %v1838
        %3526 = vmatmul.mubr.bf16.gmra.mrb[0].mxu0 %v1837
        %v3527 = vpop.f32.mrb[0].mxu0
        %v3528 = vadd.f32 %v1876, %v3527
        %v3529 = vpop.f32.mrb[0].mxu0
        %v3530 = vadd.f32 %v1880, %v3529
        %v3531 = vpop.f32.mrb[0].mxu0
        %v3532 = vadd.f32 %v1876, %v3531
        %v3533 = vpop.f32.mrb[0].mxu0
        %v3534 = vadd.f32 %v1880, %v3533
        %3535 = vmatprep.mubr.bf16.mxu0 %v1846
        %3536 = vmatmul.mubr.bf16.gmra.mrb[0].mxu0 %v1845
        %v3537 = vpop.f32.mrb[0].mxu0
        %v3538 = vadd.f32 %v1876, %v3537
        %v3539 = vpop.f32.mrb[0].mxu0
        %v3540 = vadd.f32 %v1880, %v3539
        %v3541 = vpop.f32.mrb[0].mxu0
        %v3542 = vadd.f32 %v1876, %v3541
        %v3543 = vpop.f32.mrb[0].mxu0
        %v3544 = vadd.f32 %v1880, %v3543
        %3545 = vmatprep.mubr.bf16.mxu0 %v1854
        %3546 = vmatmul.mubr.bf16.gmra.mrb[0].mxu0 %v1853
        %v3547 = vpop.f32.mrb[0].mxu0
        %v3548 = vadd.f32 %v1876, %v3547
        %v3549 = vpop.f32.mrb[0].mxu0
        %v3550 = vadd.f32 %v1880, %v3549
        %v3551 = vpop.f32.mrb[0].mxu0
        %v3552 = vadd.f32 %v1876, %v3551
        %v3553 = vpop.f32.mrb[0].mxu0
        %v3554 = vadd.f32 %v1880, %v3553
        %3555 = vmatprep.mubr.bf16.mxu0 %v1864
        %3556 = vmatmul.mubr.bf16.gmra.mrb[0].mxu0 %v1863
        %v3557 = vpop.f32.mrb[0].mxu0
        %v3558 = vadd.f32 %v1876, %v3557
        %v3559 = vpop.f32.mrb[0].mxu0
        %v3560 = vadd.f32 %v1880, %v3559
        %v3561 = vpop.f32.mrb[0].mxu0
        %v3562 = vpop.f32.mrb[0].mxu0
        %3563 = vdwg.mxu0
        %3564 = vmatprep.subr.bf16.mxu0 %v2918
        %3565 = vmatpush1.bf16.msra.mxu0 %v2917
        %3566 = vmatprep.subr.bf16.mxu0 %v2922
        %3567 = vmatpush1.bf16.msra.mxu0 %v2921
        %3568 = vmatprep.subr.bf16.mxu0 %v2926
        %3569 = vmatpush1.bf16.msra.mxu0 %v2925
        %3570 = vmatprep.subr.bf16.mxu0 %v2930
        %3571 = vmatpush1.bf16.msra.mxu0 %v2929
        %3572 = vmatprep.subr.bf16.mxu0 %v2934
        %3573 = vmatpush1.bf16.msra.mxu0 %v2933
        %3574 = vmatprep.subr.bf16.mxu0 %v2938
        %3575 = vmatpush1.bf16.msra.mxu0 %v2937
        %3576 = vmatprep.subr.bf16.mxu0 %v2942
        %3577 = vmatpush1.bf16.msra.mxu0 %v2941
        %3578 = vmatprep.subr.bf16.mxu0 %v2946
        %3579 = vmatpush1.bf16.msra.mxu0 %v2945
        %3580 = vmatprep.subr.bf16.mxu0 %v2950
        %3581 = vmatpush1.bf16.msra.mxu0 %v2949
        %3582 = vmatprep.subr.bf16.mxu0 %v2954
        %3583 = vmatpush1.bf16.msra.mxu0 %v2953
        %3584 = vmatprep.subr.bf16.mxu0 %v2958
        %3585 = vmatpush1.bf16.msra.mxu0 %v2957
        %3586 = vmatprep.subr.bf16.mxu0 %v2962
        %3587 = vmatpush1.bf16.msra.mxu0 %v2961
        %3588 = vmatprep.subr.bf16.mxu0 %v2966
        %3589 = vmatpush1.bf16.msra.mxu0 %v2965
        %3590 = vmatprep.subr.bf16.mxu0 %v2970
        %3591 = vmatpush1.bf16.msra.mxu0 %v2969
        %3592 = vmatprep.subr.bf16.mxu0 %v2974
        %3593 = vmatpush1.bf16.msra.mxu0 %v2973
        %3594 = vmatprep.subr.bf16.mxu0 %v2978
        %3595 = vmatpush1.bf16.msra.mxu0 %v2977
        %3596 = vmatprep.mubr.bf16.mxu0 %v1840
        %3597 = vmatmul.mubr.bf16.gmra.mrb[0].mxu0 %v1839
        %v3598 = vpop.f32.mrb[0].mxu0
        %v3599 = vadd.f32 %v3528, %v3598
        %v3600 = vpop.f32.mrb[0].mxu0
        %v3601 = vadd.f32 %v3530, %v3600
        %v3602 = vpop.f32.mrb[0].mxu0
        %v3603 = vadd.f32 %v3532, %v3602
        %v3604 = vpop.f32.mrb[0].mxu0
        %v3605 = vadd.f32 %v3534, %v3604
        %3606 = vmatprep.mubr.bf16.mxu0 %v1848
        %3607 = vmatmul.mubr.bf16.gmra.mrb[0].mxu0 %v1847
        %v3608 = vpop.f32.mrb[0].mxu0
        %v3609 = vadd.f32 %v3538, %v3608
        %v3610 = vpop.f32.mrb[0].mxu0
        %v3611 = vadd.f32 %v3540, %v3610
        %v3612 = vpop.f32.mrb[0].mxu0
        %v3613 = vadd.f32 %v3542, %v3612
        %v3614 = vpop.f32.mrb[0].mxu0
        %v3615 = vadd.f32 %v3544, %v3614
        %3616 = vmatprep.mubr.bf16.mxu0 %v1856
        %3617 = vmatmul.mubr.bf16.gmra.mrb[0].mxu0 %v1855
        %v3618 = vpop.f32.mrb[0].mxu0
        %v3619 = vadd.f32 %v3548, %v3618
        %v3620 = vpop.f32.mrb[0].mxu0
        %v3621 = vadd.f32 %v3550, %v3620
        %v3622 = vpop.f32.mrb[0].mxu0
        %v3623 = vadd.f32 %v3552, %v3622
        %v3624 = vpop.f32.mrb[0].mxu0
        %v3625 = vadd.f32 %v3554, %v3624
        %3626 = vmatprep.mubr.bf16.mxu0 %v1866
        %3627 = vmatmul.mubr.bf16.gmra.mrb[0].mxu0 %v1865
        %v3628 = vpop.f32.mrb[0].mxu0
        %v3629 = vadd.f32 %v3558, %v3628
        %v3630 = vpop.f32.mrb[0].mxu0
        %v3631 = vadd.f32 %v3560, %v3630
        %v3632 = vpop.f32.mrb[0].mxu0
        %v3633 = vpop.f32.mrb[0].mxu0
        %3634 = vdwg.mxu0
        %3635 = vmatprep.subr.bf16.mxu0 %v2982
        %3636 = vmatpush1.bf16.msra.mxu0 %v2981
        %3637 = vmatprep.subr.bf16.mxu0 %v2986
        %3638 = vmatpush1.bf16.msra.mxu0 %v2985
        %3639 = vmatprep.subr.bf16.mxu0 %v2990
        %3640 = vmatpush1.bf16.msra.mxu0 %v2989
        %3641 = vmatprep.subr.bf16.mxu0 %v2994
        %3642 = vmatpush1.bf16.msra.mxu0 %v2993
        %3643 = vmatprep.subr.bf16.mxu0 %v2998
        %3644 = vmatpush1.bf16.msra.mxu0 %v2997
        %3645 = vmatprep.subr.bf16.mxu0 %v3002
        %3646 = vmatpush1.bf16.msra.mxu0 %v3001
        %3647 = vmatprep.subr.bf16.mxu0 %v3006
        %3648 = vmatpush1.bf16.msra.mxu0 %v3005
        %3649 = vmatprep.subr.bf16.mxu0 %v3010
        %3650 = vmatpush1.bf16.msra.mxu0 %v3009
        %3651 = vmatprep.subr.bf16.mxu0 %v3014
        %3652 = vmatpush1.bf16.msra.mxu0 %v3013
        %3653 = vmatprep.subr.bf16.mxu0 %v3018
        %3654 = vmatpush1.bf16.msra.mxu0 %v3017
        %3655 = vmatprep.subr.bf16.mxu0 %v3022
        %3656 = vmatpush1.bf16.msra.mxu0 %v3021
        %3657 = vmatprep.subr.bf16.mxu0 %v3026
        %3658 = vmatpush1.bf16.msra.mxu0 %v3025
        %3659 = vmatprep.subr.bf16.mxu0 %v3030
        %3660 = vmatpush1.bf16.msra.mxu0 %v3029
        %3661 = vmatprep.subr.bf16.mxu0 %v3034
        %3662 = vmatpush1.bf16.msra.mxu0 %v3033
        %3663 = vmatprep.subr.bf16.mxu0 %v3038
        %3664 = vmatpush1.bf16.msra.mxu0 %v3037
        %3665 = vmatprep.subr.bf16.mxu0 %v3042
        %3666 = vmatpush1.bf16.msra.mxu0 %v3041
        %3667 = vmatprep.mubr.bf16.mxu0 %v1842
        %3668 = vmatmul.mubr.bf16.gmra.mrb[0].mxu0 %v1841
        %v3669 = vpop.f32.mrb[0].mxu0
        %v3670 = vadd.f32 %v3599, %v3669
        %v3671 = vpop.f32.mrb[0].mxu0
        %v3672 = vadd.f32 %v3601, %v3671
        %v3673 = vpop.f32.mrb[0].mxu0
        %v3674 = vadd.f32 %v3603, %v3673
        %v3675 = vpop.f32.mrb[0].mxu0
        %v3676 = vadd.f32 %v3605, %v3675
        %3677 = vmatprep.mubr.bf16.mxu0 %v1850
        %3678 = vmatmul.mubr.bf16.gmra.mrb[0].mxu0 %v1849
        %v3679 = vpop.f32.mrb[0].mxu0
        %v3680 = vadd.f32 %v3609, %v3679
        %v3681 = vpop.f32.mrb[0].mxu0
        %v3682 = vadd.f32 %v3611, %v3681
        %v3683 = vpop.f32.mrb[0].mxu0
        %v3684 = vadd.f32 %v3613, %v3683
        %v3685 = vpop.f32.mrb[0].mxu0
        %v3686 = vadd.f32 %v3615, %v3685
        %3687 = vmatprep.mubr.bf16.mxu0 %v1858
        %3688 = vmatmul.mubr.bf16.gmra.mrb[0].mxu0 %v1857
        %v3689 = vpop.f32.mrb[0].mxu0
        %v3690 = vadd.f32 %v3619, %v3689
        %v3691 = vpop.f32.mrb[0].mxu0
        %v3692 = vadd.f32 %v3621, %v3691
        %v3693 = vpop.f32.mrb[0].mxu0
        %v3694 = vadd.f32 %v3623, %v3693
        %v3695 = vpop.f32.mrb[0].mxu0
        %v3696 = vadd.f32 %v3625, %v3695
        %3697 = vmatprep.mubr.bf16.mxu0 %v1868
        %3698 = vmatmul.mubr.bf16.gmra.mrb[0].mxu0 %v1867
        %v3699 = vpop.f32.mrb[0].mxu0
        %v3700 = vadd.f32 %v3629, %v3699
        %v3701 = vpop.f32.mrb[0].mxu0
        %v3702 = vadd.f32 %v3631, %v3701
        %v3703 = vpop.f32.mrb[0].mxu0
        %v3704 = vpop.f32.mrb[0].mxu0
        %3705 = vdwg.mxu0
        %3706 = vmatprep.subr.bf16.mxu0 %v3046
        %3707 = vmatpush1.bf16.msra.mxu0 %v3045
        %3708 = vmatprep.subr.bf16.mxu0 %v3050
        %3709 = vmatpush1.bf16.msra.mxu0 %v3049
        %3710 = vmatprep.subr.bf16.mxu0 %v3054
        %3711 = vmatpush1.bf16.msra.mxu0 %v3053
        %3712 = vmatprep.subr.bf16.mxu0 %v3058
        %3713 = vmatpush1.bf16.msra.mxu0 %v3057
        %3714 = vmatprep.subr.bf16.mxu0 %v3062
        %3715 = vmatpush1.bf16.msra.mxu0 %v3061
        %3716 = vmatprep.subr.bf16.mxu0 %v3066
        %3717 = vmatpush1.bf16.msra.mxu0 %v3065
        %3718 = vmatprep.subr.bf16.mxu0 %v3070
        %3719 = vmatpush1.bf16.msra.mxu0 %v3069
        %3720 = vmatprep.subr.bf16.mxu0 %v3074
        %3721 = vmatpush1.bf16.msra.mxu0 %v3073
        %3722 = vmatprep.subr.bf16.mxu0 %v3078
        %3723 = vmatpush1.bf16.msra.mxu0 %v3077
        %3724 = vmatprep.subr.bf16.mxu0 %v3082
        %3725 = vmatpush1.bf16.msra.mxu0 %v3081
        %3726 = vmatprep.subr.bf16.mxu0 %v3086
        %3727 = vmatpush1.bf16.msra.mxu0 %v3085
        %3728 = vmatprep.subr.bf16.mxu0 %v3090
        %3729 = vmatpush1.bf16.msra.mxu0 %v3089
        %3730 = vmatprep.subr.bf16.mxu0 %v3094
        %3731 = vmatpush1.bf16.msra.mxu0 %v3093
        %3732 = vmatprep.subr.bf16.mxu0 %v3098
        %3733 = vmatpush1.bf16.msra.mxu0 %v3097
        %3734 = vmatprep.subr.bf16.mxu0 %v3102
        %3735 = vmatpush1.bf16.msra.mxu0 %v3101
        %3736 = vmatprep.subr.bf16.mxu0 %v3106
        %3737 = vmatpush1.bf16.msra.mxu0 %v3105
        %3738 = vmatprep.mubr.bf16.mxu0 %v1844
        %3739 = vmatmul.mubr.bf16.gmra.mrb[0].mxu0 %v1843
        %v3740 = vpop.f32.mrb[0].mxu0
        %v3741 = vadd.f32 %v3670, %v3740
        %v3742 = vpop.f32.mrb[0].mxu0
        %v3743 = vadd.f32 %v3672, %v3742
        %v3744 = vpop.f32.mrb[0].mxu0
        %v3745 = vadd.f32 %v3674, %v3744
        %v3746 = vpop.f32.mrb[0].mxu0
        %v3747 = vadd.f32 %v3676, %v3746
        %3748 = vmatprep.mubr.bf16.mxu0 %v1852
        %3749 = vmatmul.mubr.bf16.gmra.mrb[0].mxu0 %v1851
        %v3750 = vpop.f32.mrb[0].mxu0
        %v3751 = vadd.f32 %v3680, %v3750
        %v3752 = vpop.f32.mrb[0].mxu0
        %v3753 = vadd.f32 %v3682, %v3752
        %v3754 = vpop.f32.mrb[0].mxu0
        %v3755 = vadd.f32 %v3684, %v3754
        %v3756 = vpop.f32.mrb[0].mxu0
        %v3757 = vadd.f32 %v3686, %v3756
        %3758 = vmatprep.mubr.bf16.mxu0 %v1860
        %3759 = vmatmul.mubr.bf16.gmra.mrb[0].mxu0 %v1859
        %v3760 = vpop.f32.mrb[0].mxu0
        %v3761 = vadd.f32 %v3690, %v3760
        %v3762 = vpop.f32.mrb[0].mxu0
        %v3763 = vadd.f32 %v3692, %v3762
        %v3764 = vpop.f32.mrb[0].mxu0
        %v3765 = vadd.f32 %v3694, %v3764
        %v3766 = vpop.f32.mrb[0].mxu0
        %v3767 = vadd.f32 %v3696, %v3766
        %3768 = vmatprep.mubr.bf16.mxu0 %v1870
        %3769 = vmatmul.mubr.bf16.gmra.mrb[0].mxu0 %v1869
        %v3770 = vpop.f32.mrb[0].mxu0
        %v3771 = vadd.f32 %v3700, %v3770
        %v3772 = vpop.f32.mrb[0].mxu0
        %v3773 = vadd.f32 %v3702, %v3772
        %v3774 = vpop.f32.mrb[0].mxu0
        %v3775 = vpop.f32.mrb[0].mxu0
        %3776 = vdwg.mxu0
        %3777 = vmatprep.subr.bf16.mxu0 %v3110
        %3778 = vmatpush1.bf16.msra.mxu0 %v3109
        %3779 = vmatprep.subr.bf16.mxu0 %v3114
        %3780 = vmatpush1.bf16.msra.mxu0 %v3113
        %3781 = vmatprep.subr.bf16.mxu0 %v3118
        %3782 = vmatpush1.bf16.msra.mxu0 %v3117
        %3783 = vmatprep.subr.bf16.mxu0 %v3122
        %3784 = vmatpush1.bf16.msra.mxu0 %v3121
        %3785 = vmatprep.subr.bf16.mxu0 %v3126
        %3786 = vmatpush1.bf16.msra.mxu0 %v3125
        %3787 = vmatprep.subr.bf16.mxu0 %v3130
        %3788 = vmatpush1.bf16.msra.mxu0 %v3129
        %3789 = vmatprep.subr.bf16.mxu0 %v3134
        %3790 = vmatpush1.bf16.msra.mxu0 %v3133
        %3791 = vmatprep.subr.bf16.mxu0 %v3138
        %3792 = vmatpush1.bf16.msra.mxu0 %v3137
        %3793 = vmatprep.subr.bf16.mxu0 %v3142
        %3794 = vmatpush1.bf16.msra.mxu0 %v3141
        %3795 = vmatprep.subr.bf16.mxu0 %v3146
        %3796 = vmatpush1.bf16.msra.mxu0 %v3145
        %3797 = vmatprep.subr.bf16.mxu0 %v3150
        %3798 = vmatpush1.bf16.msra.mxu0 %v3149
        %3799 = vmatprep.subr.bf16.mxu0 %v3154
        %3800 = vmatpush1.bf16.msra.mxu0 %v3153
        %3801 = vmatprep.subr.bf16.mxu0 %v3158
        %3802 = vmatpush1.bf16.msra.mxu0 %v3157
        %3803 = vmatprep.subr.bf16.mxu0 %v3162
        %3804 = vmatpush1.bf16.msra.mxu0 %v3161
        %3805 = vmatprep.subr.bf16.mxu0 %v3166
        %3806 = vmatpush1.bf16.msra.mxu0 %v3165
        %3807 = vmatprep.subr.bf16.mxu0 %v3170
        %3808 = vmatpush1.bf16.msra.mxu0 %v3169
        %3809 = vmatprep.mubr.bf16.mxu0 %v1846
        %3810 = vmatmul.mubr.bf16.gmra.mrb[0].mxu0 %v1845
        %v3811 = vpop.f32.mrb[0].mxu0
        %v3812 = vadd.f32 %v3741, %v3811
        %v3813 = vpop.f32.mrb[0].mxu0
        %v3814 = vadd.f32 %v3743, %v3813
        %v3815 = vpop.f32.mrb[0].mxu0
        %v3816 = vadd.f32 %v3745, %v3815
        %v3817 = vpop.f32.mrb[0].mxu0
        %v3818 = vadd.f32 %v3747, %v3817
        %3819 = vmatprep.mubr.bf16.mxu0 %v1854
        %3820 = vmatmul.mubr.bf16.gmra.mrb[0].mxu0 %v1853
        %v3821 = vpop.f32.mrb[0].mxu0
        %v3822 = vadd.f32 %v3751, %v3821
        %v3823 = vpop.f32.mrb[0].mxu0
        %v3824 = vadd.f32 %v3753, %v3823
        %v3825 = vpop.f32.mrb[0].mxu0
        %v3826 = vadd.f32 %v3755, %v3825
        %v3827 = vpop.f32.mrb[0].mxu0
        %v3828 = vadd.f32 %v3757, %v3827
        %3829 = vmatprep.mubr.bf16.mxu0 %v1862
        %3830 = vmatmul.mubr.bf16.gmra.mrb[0].mxu0 %v1861
        %v3831 = vpop.f32.mrb[0].mxu0
        %v3832 = vadd.f32 %v3761, %v3831
        %v3833 = vpop.f32.mrb[0].mxu0
        %v3834 = vadd.f32 %v3763, %v3833
        %v3835 = vpop.f32.mrb[0].mxu0
        %v3836 = vadd.f32 %v3765, %v3835
        %v3837 = vpop.f32.mrb[0].mxu0
        %v3838 = vadd.f32 %v3767, %v3837
        %3839 = vmatprep.mubr.bf16.mxu0 %v1871
        %3840 = vmatmul.mubr.bf16.gmra.mrb[0].mxu0 %v1871
        %v3841 = vpop.f32.mrb[0].mxu0
        %v3842 = vadd.f32 %v3771, %v3841
        %v3843 = vpop.f32.mrb[0].mxu0
        %v3844 = vadd.f32 %v3773, %v3843
        %v3845 = vpop.f32.mrb[0].mxu0
        %v3846 = vpop.f32.mrb[0].mxu0
        %3847 = vdwg.mxu0
        %3848 = vmatprep.subr.bf16.mxu0 %v2856
        %3849 = vmatpush1.bf16.msra.mxu0 %v2855
        %3850 = vmatprep.subr.bf16.mxu0 %v2860
        %3851 = vmatpush1.bf16.msra.mxu0 %v2859
        %3852 = vmatprep.subr.bf16.mxu0 %v2864
        %3853 = vmatpush1.bf16.msra.mxu0 %v2863
        %3854 = vmatprep.subr.bf16.mxu0 %v2868
        %3855 = vmatpush1.bf16.msra.mxu0 %v2867
        %3856 = vmatprep.subr.bf16.mxu0 %v2872
        %3857 = vmatpush1.bf16.msra.mxu0 %v2871
        %3858 = vmatprep.subr.bf16.mxu0 %v2876
        %3859 = vmatpush1.bf16.msra.mxu0 %v2875
        %3860 = vmatprep.subr.bf16.mxu0 %v2880
        %3861 = vmatpush1.bf16.msra.mxu0 %v2879
        %3862 = vmatprep.subr.bf16.mxu0 %v2884
        %3863 = vmatpush1.bf16.msra.mxu0 %v2883
        %3864 = vmatprep.subr.bf16.mxu0 %v2888
        %3865 = vmatpush1.bf16.msra.mxu0 %v2887
        %3866 = vmatprep.subr.bf16.mxu0 %v2892
        %3867 = vmatpush1.bf16.msra.mxu0 %v2891
        %3868 = vmatprep.subr.bf16.mxu0 %v2896
        %3869 = vmatpush1.bf16.msra.mxu0 %v2895
        %3870 = vmatprep.subr.bf16.mxu0 %v2900
        %3871 = vmatpush1.bf16.msra.mxu0 %v2899
        %3872 = vmatprep.subr.bf16.mxu0 %v2904
        %3873 = vmatpush1.bf16.msra.mxu0 %v2903
        %3874 = vmatprep.subr.bf16.mxu0 %v2908
        %3875 = vmatpush1.bf16.msra.mxu0 %v2907
        %3876 = vmatprep.subr.bf16.mxu0 %v2912
        %3877 = vmatpush1.bf16.msra.mxu0 %v2911
        %3878 = vmatprep.subr.bf16.mxu0 %v2916
        %3879 = vmatpush1.bf16.msra.mxu0 %v2915
        %3880 = vmatprep.mubr.bf16.mxu0 %v1838
        %3881 = vmatmul.mubr.bf16.gmra.mrb[0].mxu0 %v1837
        %v3882 = vpop.f32.mrb[0].mxu0
        %v3883 = vadd.f32 %v1884, %v3882
        %v3884 = vpop.f32.mrb[0].mxu0
        %v3885 = vadd.f32 %v1888, %v3884
        %v3886 = vpop.f32.mrb[0].mxu0
        %v3887 = vadd.f32 %v1884, %v3886
        %v3888 = vpop.f32.mrb[0].mxu0
        %v3889 = vadd.f32 %v1888, %v3888
        %3890 = vmatprep.mubr.bf16.mxu0 %v1846
        %3891 = vmatmul.mubr.bf16.gmra.mrb[0].mxu0 %v1845
        %v3892 = vpop.f32.mrb[0].mxu0
        %v3893 = vadd.f32 %v1884, %v3892
        %v3894 = vpop.f32.mrb[0].mxu0
        %v3895 = vadd.f32 %v1888, %v3894
        %v3896 = vpop.f32.mrb[0].mxu0
        %v3897 = vadd.f32 %v1884, %v3896
        %v3898 = vpop.f32.mrb[0].mxu0
        %v3899 = vadd.f32 %v1888, %v3898
        %3900 = vmatprep.mubr.bf16.mxu0 %v1854
        %3901 = vmatmul.mubr.bf16.gmra.mrb[0].mxu0 %v1853
        %v3902 = vpop.f32.mrb[0].mxu0
        %v3903 = vadd.f32 %v1884, %v3902
        %v3904 = vpop.f32.mrb[0].mxu0
        %v3905 = vadd.f32 %v1888, %v3904
        %v3906 = vpop.f32.mrb[0].mxu0
        %v3907 = vadd.f32 %v1884, %v3906
        %v3908 = vpop.f32.mrb[0].mxu0
        %v3909 = vadd.f32 %v1888, %v3908
        %3910 = vmatprep.mubr.bf16.mxu0 %v1864
        %3911 = vmatmul.mubr.bf16.gmra.mrb[0].mxu0 %v1863
        %v3912 = vpop.f32.mrb[0].mxu0
        %v3913 = vadd.f32 %v1884, %v3912
        %v3914 = vpop.f32.mrb[0].mxu0
        %v3915 = vadd.f32 %v1888, %v3914
        %v3916 = vpop.f32.mrb[0].mxu0
        %v3917 = vpop.f32.mrb[0].mxu0
        %3918 = vdwg.mxu0
        %3919 = vmatprep.subr.bf16.mxu0 %v2920
        %3920 = vmatpush1.bf16.msra.mxu0 %v2919
        %3921 = vmatprep.subr.bf16.mxu0 %v2924
        %3922 = vmatpush1.bf16.msra.mxu0 %v2923
        %3923 = vmatprep.subr.bf16.mxu0 %v2928
        %3924 = vmatpush1.bf16.msra.mxu0 %v2927
        %3925 = vmatprep.subr.bf16.mxu0 %v2932
        %3926 = vmatpush1.bf16.msra.mxu0 %v2931
        %3927 = vmatprep.subr.bf16.mxu0 %v2936
        %3928 = vmatpush1.bf16.msra.mxu0 %v2935
        %3929 = vmatprep.subr.bf16.mxu0 %v2940
        %3930 = vmatpush1.bf16.msra.mxu0 %v2939
        %3931 = vmatprep.subr.bf16.mxu0 %v2944
        %3932 = vmatpush1.bf16.msra.mxu0 %v2943
        %3933 = vmatprep.subr.bf16.mxu0 %v2948
        %3934 = vmatpush1.bf16.msra.mxu0 %v2947
        %3935 = vmatprep.subr.bf16.mxu0 %v2952
        %3936 = vmatpush1.bf16.msra.mxu0 %v2951
        %3937 = vmatprep.subr.bf16.mxu0 %v2956
        %3938 = vmatpush1.bf16.msra.mxu0 %v2955
        %3939 = vmatprep.subr.bf16.mxu0 %v2960
        %3940 = vmatpush1.bf16.msra.mxu0 %v2959
        %3941 = vmatprep.subr.bf16.mxu0 %v2964
        %3942 = vmatpush1.bf16.msra.mxu0 %v2963
        %3943 = vmatprep.subr.bf16.mxu0 %v2968
        %3944 = vmatpush1.bf16.msra.mxu0 %v2967
        %3945 = vmatprep.subr.bf16.mxu0 %v2972
        %3946 = vmatpush1.bf16.msra.mxu0 %v2971
        %3947 = vmatprep.subr.bf16.mxu0 %v2976
        %3948 = vmatpush1.bf16.msra.mxu0 %v2975
        %3949 = vmatprep.subr.bf16.mxu0 %v2980
        %3950 = vmatpush1.bf16.msra.mxu0 %v2979
        %3951 = vmatprep.mubr.bf16.mxu0 %v1840
        %3952 = vmatmul.mubr.bf16.gmra.mrb[0].mxu0 %v1839
        %v3953 = vpop.f32.mrb[0].mxu0
        %v3954 = vadd.f32 %v3883, %v3953
        %v3955 = vpop.f32.mrb[0].mxu0
        %v3956 = vadd.f32 %v3885, %v3955
        %v3957 = vpop.f32.mrb[0].mxu0
        %v3958 = vadd.f32 %v3887, %v3957
        %v3959 = vpop.f32.mrb[0].mxu0
        %v3960 = vadd.f32 %v3889, %v3959
        %3961 = vmatprep.mubr.bf16.mxu0 %v1848
        %3962 = vmatmul.mubr.bf16.gmra.mrb[0].mxu0 %v1847
        %v3963 = vpop.f32.mrb[0].mxu0
        %v3964 = vadd.f32 %v3893, %v3963
        %v3965 = vpop.f32.mrb[0].mxu0
        %v3966 = vadd.f32 %v3895, %v3965
        %v3967 = vpop.f32.mrb[0].mxu0
        %v3968 = vadd.f32 %v3897, %v3967
        %v3969 = vpop.f32.mrb[0].mxu0
        %v3970 = vadd.f32 %v3899, %v3969
        %3971 = vmatprep.mubr.bf16.mxu0 %v1856
        %3972 = vmatmul.mubr.bf16.gmra.mrb[0].mxu0 %v1855
        %v3973 = vpop.f32.mrb[0].mxu0
        %v3974 = vadd.f32 %v3903, %v3973
        %v3975 = vpop.f32.mrb[0].mxu0
        %v3976 = vadd.f32 %v3905, %v3975
        %v3977 = vpop.f32.mrb[0].mxu0
        %v3978 = vadd.f32 %v3907, %v3977
        %v3979 = vpop.f32.mrb[0].mxu0
        %v3980 = vadd.f32 %v3909, %v3979
        %3981 = vmatprep.mubr.bf16.mxu0 %v1866
        %3982 = vmatmul.mubr.bf16.gmra.mrb[0].mxu0 %v1865
        %v3983 = vpop.f32.mrb[0].mxu0
        %v3984 = vadd.f32 %v3913, %v3983
        %v3985 = vpop.f32.mrb[0].mxu0
        %v3986 = vadd.f32 %v3915, %v3985
        %v3987 = vpop.f32.mrb[0].mxu0
        %v3988 = vpop.f32.mrb[0].mxu0
        %3989 = vdwg.mxu0
        %3990 = vmatprep.subr.bf16.mxu0 %v2984
        %3991 = vmatpush1.bf16.msra.mxu0 %v2983
        %3992 = vmatprep.subr.bf16.mxu0 %v2988
        %3993 = vmatpush1.bf16.msra.mxu0 %v2987
        %3994 = vmatprep.subr.bf16.mxu0 %v2992
        %3995 = vmatpush1.bf16.msra.mxu0 %v2991
        %3996 = vmatprep.subr.bf16.mxu0 %v2996
        %3997 = vmatpush1.bf16.msra.mxu0 %v2995
        %3998 = vmatprep.subr.bf16.mxu0 %v3000
        %3999 = vmatpush1.bf16.msra.mxu0 %v2999
        %4000 = vmatprep.subr.bf16.mxu0 %v3004
        %4001 = vmatpush1.bf16.msra.mxu0 %v3003
        %4002 = vmatprep.subr.bf16.mxu0 %v3008
        %4003 = vmatpush1.bf16.msra.mxu0 %v3007
        %4004 = vmatprep.subr.bf16.mxu0 %v3012
        %4005 = vmatpush1.bf16.msra.mxu0 %v3011
        %4006 = vmatprep.subr.bf16.mxu0 %v3016
        %4007 = vmatpush1.bf16.msra.mxu0 %v3015
        %4008 = vmatprep.subr.bf16.mxu0 %v3020
        %4009 = vmatpush1.bf16.msra.mxu0 %v3019
        %4010 = vmatprep.subr.bf16.mxu0 %v3024
        %4011 = vmatpush1.bf16.msra.mxu0 %v3023
        %4012 = vmatprep.subr.bf16.mxu0 %v3028
        %4013 = vmatpush1.bf16.msra.mxu0 %v3027
        %4014 = vmatprep.subr.bf16.mxu0 %v3032
        %4015 = vmatpush1.bf16.msra.mxu0 %v3031
        %4016 = vmatprep.subr.bf16.mxu0 %v3036
        %4017 = vmatpush1.bf16.msra.mxu0 %v3035
        %4018 = vmatprep.subr.bf16.mxu0 %v3040
        %4019 = vmatpush1.bf16.msra.mxu0 %v3039
        %4020 = vmatprep.subr.bf16.mxu0 %v3044
        %4021 = vmatpush1.bf16.msra.mxu0 %v3043
        %4022 = vmatprep.mubr.bf16.mxu0 %v1842
        %4023 = vmatmul.mubr.bf16.gmra.mrb[0].mxu0 %v1841
        %v4024 = vpop.f32.mrb[0].mxu0
        %v4025 = vadd.f32 %v3954, %v4024
        %v4026 = vpop.f32.mrb[0].mxu0
        %v4027 = vadd.f32 %v3956, %v4026
        %v4028 = vpop.f32.mrb[0].mxu0
        %v4029 = vadd.f32 %v3958, %v4028
        %v4030 = vpop.f32.mrb[0].mxu0
        %v4031 = vadd.f32 %v3960, %v4030
        %4032 = vmatprep.mubr.bf16.mxu0 %v1850
        %4033 = vmatmul.mubr.bf16.gmra.mrb[0].mxu0 %v1849
        %v4034 = vpop.f32.mrb[0].mxu0
        %v4035 = vadd.f32 %v3964, %v4034
        %v4036 = vpop.f32.mrb[0].mxu0
        %v4037 = vadd.f32 %v3966, %v4036
        %v4038 = vpop.f32.mrb[0].mxu0
        %v4039 = vadd.f32 %v3968, %v4038
        %v4040 = vpop.f32.mrb[0].mxu0
        %v4041 = vadd.f32 %v3970, %v4040
        %4042 = vmatprep.mubr.bf16.mxu0 %v1858
        %4043 = vmatmul.mubr.bf16.gmra.mrb[0].mxu0 %v1857
        %v4044 = vpop.f32.mrb[0].mxu0
        %v4045 = vadd.f32 %v3974, %v4044
        %v4046 = vpop.f32.mrb[0].mxu0
        %v4047 = vadd.f32 %v3976, %v4046
        %v4048 = vpop.f32.mrb[0].mxu0
        %v4049 = vadd.f32 %v3978, %v4048
        %v4050 = vpop.f32.mrb[0].mxu0
        %v4051 = vadd.f32 %v3980, %v4050
        %4052 = vmatprep.mubr.bf16.mxu0 %v1868
        %4053 = vmatmul.mubr.bf16.gmra.mrb[0].mxu0 %v1867
        %v4054 = vpop.f32.mrb[0].mxu0
        %v4055 = vadd.f32 %v3984, %v4054
        %v4056 = vpop.f32.mrb[0].mxu0
        %v4057 = vadd.f32 %v3986, %v4056
        %v4058 = vpop.f32.mrb[0].mxu0
        %v4059 = vpop.f32.mrb[0].mxu0
        %4060 = vdwg.mxu0
        %4061 = vmatprep.subr.bf16.mxu0 %v3048
        %4062 = vmatpush1.bf16.msra.mxu0 %v3047
        %4063 = vmatprep.subr.bf16.mxu0 %v3052
        %4064 = vmatpush1.bf16.msra.mxu0 %v3051
        %4065 = vmatprep.subr.bf16.mxu0 %v3056
        %4066 = vmatpush1.bf16.msra.mxu0 %v3055
        %4067 = vmatprep.subr.bf16.mxu0 %v3060
        %4068 = vmatpush1.bf16.msra.mxu0 %v3059
        %4069 = vmatprep.subr.bf16.mxu0 %v3064
        %4070 = vmatpush1.bf16.msra.mxu0 %v3063
        %4071 = vmatprep.subr.bf16.mxu0 %v3068
        %4072 = vmatpush1.bf16.msra.mxu0 %v3067
        %4073 = vmatprep.subr.bf16.mxu0 %v3072
        %4074 = vmatpush1.bf16.msra.mxu0 %v3071
        %4075 = vmatprep.subr.bf16.mxu0 %v3076
        %4076 = vmatpush1.bf16.msra.mxu0 %v3075
        %4077 = vmatprep.subr.bf16.mxu0 %v3080
        %4078 = vmatpush1.bf16.msra.mxu0 %v3079
        %4079 = vmatprep.subr.bf16.mxu0 %v3084
        %4080 = vmatpush1.bf16.msra.mxu0 %v3083
        %4081 = vmatprep.subr.bf16.mxu0 %v3088
        %4082 = vmatpush1.bf16.msra.mxu0 %v3087
        %4083 = vmatprep.subr.bf16.mxu0 %v3092
        %4084 = vmatpush1.bf16.msra.mxu0 %v3091
        %4085 = vmatprep.subr.bf16.mxu0 %v3096
        %4086 = vmatpush1.bf16.msra.mxu0 %v3095
        %4087 = vmatprep.subr.bf16.mxu0 %v3100
        %4088 = vmatpush1.bf16.msra.mxu0 %v3099
        %4089 = vmatprep.subr.bf16.mxu0 %v3104
        %4090 = vmatpush1.bf16.msra.mxu0 %v3103
        %4091 = vmatprep.subr.bf16.mxu0 %v3108
        %4092 = vmatpush1.bf16.msra.mxu0 %v3107
        %4093 = vmatprep.mubr.bf16.mxu0 %v1844
        %4094 = vmatmul.mubr.bf16.gmra.mrb[0].mxu0 %v1843
        %v4095 = vpop.f32.mrb[0].mxu0
        %v4096 = vadd.f32 %v4025, %v4095
        %v4097 = vpop.f32.mrb[0].mxu0
        %v4098 = vadd.f32 %v4027, %v4097
        %v4099 = vpop.f32.mrb[0].mxu0
        %v4100 = vadd.f32 %v4029, %v4099
        %v4101 = vpop.f32.mrb[0].mxu0
        %v4102 = vadd.f32 %v4031, %v4101
        %4103 = vmatprep.mubr.bf16.mxu0 %v1852
        %4104 = vmatmul.mubr.bf16.gmra.mrb[0].mxu0 %v1851
        %v4105 = vpop.f32.mrb[0].mxu0
        %v4106 = vadd.f32 %v4035, %v4105
        %v4107 = vpop.f32.mrb[0].mxu0
        %v4108 = vadd.f32 %v4037, %v4107
        %v4109 = vpop.f32.mrb[0].mxu0
        %v4110 = vadd.f32 %v4039, %v4109
        %v4111 = vpop.f32.mrb[0].mxu0
        %v4112 = vadd.f32 %v4041, %v4111
        %4113 = vmatprep.mubr.bf16.mxu0 %v1860
        %4114 = vmatmul.mubr.bf16.gmra.mrb[0].mxu0 %v1859
        %v4115 = vpop.f32.mrb[0].mxu0
        %v4116 = vadd.f32 %v4045, %v4115
        %v4117 = vpop.f32.mrb[0].mxu0
        %v4118 = vadd.f32 %v4047, %v4117
        %v4119 = vpop.f32.mrb[0].mxu0
        %v4120 = vadd.f32 %v4049, %v4119
        %v4121 = vpop.f32.mrb[0].mxu0
        %v4122 = vadd.f32 %v4051, %v4121
        %4123 = vmatprep.mubr.bf16.mxu0 %v1870
        %4124 = vmatmul.mubr.bf16.gmra.mrb[0].mxu0 %v1869
        %v4125 = vpop.f32.mrb[0].mxu0
        %v4126 = vadd.f32 %v4055, %v4125
        %v4127 = vpop.f32.mrb[0].mxu0
        %v4128 = vadd.f32 %v4057, %v4127
        %v4129 = vpop.f32.mrb[0].mxu0
        %v4130 = vpop.f32.mrb[0].mxu0
        %4131 = vdwg.mxu0
        %4132 = vmatprep.subr.bf16.mxu0 %v3112
        %4133 = vmatpush1.bf16.msra.mxu0 %v3111
        %4134 = vmatprep.subr.bf16.mxu0 %v3116
        %4135 = vmatpush1.bf16.msra.mxu0 %v3115
        %4136 = vmatprep.subr.bf16.mxu0 %v3120
        %4137 = vmatpush1.bf16.msra.mxu0 %v3119
        %4138 = vmatprep.subr.bf16.mxu0 %v3124
        %4139 = vmatpush1.bf16.msra.mxu0 %v3123
        %4140 = vmatprep.subr.bf16.mxu0 %v3128
        %4141 = vmatpush1.bf16.msra.mxu0 %v3127
        %4142 = vmatprep.subr.bf16.mxu0 %v3132
        %4143 = vmatpush1.bf16.msra.mxu0 %v3131
        %4144 = vmatprep.subr.bf16.mxu0 %v3136
        %4145 = vmatpush1.bf16.msra.mxu0 %v3135
        %4146 = vmatprep.subr.bf16.mxu0 %v3140
        %4147 = vmatpush1.bf16.msra.mxu0 %v3139
        %4148 = vmatprep.subr.bf16.mxu0 %v3144
        %4149 = vmatpush1.bf16.msra.mxu0 %v3143
        %4150 = vmatprep.subr.bf16.mxu0 %v3148
        %4151 = vmatpush1.bf16.msra.mxu0 %v3147
        %4152 = vmatprep.subr.bf16.mxu0 %v3152
        %4153 = vmatpush1.bf16.msra.mxu0 %v3151
        %4154 = vmatprep.subr.bf16.mxu0 %v3156
        %4155 = vmatpush1.bf16.msra.mxu0 %v3155
        %4156 = vmatprep.subr.bf16.mxu0 %v3160
        %4157 = vmatpush1.bf16.msra.mxu0 %v3159
        %4158 = vmatprep.subr.bf16.mxu0 %v3164
        %4159 = vmatpush1.bf16.msra.mxu0 %v3163
        %4160 = vmatprep.subr.bf16.mxu0 %v3168
        %4161 = vmatpush1.bf16.msra.mxu0 %v3167
        %4162 = vmatprep.subr.bf16.mxu0 %v3172
        %4163 = vmatpush1.bf16.msra.mxu0 %v3171
        %4164 = vmatprep.mubr.bf16.mxu0 %v1846
        %4165 = vmatmul.mubr.bf16.gmra.mrb[0].mxu0 %v1845
        %v4166 = vpop.f32.mrb[0].mxu0
        %v4167 = vadd.f32 %v4096, %v4166
        %v4168 = vpop.f32.mrb[0].mxu0
        %v4169 = vadd.f32 %v4098, %v4168
        %v4170 = vpop.f32.mrb[0].mxu0
        %v4171 = vadd.f32 %v4100, %v4170
        %v4172 = vpop.f32.mrb[0].mxu0
        %v4173 = vadd.f32 %v4102, %v4172
        %4174 = vmatprep.mubr.bf16.mxu0 %v1854
        %4175 = vmatmul.mubr.bf16.gmra.mrb[0].mxu0 %v1853
        %v4176 = vpop.f32.mrb[0].mxu0
        %v4177 = vadd.f32 %v4106, %v4176
        %v4178 = vpop.f32.mrb[0].mxu0
        %v4179 = vadd.f32 %v4108, %v4178
        %v4180 = vpop.f32.mrb[0].mxu0
        %v4181 = vadd.f32 %v4110, %v4180
        %v4182 = vpop.f32.mrb[0].mxu0
        %v4183 = vadd.f32 %v4112, %v4182
        %4184 = vmatprep.mubr.bf16.mxu0 %v1862
        %4185 = vmatmul.mubr.bf16.gmra.mrb[0].mxu0 %v1861
        %v4186 = vpop.f32.mrb[0].mxu0
        %v4187 = vadd.f32 %v4116, %v4186
        %v4188 = vpop.f32.mrb[0].mxu0
        %v4189 = vadd.f32 %v4118, %v4188
        %v4190 = vpop.f32.mrb[0].mxu0
        %v4191 = vadd.f32 %v4120, %v4190
        %v4192 = vpop.f32.mrb[0].mxu0
        %v4193 = vadd.f32 %v4122, %v4192
        %4194 = vmatprep.mubr.bf16.mxu0 %v1871
        %4195 = vmatmul.mubr.bf16.gmra.mrb[0].mxu0 %v1871
        %v4196 = vpop.f32.mrb[0].mxu0
        %v4197 = vadd.f32 %v4126, %v4196
        %v4198 = vpop.f32.mrb[0].mxu0
        %v4199 = vadd.f32 %v4128, %v4198
        %v4200 = vpop.f32.mrb[0].mxu0
        %v4201 = vpop.f32.mrb[0].mxu0
        %4202 = vdwg.mxu0
        %v4203 = vmax.f32 %v3812, 0.0
        %v4204 = vmax.f32 %v3814, 0.0
        %v4205 = vmax.f32 %v4167, 0.0
        %v4206 = vmax.f32 %v4169, 0.0
        %v4207 = vmax.f32 %v3816, 0.0
        %v4208 = vmax.f32 %v3818, 0.0
        %v4209 = vmax.f32 %v4171, 0.0
        %v4210 = vmax.f32 %v4173, 0.0
        %v4211 = vmax.f32 %v3822, 0.0
        %v4212 = vmax.f32 %v3824, 0.0
        %v4213 = vmax.f32 %v4177, 0.0
        %v4214 = vmax.f32 %v4179, 0.0
        %v4215 = vmax.f32 %v3826, 0.0
        %v4216 = vmax.f32 %v3828, 0.0
        %v4217 = vmax.f32 %v4181, 0.0
        %v4218 = vmax.f32 %v4183, 0.0
        %v4219 = vmax.f32 %v3832, 0.0
        %v4220 = vmax.f32 %v3834, 0.0
        %v4221 = vmax.f32 %v4187, 0.0
        %v4222 = vmax.f32 %v4189, 0.0
        %v4223 = vmax.f32 %v3836, 0.0
        %v4224 = vmax.f32 %v3838, 0.0
        %v4225 = vmax.f32 %v4191, 0.0
        %v4226 = vmax.f32 %v4193, 0.0
        %v4227 = vmax.f32 %v3842, 0.0
        %v4228 = vmax.f32 %v3844, 0.0
        %v4229 = vmax.f32 %v4197, 0.0
        %v4230 = vmax.f32 %v4199, 0.0
        %v4231 = vpack.c.bf16 %v1515, %v1513
        %v4232 = vpack.c.bf16 %v1516, %v1514
        %4233 = vmatprep.subr.bf16.mxu0 %v2854
        %4234 = vmatpush1.bf16.msra.mxu0 %v2853
        %4235 = vmatprep.subr.bf16.mxu0 %v2858
        %4236 = vmatpush1.bf16.msra.mxu0 %v2857
        %4237 = vmatprep.subr.bf16.mxu0 %v2862
        %4238 = vmatpush1.bf16.msra.mxu0 %v2861
        %4239 = vmatprep.subr.bf16.mxu0 %v2866
        %4240 = vmatpush1.bf16.msra.mxu0 %v2865
        %4241 = vmatprep.subr.bf16.mxu0 %v2870
        %4242 = vmatpush1.bf16.msra.mxu0 %v2869
        %4243 = vmatprep.subr.bf16.mxu0 %v2874
        %4244 = vmatpush1.bf16.msra.mxu0 %v2873
        %4245 = vmatprep.subr.bf16.mxu0 %v2878
        %4246 = vmatpush1.bf16.msra.mxu0 %v2877
        %4247 = vmatprep.subr.bf16.mxu0 %v2882
        %4248 = vmatpush1.bf16.msra.mxu0 %v2881
        %4249 = vmatprep.subr.bf16.mxu0 %v2886
        %4250 = vmatpush1.bf16.msra.mxu0 %v2885
        %4251 = vmatprep.subr.bf16.mxu0 %v2890
        %4252 = vmatpush1.bf16.msra.mxu0 %v2889
        %4253 = vmatprep.subr.bf16.mxu0 %v2894
        %4254 = vmatpush1.bf16.msra.mxu0 %v2893
        %4255 = vmatprep.subr.bf16.mxu0 %v2898
        %4256 = vmatpush1.bf16.msra.mxu0 %v2897
        %4257 = vmatprep.subr.bf16.mxu0 %v2902
        %4258 = vmatpush1.bf16.msra.mxu0 %v2901
        %4259 = vmatprep.subr.bf16.mxu0 %v2906
        %4260 = vmatpush1.bf16.msra.mxu0 %v2905
        %4261 = vmatprep.subr.bf16.mxu0 %v2910
        %4262 = vmatpush1.bf16.msra.mxu0 %v2909
        %4263 = vmatprep.subr.bf16.mxu0 %v2914
        %4264 = vmatpush1.bf16.msra.mxu0 %v2913
        %4265 = vmatprep.mubr.bf16.mxu0 %v1840
        %4266 = vmatmul.mubr.bf16.gmra.mrb[0].mxu0 %v1839
        %v4267 = vpop.f32.mrb[0].mxu0
        %v4268 = vadd.f32 %v1876, %v4267
        %v4269 = vpop.f32.mrb[0].mxu0
        %v4270 = vadd.f32 %v1880, %v4269
        %v4271 = vpop.f32.mrb[0].mxu0
        %v4272 = vadd.f32 %v1876, %v4271
        %v4273 = vpop.f32.mrb[0].mxu0
        %v4274 = vadd.f32 %v1880, %v4273
        %4275 = vmatprep.mubr.bf16.mxu0 %v1848
        %4276 = vmatmul.mubr.bf16.gmra.mrb[0].mxu0 %v1847
        %v4277 = vpop.f32.mrb[0].mxu0
        %v4278 = vadd.f32 %v1876, %v4277
        %v4279 = vpop.f32.mrb[0].mxu0
        %v4280 = vadd.f32 %v1880, %v4279
        %v4281 = vpop.f32.mrb[0].mxu0
        %v4282 = vadd.f32 %v1876, %v4281
        %v4283 = vpop.f32.mrb[0].mxu0
        %v4284 = vadd.f32 %v1880, %v4283
        %4285 = vmatprep.mubr.bf16.mxu0 %v1856
        %4286 = vmatmul.mubr.bf16.gmra.mrb[0].mxu0 %v1855
        %v4287 = vpop.f32.mrb[0].mxu0
        %v4288 = vadd.f32 %v1876, %v4287
        %v4289 = vpop.f32.mrb[0].mxu0
        %v4290 = vadd.f32 %v1880, %v4289
        %v4291 = vpop.f32.mrb[0].mxu0
        %v4292 = vadd.f32 %v1876, %v4291
        %v4293 = vpop.f32.mrb[0].mxu0
        %v4294 = vadd.f32 %v1880, %v4293
        %4295 = vmatprep.mubr.bf16.mxu0 %v1866
        %4296 = vmatmul.mubr.bf16.gmra.mrb[0].mxu0 %v1865
        %v4297 = vpop.f32.mrb[0].mxu0
        %v4298 = vadd.f32 %v1876, %v4297
        %v4299 = vpop.f32.mrb[0].mxu0
        %v4300 = vadd.f32 %v1880, %v4299
        %v4301 = vpop.f32.mrb[0].mxu0
        %v4302 = vpop.f32.mrb[0].mxu0
        %4303 = vdwg.mxu0
        %4304 = vmatprep.subr.bf16.mxu0 %v2918
        %4305 = vmatpush1.bf16.msra.mxu0 %v2917
        %4306 = vmatprep.subr.bf16.mxu0 %v2922
        %4307 = vmatpush1.bf16.msra.mxu0 %v2921
        %4308 = vmatprep.subr.bf16.mxu0 %v2926
        %4309 = vmatpush1.bf16.msra.mxu0 %v2925
        %4310 = vmatprep.subr.bf16.mxu0 %v2930
        %4311 = vmatpush1.bf16.msra.mxu0 %v2929
        %4312 = vmatprep.subr.bf16.mxu0 %v2934
        %4313 = vmatpush1.bf16.msra.mxu0 %v2933
        %4314 = vmatprep.subr.bf16.mxu0 %v2938
        %4315 = vmatpush1.bf16.msra.mxu0 %v2937
        %4316 = vmatprep.subr.bf16.mxu0 %v2942
        %4317 = vmatpush1.bf16.msra.mxu0 %v2941
        %4318 = vmatprep.subr.bf16.mxu0 %v2946
        %4319 = vmatpush1.bf16.msra.mxu0 %v2945
        %4320 = vmatprep.subr.bf16.mxu0 %v2950
        %4321 = vmatpush1.bf16.msra.mxu0 %v2949
        %4322 = vmatprep.subr.bf16.mxu0 %v2954
        %4323 = vmatpush1.bf16.msra.mxu0 %v2953
        %4324 = vmatprep.subr.bf16.mxu0 %v2958
        %4325 = vmatpush1.bf16.msra.mxu0 %v2957
        %4326 = vmatprep.subr.bf16.mxu0 %v2962
        %4327 = vmatpush1.bf16.msra.mxu0 %v2961
        %4328 = vmatprep.subr.bf16.mxu0 %v2966
        %4329 = vmatpush1.bf16.msra.mxu0 %v2965
        %4330 = vmatprep.subr.bf16.mxu0 %v2970
        %4331 = vmatpush1.bf16.msra.mxu0 %v2969
        %4332 = vmatprep.subr.bf16.mxu0 %v2974
        %4333 = vmatpush1.bf16.msra.mxu0 %v2973
        %4334 = vmatprep.subr.bf16.mxu0 %v2978
        %4335 = vmatpush1.bf16.msra.mxu0 %v2977
        %4336 = vmatprep.mubr.bf16.mxu0 %v1842
        %4337 = vmatmul.mubr.bf16.gmra.mrb[0].mxu0 %v1841
        %v4338 = vpop.f32.mrb[0].mxu0
        %v4339 = vadd.f32 %v4268, %v4338
        %v4340 = vpop.f32.mrb[0].mxu0
        %v4341 = vadd.f32 %v4270, %v4340
        %v4342 = vpop.f32.mrb[0].mxu0
        %v4343 = vadd.f32 %v4272, %v4342
        %v4344 = vpop.f32.mrb[0].mxu0
        %v4345 = vadd.f32 %v4274, %v4344
        %4346 = vmatprep.mubr.bf16.mxu0 %v1850
        %4347 = vmatmul.mubr.bf16.gmra.mrb[0].mxu0 %v1849
        %v4348 = vpop.f32.mrb[0].mxu0
        %v4349 = vadd.f32 %v4278, %v4348
        %v4350 = vpop.f32.mrb[0].mxu0
        %v4351 = vadd.f32 %v4280, %v4350
        %v4352 = vpop.f32.mrb[0].mxu0
        %v4353 = vadd.f32 %v4282, %v4352
        %v4354 = vpop.f32.mrb[0].mxu0
        %v4355 = vadd.f32 %v4284, %v4354
        %4356 = vmatprep.mubr.bf16.mxu0 %v1858
        %4357 = vmatmul.mubr.bf16.gmra.mrb[0].mxu0 %v1857
        %v4358 = vpop.f32.mrb[0].mxu0
        %v4359 = vadd.f32 %v4288, %v4358
        %v4360 = vpop.f32.mrb[0].mxu0
        %v4361 = vadd.f32 %v4290, %v4360
        %v4362 = vpop.f32.mrb[0].mxu0
        %v4363 = vadd.f32 %v4292, %v4362
        %v4364 = vpop.f32.mrb[0].mxu0
        %v4365 = vadd.f32 %v4294, %v4364
        %4366 = vmatprep.mubr.bf16.mxu0 %v1868
        %4367 = vmatmul.mubr.bf16.gmra.mrb[0].mxu0 %v1867
        %v4368 = vpop.f32.mrb[0].mxu0
        %v4369 = vadd.f32 %v4298, %v4368
        %v4370 = vpop.f32.mrb[0].mxu0
        %v4371 = vadd.f32 %v4300, %v4370
        %v4372 = vpop.f32.mrb[0].mxu0
        %v4373 = vpop.f32.mrb[0].mxu0
        %4374 = vdwg.mxu0
        %4375 = vmatprep.subr.bf16.mxu0 %v2982
        %4376 = vmatpush1.bf16.msra.mxu0 %v2981
        %4377 = vmatprep.subr.bf16.mxu0 %v2986
        %4378 = vmatpush1.bf16.msra.mxu0 %v2985
        %4379 = vmatprep.subr.bf16.mxu0 %v2990
        %4380 = vmatpush1.bf16.msra.mxu0 %v2989
        %4381 = vmatprep.subr.bf16.mxu0 %v2994
        %4382 = vmatpush1.bf16.msra.mxu0 %v2993
        %4383 = vmatprep.subr.bf16.mxu0 %v2998
        %4384 = vmatpush1.bf16.msra.mxu0 %v2997
        %4385 = vmatprep.subr.bf16.mxu0 %v3002
        %4386 = vmatpush1.bf16.msra.mxu0 %v3001
        %4387 = vmatprep.subr.bf16.mxu0 %v3006
        %4388 = vmatpush1.bf16.msra.mxu0 %v3005
        %4389 = vmatprep.subr.bf16.mxu0 %v3010
        %4390 = vmatpush1.bf16.msra.mxu0 %v3009
        %4391 = vmatprep.subr.bf16.mxu0 %v3014
        %4392 = vmatpush1.bf16.msra.mxu0 %v3013
        %4393 = vmatprep.subr.bf16.mxu0 %v3018
        %4394 = vmatpush1.bf16.msra.mxu0 %v3017
        %4395 = vmatprep.subr.bf16.mxu0 %v3022
        %4396 = vmatpush1.bf16.msra.mxu0 %v3021
        %4397 = vmatprep.subr.bf16.mxu0 %v3026
        %4398 = vmatpush1.bf16.msra.mxu0 %v3025
        %4399 = vmatprep.subr.bf16.mxu0 %v3030
        %4400 = vmatpush1.bf16.msra.mxu0 %v3029
        %4401 = vmatprep.subr.bf16.mxu0 %v3034
        %4402 = vmatpush1.bf16.msra.mxu0 %v3033
        %4403 = vmatprep.subr.bf16.mxu0 %v3038
        %4404 = vmatpush1.bf16.msra.mxu0 %v3037
        %4405 = vmatprep.subr.bf16.mxu0 %v3042
        %4406 = vmatpush1.bf16.msra.mxu0 %v3041
        %4407 = vmatprep.mubr.bf16.mxu0 %v1844
        %4408 = vmatmul.mubr.bf16.gmra.mrb[0].mxu0 %v1843
        %v4409 = vpop.f32.mrb[0].mxu0
        %v4410 = vadd.f32 %v4339, %v4409
        %v4411 = vpop.f32.mrb[0].mxu0
        %v4412 = vadd.f32 %v4341, %v4411
        %v4413 = vpop.f32.mrb[0].mxu0
        %v4414 = vadd.f32 %v4343, %v4413
        %v4415 = vpop.f32.mrb[0].mxu0
        %v4416 = vadd.f32 %v4345, %v4415
        %4417 = vmatprep.mubr.bf16.mxu0 %v1852
        %4418 = vmatmul.mubr.bf16.gmra.mrb[0].mxu0 %v1851
        %v4419 = vpop.f32.mrb[0].mxu0
        %v4420 = vadd.f32 %v4349, %v4419
        %v4421 = vpop.f32.mrb[0].mxu0
        %v4422 = vadd.f32 %v4351, %v4421
        %v4423 = vpop.f32.mrb[0].mxu0
        %v4424 = vadd.f32 %v4353, %v4423
        %v4425 = vpop.f32.mrb[0].mxu0
        %v4426 = vadd.f32 %v4355, %v4425
        %4427 = vmatprep.mubr.bf16.mxu0 %v1860
        %4428 = vmatmul.mubr.bf16.gmra.mrb[0].mxu0 %v1859
        %v4429 = vpop.f32.mrb[0].mxu0
        %v4430 = vadd.f32 %v4359, %v4429
        %v4431 = vpop.f32.mrb[0].mxu0
        %v4432 = vadd.f32 %v4361, %v4431
        %v4433 = vpop.f32.mrb[0].mxu0
        %v4434 = vadd.f32 %v4363, %v4433
        %v4435 = vpop.f32.mrb[0].mxu0
        %v4436 = vadd.f32 %v4365, %v4435
        %4437 = vmatprep.mubr.bf16.mxu0 %v1870
        %4438 = vmatmul.mubr.bf16.gmra.mrb[0].mxu0 %v1869
        %v4439 = vpop.f32.mrb[0].mxu0
        %v4440 = vadd.f32 %v4369, %v4439
        %v4441 = vpop.f32.mrb[0].mxu0
        %v4442 = vadd.f32 %v4371, %v4441
        %v4443 = vpop.f32.mrb[0].mxu0
        %v4444 = vpop.f32.mrb[0].mxu0
        %4445 = vdwg.mxu0
        %4446 = vmatprep.subr.bf16.mxu0 %v3046
        %4447 = vmatpush1.bf16.msra.mxu0 %v3045
        %4448 = vmatprep.subr.bf16.mxu0 %v3050
        %4449 = vmatpush1.bf16.msra.mxu0 %v3049
        %4450 = vmatprep.subr.bf16.mxu0 %v3054
        %4451 = vmatpush1.bf16.msra.mxu0 %v3053
        %4452 = vmatprep.subr.bf16.mxu0 %v3058
        %4453 = vmatpush1.bf16.msra.mxu0 %v3057
        %4454 = vmatprep.subr.bf16.mxu0 %v3062
        %4455 = vmatpush1.bf16.msra.mxu0 %v3061
        %4456 = vmatprep.subr.bf16.mxu0 %v3066
        %4457 = vmatpush1.bf16.msra.mxu0 %v3065
        %4458 = vmatprep.subr.bf16.mxu0 %v3070
        %4459 = vmatpush1.bf16.msra.mxu0 %v3069
        %4460 = vmatprep.subr.bf16.mxu0 %v3074
        %4461 = vmatpush1.bf16.msra.mxu0 %v3073
        %4462 = vmatprep.subr.bf16.mxu0 %v3078
        %4463 = vmatpush1.bf16.msra.mxu0 %v3077
        %4464 = vmatprep.subr.bf16.mxu0 %v3082
        %4465 = vmatpush1.bf16.msra.mxu0 %v3081
        %4466 = vmatprep.subr.bf16.mxu0 %v3086
        %4467 = vmatpush1.bf16.msra.mxu0 %v3085
        %4468 = vmatprep.subr.bf16.mxu0 %v3090
        %4469 = vmatpush1.bf16.msra.mxu0 %v3089
        %4470 = vmatprep.subr.bf16.mxu0 %v3094
        %4471 = vmatpush1.bf16.msra.mxu0 %v3093
        %4472 = vmatprep.subr.bf16.mxu0 %v3098
        %4473 = vmatpush1.bf16.msra.mxu0 %v3097
        %4474 = vmatprep.subr.bf16.mxu0 %v3102
        %4475 = vmatpush1.bf16.msra.mxu0 %v3101
        %4476 = vmatprep.subr.bf16.mxu0 %v3106
        %4477 = vmatpush1.bf16.msra.mxu0 %v3105
        %4478 = vmatprep.mubr.bf16.mxu0 %v1846
        %4479 = vmatmul.mubr.bf16.gmra.mrb[0].mxu0 %v1845
        %v4480 = vpop.f32.mrb[0].mxu0
        %v4481 = vadd.f32 %v4410, %v4480
        %v4482 = vpop.f32.mrb[0].mxu0
        %v4483 = vadd.f32 %v4412, %v4482
        %v4484 = vpop.f32.mrb[0].mxu0
        %v4485 = vadd.f32 %v4414, %v4484
        %v4486 = vpop.f32.mrb[0].mxu0
        %v4487 = vadd.f32 %v4416, %v4486
        %4488 = vmatprep.mubr.bf16.mxu0 %v1854
        %4489 = vmatmul.mubr.bf16.gmra.mrb[0].mxu0 %v1853
        %v4490 = vpop.f32.mrb[0].mxu0
        %v4491 = vadd.f32 %v4420, %v4490
        %v4492 = vpop.f32.mrb[0].mxu0
        %v4493 = vadd.f32 %v4422, %v4492
        %v4494 = vpop.f32.mrb[0].mxu0
        %v4495 = vadd.f32 %v4424, %v4494
        %v4496 = vpop.f32.mrb[0].mxu0
        %v4497 = vadd.f32 %v4426, %v4496
        %4498 = vmatprep.mubr.bf16.mxu0 %v1862
        %4499 = vmatmul.mubr.bf16.gmra.mrb[0].mxu0 %v1861
        %v4500 = vpop.f32.mrb[0].mxu0
        %v4501 = vadd.f32 %v4430, %v4500
        %v4502 = vpop.f32.mrb[0].mxu0
        %v4503 = vadd.f32 %v4432, %v4502
        %v4504 = vpop.f32.mrb[0].mxu0
        %v4505 = vadd.f32 %v4434, %v4504
        %v4506 = vpop.f32.mrb[0].mxu0
        %v4507 = vadd.f32 %v4436, %v4506
        %4508 = vmatprep.mubr.bf16.mxu0 %v1871
        %4509 = vmatmul.mubr.bf16.gmra.mrb[0].mxu0 %v1871
        %v4510 = vpop.f32.mrb[0].mxu0
        %v4511 = vadd.f32 %v4440, %v4510
        %v4512 = vpop.f32.mrb[0].mxu0
        %v4513 = vadd.f32 %v4442, %v4512
        %v4514 = vpop.f32.mrb[0].mxu0
        %v4515 = vpop.f32.mrb[0].mxu0
        %4516 = vdwg.mxu0
        %4517 = vmatprep.subr.bf16.mxu0 %v3110
        %4518 = vmatpush1.bf16.msra.mxu0 %v3109
        %4519 = vmatprep.subr.bf16.mxu0 %v3114
        %4520 = vmatpush1.bf16.msra.mxu0 %v3113
        %4521 = vmatprep.subr.bf16.mxu0 %v3118
        %4522 = vmatpush1.bf16.msra.mxu0 %v3117
        %4523 = vmatprep.subr.bf16.mxu0 %v3122
        %4524 = vmatpush1.bf16.msra.mxu0 %v3121
        %4525 = vmatprep.subr.bf16.mxu0 %v3126
        %4526 = vmatpush1.bf16.msra.mxu0 %v3125
        %4527 = vmatprep.subr.bf16.mxu0 %v3130
        %4528 = vmatpush1.bf16.msra.mxu0 %v3129
        %4529 = vmatprep.subr.bf16.mxu0 %v3134
        %4530 = vmatpush1.bf16.msra.mxu0 %v3133
        %4531 = vmatprep.subr.bf16.mxu0 %v3138
        %4532 = vmatpush1.bf16.msra.mxu0 %v3137
        %4533 = vmatprep.subr.bf16.mxu0 %v3142
        %4534 = vmatpush1.bf16.msra.mxu0 %v3141
        %4535 = vmatprep.subr.bf16.mxu0 %v3146
        %4536 = vmatpush1.bf16.msra.mxu0 %v3145
        %4537 = vmatprep.subr.bf16.mxu0 %v3150
        %4538 = vmatpush1.bf16.msra.mxu0 %v3149
        %4539 = vmatprep.subr.bf16.mxu0 %v3154
        %4540 = vmatpush1.bf16.msra.mxu0 %v3153
        %4541 = vmatprep.subr.bf16.mxu0 %v3158
        %4542 = vmatpush1.bf16.msra.mxu0 %v3157
        %4543 = vmatprep.subr.bf16.mxu0 %v3162
        %4544 = vmatpush1.bf16.msra.mxu0 %v3161
        %4545 = vmatprep.subr.bf16.mxu0 %v3166
        %4546 = vmatpush1.bf16.msra.mxu0 %v3165
        %4547 = vmatprep.subr.bf16.mxu0 %v3170
        %4548 = vmatpush1.bf16.msra.mxu0 %v3169
        %4549 = vmatprep.mubr.bf16.mxu0 %v1848
        %4550 = vmatmul.mubr.bf16.gmra.mrb[0].mxu0 %v1847
        %v4551 = vpop.f32.mrb[0].mxu0
        %v4552 = vadd.f32 %v4481, %v4551
        %v4553 = vpop.f32.mrb[0].mxu0
        %v4554 = vadd.f32 %v4483, %v4553
        %v4555 = vpop.f32.mrb[0].mxu0
        %v4556 = vadd.f32 %v4485, %v4555
        %v4557 = vpop.f32.mrb[0].mxu0
        %v4558 = vadd.f32 %v4487, %v4557
        %4559 = vmatprep.mubr.bf16.mxu0 %v1856
        %4560 = vmatmul.mubr.bf16.gmra.mrb[0].mxu0 %v1855
        %v4561 = vpop.f32.mrb[0].mxu0
        %v4562 = vadd.f32 %v4491, %v4561
        %v4563 = vpop.f32.mrb[0].mxu0
        %v4564 = vadd.f32 %v4493, %v4563
        %v4565 = vpop.f32.mrb[0].mxu0
        %v4566 = vadd.f32 %v4495, %v4565
        %v4567 = vpop.f32.mrb[0].mxu0
        %v4568 = vadd.f32 %v4497, %v4567
        %4569 = vmatprep.mubr.bf16.mxu0 %v4232
        %4570 = vmatmul.mubr.bf16.gmra.mrb[0].mxu0 %v4231
        %v4571 = vpop.f32.mrb[0].mxu0
        %v4572 = vadd.f32 %v4501, %v4571
        %v4573 = vpop.f32.mrb[0].mxu0
        %v4574 = vadd.f32 %v4503, %v4573
        %v4575 = vpop.f32.mrb[0].mxu0
        %v4576 = vadd.f32 %v4505, %v4575
        %v4577 = vpop.f32.mrb[0].mxu0
        %v4578 = vadd.f32 %v4507, %v4577
        %4579 = vmatprep.mubr.bf16.mxu0 %v1871
        %4580 = vmatmul.mubr.bf16.gmra.mrb[0].mxu0 %v1871
        %v4581 = vpop.f32.mrb[0].mxu0
        %v4582 = vadd.f32 %v4511, %v4581
        %v4583 = vpop.f32.mrb[0].mxu0
        %v4584 = vadd.f32 %v4513, %v4583
        %v4585 = vpop.f32.mrb[0].mxu0
        %v4586 = vpop.f32.mrb[0].mxu0
        %4587 = vdwg.mxu0
        %4588 = vmatprep.subr.bf16.mxu0 %v2856
        %4589 = vmatpush1.bf16.msra.mxu0 %v2855
        %4590 = vmatprep.subr.bf16.mxu0 %v2860
        %4591 = vmatpush1.bf16.msra.mxu0 %v2859
        %4592 = vmatprep.subr.bf16.mxu0 %v2864
        %4593 = vmatpush1.bf16.msra.mxu0 %v2863
        %4594 = vmatprep.subr.bf16.mxu0 %v2868
        %4595 = vmatpush1.bf16.msra.mxu0 %v2867
        %4596 = vmatprep.subr.bf16.mxu0 %v2872
        %4597 = vmatpush1.bf16.msra.mxu0 %v2871
        %4598 = vmatprep.subr.bf16.mxu0 %v2876
        %4599 = vmatpush1.bf16.msra.mxu0 %v2875
        %4600 = vmatprep.subr.bf16.mxu0 %v2880
        %4601 = vmatpush1.bf16.msra.mxu0 %v2879
        %4602 = vmatprep.subr.bf16.mxu0 %v2884
        %4603 = vmatpush1.bf16.msra.mxu0 %v2883
        %4604 = vmatprep.subr.bf16.mxu0 %v2888
        %4605 = vmatpush1.bf16.msra.mxu0 %v2887
        %4606 = vmatprep.subr.bf16.mxu0 %v2892
        %4607 = vmatpush1.bf16.msra.mxu0 %v2891
        %4608 = vmatprep.subr.bf16.mxu0 %v2896
        %4609 = vmatpush1.bf16.msra.mxu0 %v2895
        %4610 = vmatprep.subr.bf16.mxu0 %v2900
        %4611 = vmatpush1.bf16.msra.mxu0 %v2899
        %4612 = vmatprep.subr.bf16.mxu0 %v2904
        %4613 = vmatpush1.bf16.msra.mxu0 %v2903
        %4614 = vmatprep.subr.bf16.mxu0 %v2908
        %4615 = vmatpush1.bf16.msra.mxu0 %v2907
        %4616 = vmatprep.subr.bf16.mxu0 %v2912
        %4617 = vmatpush1.bf16.msra.mxu0 %v2911
        %4618 = vmatprep.subr.bf16.mxu0 %v2916
        %4619 = vmatpush1.bf16.msra.mxu0 %v2915
        %4620 = vmatprep.mubr.bf16.mxu0 %v1840
        %4621 = vmatmul.mubr.bf16.gmra.mrb[0].mxu0 %v1839
        %v4622 = vpop.f32.mrb[0].mxu0
        %v4623 = vadd.f32 %v1884, %v4622
        %v4624 = vpop.f32.mrb[0].mxu0
        %v4625 = vadd.f32 %v1888, %v4624
        %v4626 = vpop.f32.mrb[0].mxu0
        %v4627 = vadd.f32 %v1884, %v4626
        %v4628 = vpop.f32.mrb[0].mxu0
        %v4629 = vadd.f32 %v1888, %v4628
        %4630 = vmatprep.mubr.bf16.mxu0 %v1848
        %4631 = vmatmul.mubr.bf16.gmra.mrb[0].mxu0 %v1847
        %v4632 = vpop.f32.mrb[0].mxu0
        %v4633 = vadd.f32 %v1884, %v4632
        %v4634 = vpop.f32.mrb[0].mxu0
        %v4635 = vadd.f32 %v1888, %v4634
        %v4636 = vpop.f32.mrb[0].mxu0
        %v4637 = vadd.f32 %v1884, %v4636
        %v4638 = vpop.f32.mrb[0].mxu0
        %v4639 = vadd.f32 %v1888, %v4638
        %4640 = vmatprep.mubr.bf16.mxu0 %v1856
        %4641 = vmatmul.mubr.bf16.gmra.mrb[0].mxu0 %v1855
        %v4642 = vpop.f32.mrb[0].mxu0
        %v4643 = vadd.f32 %v1884, %v4642
        %v4644 = vpop.f32.mrb[0].mxu0
        %v4645 = vadd.f32 %v1888, %v4644
        %v4646 = vpop.f32.mrb[0].mxu0
        %v4647 = vadd.f32 %v1884, %v4646
        %v4648 = vpop.f32.mrb[0].mxu0
        %v4649 = vadd.f32 %v1888, %v4648
        %4650 = vmatprep.mubr.bf16.mxu0 %v1866
        %4651 = vmatmul.mubr.bf16.gmra.mrb[0].mxu0 %v1865
        %v4652 = vpop.f32.mrb[0].mxu0
        %v4653 = vadd.f32 %v1884, %v4652
        %v4654 = vpop.f32.mrb[0].mxu0
        %v4655 = vadd.f32 %v1888, %v4654
        %v4656 = vpop.f32.mrb[0].mxu0
        %v4657 = vpop.f32.mrb[0].mxu0
        %4658 = vdwg.mxu0
        %4659 = vmatprep.subr.bf16.mxu0 %v2920
        %4660 = vmatpush1.bf16.msra.mxu0 %v2919
        %4661 = vmatprep.subr.bf16.mxu0 %v2924
        %4662 = vmatpush1.bf16.msra.mxu0 %v2923
        %4663 = vmatprep.subr.bf16.mxu0 %v2928
        %4664 = vmatpush1.bf16.msra.mxu0 %v2927
        %4665 = vmatprep.subr.bf16.mxu0 %v2932
        %4666 = vmatpush1.bf16.msra.mxu0 %v2931
        %4667 = vmatprep.subr.bf16.mxu0 %v2936
        %4668 = vmatpush1.bf16.msra.mxu0 %v2935
        %4669 = vmatprep.subr.bf16.mxu0 %v2940
        %4670 = vmatpush1.bf16.msra.mxu0 %v2939
        %4671 = vmatprep.subr.bf16.mxu0 %v2944
        %4672 = vmatpush1.bf16.msra.mxu0 %v2943
        %4673 = vmatprep.subr.bf16.mxu0 %v2948
        %4674 = vmatpush1.bf16.msra.mxu0 %v2947
        %4675 = vmatprep.subr.bf16.mxu0 %v2952
        %4676 = vmatpush1.bf16.msra.mxu0 %v2951
        %4677 = vmatprep.subr.bf16.mxu0 %v2956
        %4678 = vmatpush1.bf16.msra.mxu0 %v2955
        %4679 = vmatprep.subr.bf16.mxu0 %v2960
        %4680 = vmatpush1.bf16.msra.mxu0 %v2959
        %4681 = vmatprep.subr.bf16.mxu0 %v2964
        %4682 = vmatpush1.bf16.msra.mxu0 %v2963
        %4683 = vmatprep.subr.bf16.mxu0 %v2968
        %4684 = vmatpush1.bf16.msra.mxu0 %v2967
        %4685 = vmatprep.subr.bf16.mxu0 %v2972
        %4686 = vmatpush1.bf16.msra.mxu0 %v2971
        %4687 = vmatprep.subr.bf16.mxu0 %v2976
        %4688 = vmatpush1.bf16.msra.mxu0 %v2975
        %4689 = vmatprep.subr.bf16.mxu0 %v2980
        %4690 = vmatpush1.bf16.msra.mxu0 %v2979
        %4691 = vmatprep.mubr.bf16.mxu0 %v1842
        %4692 = vmatmul.mubr.bf16.gmra.mrb[0].mxu0 %v1841
        %v4693 = vpop.f32.mrb[0].mxu0
        %v4694 = vadd.f32 %v4623, %v4693
        %v4695 = vpop.f32.mrb[0].mxu0
        %v4696 = vadd.f32 %v4625, %v4695
        %v4697 = vpop.f32.mrb[0].mxu0
        %v4698 = vadd.f32 %v4627, %v4697
        %v4699 = vpop.f32.mrb[0].mxu0
        %v4700 = vadd.f32 %v4629, %v4699
        %4701 = vmatprep.mubr.bf16.mxu0 %v1850
        %4702 = vmatmul.mubr.bf16.gmra.mrb[0].mxu0 %v1849
        %v4703 = vpop.f32.mrb[0].mxu0
        %v4704 = vadd.f32 %v4633, %v4703
        %v4705 = vpop.f32.mrb[0].mxu0
        %v4706 = vadd.f32 %v4635, %v4705
        %v4707 = vpop.f32.mrb[0].mxu0
        %v4708 = vadd.f32 %v4637, %v4707
        %v4709 = vpop.f32.mrb[0].mxu0
        %v4710 = vadd.f32 %v4639, %v4709
        %4711 = vmatprep.mubr.bf16.mxu0 %v1858
        %4712 = vmatmul.mubr.bf16.gmra.mrb[0].mxu0 %v1857
        %v4713 = vpop.f32.mrb[0].mxu0
        %v4714 = vadd.f32 %v4643, %v4713
        %v4715 = vpop.f32.mrb[0].mxu0
        %v4716 = vadd.f32 %v4645, %v4715
        %v4717 = vpop.f32.mrb[0].mxu0
        %v4718 = vadd.f32 %v4647, %v4717
        %v4719 = vpop.f32.mrb[0].mxu0
        %v4720 = vadd.f32 %v4649, %v4719
        %4721 = vmatprep.mubr.bf16.mxu0 %v1868
        %4722 = vmatmul.mubr.bf16.gmra.mrb[0].mxu0 %v1867
        %v4723 = vpop.f32.mrb[0].mxu0
        %v4724 = vadd.f32 %v4653, %v4723
        %v4725 = vpop.f32.mrb[0].mxu0
        %v4726 = vadd.f32 %v4655, %v4725
        %v4727 = vpop.f32.mrb[0].mxu0
        %v4728 = vpop.f32.mrb[0].mxu0
        %4729 = vdwg.mxu0
        %4730 = vmatprep.subr.bf16.mxu0 %v2984
        %4731 = vmatpush1.bf16.msra.mxu0 %v2983
        %4732 = vmatprep.subr.bf16.mxu0 %v2988
        %4733 = vmatpush1.bf16.msra.mxu0 %v2987
        %4734 = vmatprep.subr.bf16.mxu0 %v2992
        %4735 = vmatpush1.bf16.msra.mxu0 %v2991
        %4736 = vmatprep.subr.bf16.mxu0 %v2996
        %4737 = vmatpush1.bf16.msra.mxu0 %v2995
        %4738 = vmatprep.subr.bf16.mxu0 %v3000
        %4739 = vmatpush1.bf16.msra.mxu0 %v2999
        %4740 = vmatprep.subr.bf16.mxu0 %v3004
        %4741 = vmatpush1.bf16.msra.mxu0 %v3003
        %4742 = vmatprep.subr.bf16.mxu0 %v3008
        %4743 = vmatpush1.bf16.msra.mxu0 %v3007
        %4744 = vmatprep.subr.bf16.mxu0 %v3012
        %4745 = vmatpush1.bf16.msra.mxu0 %v3011
        %4746 = vmatprep.subr.bf16.mxu0 %v3016
        %4747 = vmatpush1.bf16.msra.mxu0 %v3015
        %4748 = vmatprep.subr.bf16.mxu0 %v3020
        %4749 = vmatpush1.bf16.msra.mxu0 %v3019
        %4750 = vmatprep.subr.bf16.mxu0 %v3024
        %4751 = vmatpush1.bf16.msra.mxu0 %v3023
        %4752 = vmatprep.subr.bf16.mxu0 %v3028
        %4753 = vmatpush1.bf16.msra.mxu0 %v3027
        %4754 = vmatprep.subr.bf16.mxu0 %v3032
        %4755 = vmatpush1.bf16.msra.mxu0 %v3031
        %4756 = vmatprep.subr.bf16.mxu0 %v3036
        %4757 = vmatpush1.bf16.msra.mxu0 %v3035
        %4758 = vmatprep.subr.bf16.mxu0 %v3040
        %4759 = vmatpush1.bf16.msra.mxu0 %v3039
        %4760 = vmatprep.subr.bf16.mxu0 %v3044
        %4761 = vmatpush1.bf16.msra.mxu0 %v3043
        %4762 = vmatprep.mubr.bf16.mxu0 %v1844
        %4763 = vmatmul.mubr.bf16.gmra.mrb[0].mxu0 %v1843
        %v4764 = vpop.f32.mrb[0].mxu0
        %v4765 = vadd.f32 %v4694, %v4764
        %v4766 = vpop.f32.mrb[0].mxu0
        %v4767 = vadd.f32 %v4696, %v4766
        %v4768 = vpop.f32.mrb[0].mxu0
        %v4769 = vadd.f32 %v4698, %v4768
        %v4770 = vpop.f32.mrb[0].mxu0
        %v4771 = vadd.f32 %v4700, %v4770
        %4772 = vmatprep.mubr.bf16.mxu0 %v1852
        %4773 = vmatmul.mubr.bf16.gmra.mrb[0].mxu0 %v1851
        %v4774 = vpop.f32.mrb[0].mxu0
        %v4775 = vadd.f32 %v4704, %v4774
        %v4776 = vpop.f32.mrb[0].mxu0
        %v4777 = vadd.f32 %v4706, %v4776
        %v4778 = vpop.f32.mrb[0].mxu0
        %v4779 = vadd.f32 %v4708, %v4778
        %v4780 = vpop.f32.mrb[0].mxu0
        %v4781 = vadd.f32 %v4710, %v4780
        %4782 = vmatprep.mubr.bf16.mxu0 %v1860
        %4783 = vmatmul.mubr.bf16.gmra.mrb[0].mxu0 %v1859
        %v4784 = vpop.f32.mrb[0].mxu0
        %v4785 = vadd.f32 %v4714, %v4784
        %v4786 = vpop.f32.mrb[0].mxu0
        %v4787 = vadd.f32 %v4716, %v4786
        %v4788 = vpop.f32.mrb[0].mxu0
        %v4789 = vadd.f32 %v4718, %v4788
        %v4790 = vpop.f32.mrb[0].mxu0
        %v4791 = vadd.f32 %v4720, %v4790
        %4792 = vmatprep.mubr.bf16.mxu0 %v1870
        %4793 = vmatmul.mubr.bf16.gmra.mrb[0].mxu0 %v1869
        %v4794 = vpop.f32.mrb[0].mxu0
        %v4795 = vadd.f32 %v4724, %v4794
        %v4796 = vpop.f32.mrb[0].mxu0
        %v4797 = vadd.f32 %v4726, %v4796
        %v4798 = vpop.f32.mrb[0].mxu0
        %v4799 = vpop.f32.mrb[0].mxu0
        %4800 = vdwg.mxu0
        %4801 = vmatprep.subr.bf16.mxu0 %v3048
        %4802 = vmatpush1.bf16.msra.mxu0 %v3047
        %4803 = vmatprep.subr.bf16.mxu0 %v3052
        %4804 = vmatpush1.bf16.msra.mxu0 %v3051
        %4805 = vmatprep.subr.bf16.mxu0 %v3056
        %4806 = vmatpush1.bf16.msra.mxu0 %v3055
        %4807 = vmatprep.subr.bf16.mxu0 %v3060
        %4808 = vmatpush1.bf16.msra.mxu0 %v3059
        %4809 = vmatprep.subr.bf16.mxu0 %v3064
        %4810 = vmatpush1.bf16.msra.mxu0 %v3063
        %4811 = vmatprep.subr.bf16.mxu0 %v3068
        %4812 = vmatpush1.bf16.msra.mxu0 %v3067
        %4813 = vmatprep.subr.bf16.mxu0 %v3072
        %4814 = vmatpush1.bf16.msra.mxu0 %v3071
        %4815 = vmatprep.subr.bf16.mxu0 %v3076
        %4816 = vmatpush1.bf16.msra.mxu0 %v3075
        %4817 = vmatprep.subr.bf16.mxu0 %v3080
        %4818 = vmatpush1.bf16.msra.mxu0 %v3079
        %4819 = vmatprep.subr.bf16.mxu0 %v3084
        %4820 = vmatpush1.bf16.msra.mxu0 %v3083
        %4821 = vmatprep.subr.bf16.mxu0 %v3088
        %4822 = vmatpush1.bf16.msra.mxu0 %v3087
        %4823 = vmatprep.subr.bf16.mxu0 %v3092
        %4824 = vmatpush1.bf16.msra.mxu0 %v3091
        %4825 = vmatprep.subr.bf16.mxu0 %v3096
        %4826 = vmatpush1.bf16.msra.mxu0 %v3095
        %4827 = vmatprep.subr.bf16.mxu0 %v3100
        %4828 = vmatpush1.bf16.msra.mxu0 %v3099
        %4829 = vmatprep.subr.bf16.mxu0 %v3104
        %4830 = vmatpush1.bf16.msra.mxu0 %v3103
        %4831 = vmatprep.subr.bf16.mxu0 %v3108
        %4832 = vmatpush1.bf16.msra.mxu0 %v3107
        %4833 = vmatprep.mubr.bf16.mxu0 %v1846
        %4834 = vmatmul.mubr.bf16.gmra.mrb[0].mxu0 %v1845
        %v4835 = vpop.f32.mrb[0].mxu0
        %v4836 = vadd.f32 %v4765, %v4835
        %v4837 = vpop.f32.mrb[0].mxu0
        %v4838 = vadd.f32 %v4767, %v4837
        %v4839 = vpop.f32.mrb[0].mxu0
        %v4840 = vadd.f32 %v4769, %v4839
        %v4841 = vpop.f32.mrb[0].mxu0
        %v4842 = vadd.f32 %v4771, %v4841
        %4843 = vmatprep.mubr.bf16.mxu0 %v1854
        %4844 = vmatmul.mubr.bf16.gmra.mrb[0].mxu0 %v1853
        %v4845 = vpop.f32.mrb[0].mxu0
        %v4846 = vadd.f32 %v4775, %v4845
        %v4847 = vpop.f32.mrb[0].mxu0
        %v4848 = vadd.f32 %v4777, %v4847
        %v4849 = vpop.f32.mrb[0].mxu0
        %v4850 = vadd.f32 %v4779, %v4849
        %v4851 = vpop.f32.mrb[0].mxu0
        %v4852 = vadd.f32 %v4781, %v4851
        %4853 = vmatprep.mubr.bf16.mxu0 %v1862
        %4854 = vmatmul.mubr.bf16.gmra.mrb[0].mxu0 %v1861
        %v4855 = vpop.f32.mrb[0].mxu0
        %v4856 = vadd.f32 %v4785, %v4855
        %v4857 = vpop.f32.mrb[0].mxu0
        %v4858 = vadd.f32 %v4787, %v4857
        %v4859 = vpop.f32.mrb[0].mxu0
        %v4860 = vadd.f32 %v4789, %v4859
        %v4861 = vpop.f32.mrb[0].mxu0
        %v4862 = vadd.f32 %v4791, %v4861
        %4863 = vmatprep.mubr.bf16.mxu0 %v1871
        %4864 = vmatmul.mubr.bf16.gmra.mrb[0].mxu0 %v1871
        %v4865 = vpop.f32.mrb[0].mxu0
        %v4866 = vadd.f32 %v4795, %v4865
        %v4867 = vpop.f32.mrb[0].mxu0
        %v4868 = vadd.f32 %v4797, %v4867
        %v4869 = vpop.f32.mrb[0].mxu0
        %v4870 = vpop.f32.mrb[0].mxu0
        %4871 = vdwg.mxu0
        %4872 = vmatprep.subr.bf16.mxu0 %v3112
        %4873 = vmatpush1.bf16.msra.mxu0 %v3111
        %4874 = vmatprep.subr.bf16.mxu0 %v3116
        %4875 = vmatpush1.bf16.msra.mxu0 %v3115
        %4876 = vmatprep.subr.bf16.mxu0 %v3120
        %4877 = vmatpush1.bf16.msra.mxu0 %v3119
        %4878 = vmatprep.subr.bf16.mxu0 %v3124
        %4879 = vmatpush1.bf16.msra.mxu0 %v3123
        %4880 = vmatprep.subr.bf16.mxu0 %v3128
        %4881 = vmatpush1.bf16.msra.mxu0 %v3127
        %4882 = vmatprep.subr.bf16.mxu0 %v3132
        %4883 = vmatpush1.bf16.msra.mxu0 %v3131
        %4884 = vmatprep.subr.bf16.mxu0 %v3136
        %4885 = vmatpush1.bf16.msra.mxu0 %v3135
        %4886 = vmatprep.subr.bf16.mxu0 %v3140
        %4887 = vmatpush1.bf16.msra.mxu0 %v3139
        %4888 = vmatprep.subr.bf16.mxu0 %v3144
        %4889 = vmatpush1.bf16.msra.mxu0 %v3143
        %4890 = vmatprep.subr.bf16.mxu0 %v3148
        %4891 = vmatpush1.bf16.msra.mxu0 %v3147
        %4892 = vmatprep.subr.bf16.mxu0 %v3152
        %4893 = vmatpush1.bf16.msra.mxu0 %v3151
        %4894 = vmatprep.subr.bf16.mxu0 %v3156
        %4895 = vmatpush1.bf16.msra.mxu0 %v3155
        %4896 = vmatprep.subr.bf16.mxu0 %v3160
        %4897 = vmatpush1.bf16.msra.mxu0 %v3159
        %4898 = vmatprep.subr.bf16.mxu0 %v3164
        %4899 = vmatpush1.bf16.msra.mxu0 %v3163
        %4900 = vmatprep.subr.bf16.mxu0 %v3168
        %4901 = vmatpush1.bf16.msra.mxu0 %v3167
        %4902 = vmatprep.subr.bf16.mxu0 %v3172
        %4903 = vmatpush1.bf16.msra.mxu0 %v3171
        %4904 = vmatprep.mubr.bf16.mxu0 %v1848
        %4905 = vmatmul.mubr.bf16.gmra.mrb[0].mxu0 %v1847
        %v4906 = vpop.f32.mrb[0].mxu0
        %v4907 = vadd.f32 %v4836, %v4906
        %v4908 = vpop.f32.mrb[0].mxu0
        %v4909 = vadd.f32 %v4838, %v4908
        %v4910 = vpop.f32.mrb[0].mxu0
        %v4911 = vadd.f32 %v4840, %v4910
        %v4912 = vpop.f32.mrb[0].mxu0
        %v4913 = vadd.f32 %v4842, %v4912
        %4914 = vmatprep.mubr.bf16.mxu0 %v1856
        %4915 = vmatmul.mubr.bf16.gmra.mrb[0].mxu0 %v1855
        %v4916 = vpop.f32.mrb[0].mxu0
        %v4917 = vadd.f32 %v4846, %v4916
        %v4918 = vpop.f32.mrb[0].mxu0
        %v4919 = vadd.f32 %v4848, %v4918
        %v4920 = vpop.f32.mrb[0].mxu0
        %v4921 = vadd.f32 %v4850, %v4920
        %v4922 = vpop.f32.mrb[0].mxu0
        %v4923 = vadd.f32 %v4852, %v4922
        %4924 = vmatprep.mubr.bf16.mxu0 %v4232
        %4925 = vmatmul.mubr.bf16.gmra.mrb[0].mxu0 %v4231
        %v4926 = vpop.f32.mrb[0].mxu0
        %v4927 = vadd.f32 %v4856, %v4926
        %v4928 = vpop.f32.mrb[0].mxu0
        %v4929 = vadd.f32 %v4858, %v4928
        %v4930 = vpop.f32.mrb[0].mxu0
        %v4931 = vadd.f32 %v4860, %v4930
        %v4932 = vpop.f32.mrb[0].mxu0
        %v4933 = vadd.f32 %v4862, %v4932
        %4934 = vmatprep.mubr.bf16.mxu0 %v1871
        %4935 = vmatmul.mubr.bf16.gmra.mrb[0].mxu0 %v1871
        %v4936 = vpop.f32.mrb[0].mxu0
        %v4937 = vadd.f32 %v4866, %v4936
        %v4938 = vpop.f32.mrb[0].mxu0
        %v4939 = vadd.f32 %v4868, %v4938
        %v4940 = vpop.f32.mrb[0].mxu0
        %v4941 = vpop.f32.mrb[0].mxu0
        %4942 = vdwg.mxu0
        %v4943 = vmax.f32 %v4552, 0.0
        %v4944 = vmax.f32 %v4554, 0.0
        %v4945 = vmax.f32 %v4907, 0.0
        %v4946 = vmax.f32 %v4909, 0.0
        %v4947 = vmax.f32 %v4556, 0.0
        %v4948 = vmax.f32 %v4558, 0.0
        %v4949 = vmax.f32 %v4911, 0.0
        %v4950 = vmax.f32 %v4913, 0.0
        %v4951 = vmax.f32 %v4562, 0.0
        %v4952 = vmax.f32 %v4564, 0.0
        %v4953 = vmax.f32 %v4917, 0.0
        %v4954 = vmax.f32 %v4919, 0.0
        %v4955 = vmax.f32 %v4566, 0.0
        %v4956 = vmax.f32 %v4568, 0.0
        %v4957 = vmax.f32 %v4921, 0.0
        %v4958 = vmax.f32 %v4923, 0.0
        %v4959 = vmax.f32 %v4572, 0.0
        %v4960 = vmax.f32 %v4574, 0.0
        %v4961 = vmax.f32 %v4927, 0.0
        %v4962 = vmax.f32 %v4929, 0.0
        %v4963 = vmax.f32 %v4576, 0.0
        %v4964 = vmax.f32 %v4578, 0.0
        %v4965 = vmax.f32 %v4931, 0.0
        %v4966 = vmax.f32 %v4933, 0.0
        %v4967 = vmax.f32 %v4582, 0.0
        %v4968 = vmax.f32 %v4584, 0.0
        %v4969 = vmax.f32 %v4937, 0.0
        %v4970 = vmax.f32 %v4939, 0.0
        %v4971 = vmax.f32 %v4203, %v4943
        %v4972 = vmax.f32 %v4204, %v4944
        %v4973 = vmax.f32 %v4205, %v4945
        %v4974 = vmax.f32 %v4206, %v4946
        %v4975 = vmax.f32 %v4207, %v4947
        %v4976 = vmax.f32 %v4208, %v4948
        %v4977 = vmax.f32 %v4209, %v4949
        %v4978 = vmax.f32 %v4210, %v4950
        %v4979 = vmax.f32 %v4211, %v4951
        %v4980 = vmax.f32 %v4212, %v4952
        %v4981 = vmax.f32 %v4213, %v4953
        %v4982 = vmax.f32 %v4214, %v4954
        %v4983 = vmax.f32 %v4215, %v4955
        %v4984 = vmax.f32 %v4216, %v4956
        %v4985 = vmax.f32 %v4217, %v4957
        %v4986 = vmax.f32 %v4218, %v4958
        %v4987 = vmax.f32 %v4219, %v4959
        %v4988 = vmax.f32 %v4220, %v4960
        %v4989 = vmax.f32 %v4221, %v4961
        %v4990 = vmax.f32 %v4222, %v4962
        %v4991 = vmax.f32 %v4223, %v4963
        %v4992 = vmax.f32 %v4224, %v4964
        %v4993 = vmax.f32 %v4225, %v4965
        %v4994 = vmax.f32 %v4226, %v4966
        %v4995 = vmax.f32 %v4227, %v4967
        %v4996 = vmax.f32 %v4228, %v4968
        %v4997 = vmax.f32 %v4229, %v4969
        %v4998 = vmax.f32 %v4230, %v4970
        %v4999 = vmax.f32 %v4971, %v4973
        %v5000 = vmax.f32 %v4972, %v4974
        %v5001 = vmax.f32 %v4975, %v4977
        %v5002 = vmax.f32 %v4976, %v4978
        %v5003 = vmax.f32 %v4979, %v4981
        %v5004 = vmax.f32 %v4980, %v4982
        %v5005 = vmax.f32 %v4983, %v4985
        %v5006 = vmax.f32 %v4984, %v4986
        %v5007 = vmax.f32 %v4987, %v4989
        %v5008 = vmax.f32 %v4988, %v4990
        %v5009 = vmax.f32 %v4991, %v4993
        %v5010 = vmax.f32 %v4992, %v4994
        %v5011 = vmax.f32 %v4995, %v4997
        %v5012 = vmax.f32 %v4996, %v4998
        %v5013 = vpack.c.bf16 %v4999, %v4999
        %v5014 = vpack.c.bf16 %v5000, %v5000
        %v5015 = vld [vmem:[%s5] sm:$0xf]
        %v5016 = vld [vmem:[%s5 + $0x4] sm:$0xf]
        %v5017 = vld [vmem:[%s5 + $0x8] sm:$0xf]
        %v5018 = vld [vmem:[%s5 + $0xc] sm:$0xf]
        %v5019 = vld [vmem:[%s5 + $0x10] sm:$0xf]
        %v5020 = vld [vmem:[%s5 + $0x14] sm:$0xf]
        %v5021 = vld [vmem:[%s5 + $0x18] sm:$0xf]
        %v5022 = vld [vmem:[%s5 + $0x1c] sm:$0xf]
        %v5023 = vld [vmem:[%s5 + $0x20] sm:$0xf]
        %v5024 = vld [vmem:[%s5 + $0x24] sm:$0xf]
        %v5025 = vld [vmem:[%s5 + $0x28] sm:$0xf]
        %v5026 = vld [vmem:[%s5 + $0x2c] sm:$0xf]
        %v5027 = vld [vmem:[%s5 + $0x30] sm:$0xf]
        %v5028 = vld [vmem:[%s5 + $0x34] sm:$0xf]
        %v5029 = vld [vmem:[%s5 + $0x38] sm:$0xf]
        %v5030 = vld [vmem:[%s5 + $0x3c] sm:$0xf]
        %v5031 = vld [vmem:[%s5 + $0x40] sm:$0xf]
        %v5032 = vld [vmem:[%s5 + $0x44] sm:$0xf]
        %v5033 = vld [vmem:[%s5 + $0x48] sm:$0xf]
        %v5034 = vld [vmem:[%s5 + $0x4c] sm:$0xf]
        %v5035 = vld [vmem:[%s5 + $0x50] sm:$0xf]
        %v5036 = vld [vmem:[%s5 + $0x54] sm:$0xf]
        %v5037 = vld [vmem:[%s5 + $0x58] sm:$0xf]
        %v5038 = vld [vmem:[%s5 + $0x5c] sm:$0xf]
        %v5039 = vld [vmem:[%s5 + $0x60] sm:$0xf]
        %v5040 = vld [vmem:[%s5 + $0x64] sm:$0xf]
        %v5041 = vld [vmem:[%s5 + $0x68] sm:$0xf]
        %v5042 = vld [vmem:[%s5 + $0x6c] sm:$0xf]
        %v5043 = vld [vmem:[%s5 + $0x70] sm:$0xf]
        %v5044 = vld [vmem:[%s5 + $0x74] sm:$0xf]
        %v5045 = vld [vmem:[%s5 + $0x78] sm:$0xf]
        %v5046 = vld [vmem:[%s5 + $0x7c] sm:$0xf]
        %v5047 = vpack.c.bf16 %v5001, %v5001
        %v5048 = vpack.c.bf16 %v5002, %v5002
        %s5049 = scalar_lea.vmem %s5, 128
        %v5050 = vld [vmem:[%s5049] sm:$0xf]
        %v5051 = vld [vmem:[%s5049 + $0x4] sm:$0xf]
        %v5052 = vld [vmem:[%s5049 + $0x8] sm:$0xf]
        %v5053 = vld [vmem:[%s5049 + $0xc] sm:$0xf]
        %v5054 = vld [vmem:[%s5049 + $0x10] sm:$0xf]
        %v5055 = vld [vmem:[%s5049 + $0x14] sm:$0xf]
        %v5056 = vld [vmem:[%s5049 + $0x18] sm:$0xf]
        %v5057 = vld [vmem:[%s5049 + $0x1c] sm:$0xf]
        %v5058 = vld [vmem:[%s5049 + $0x20] sm:$0xf]
        %v5059 = vld [vmem:[%s5049 + $0x24] sm:$0xf]
        %v5060 = vld [vmem:[%s5049 + $0x28] sm:$0xf]
        %v5061 = vld [vmem:[%s5049 + $0x2c] sm:$0xf]
        %v5062 = vld [vmem:[%s5049 + $0x30] sm:$0xf]
        %v5063 = vld [vmem:[%s5049 + $0x34] sm:$0xf]
        %v5064 = vld [vmem:[%s5049 + $0x38] sm:$0xf]
        %v5065 = vld [vmem:[%s5049 + $0x3c] sm:$0xf]
        %v5066 = vld [vmem:[%s5049 + $0x40] sm:$0xf]
        %v5067 = vld [vmem:[%s5049 + $0x44] sm:$0xf]
        %v5068 = vld [vmem:[%s5049 + $0x48] sm:$0xf]
        %v5069 = vld [vmem:[%s5049 + $0x4c] sm:$0xf]
        %v5070 = vld [vmem:[%s5049 + $0x50] sm:$0xf]
        %v5071 = vld [vmem:[%s5049 + $0x54] sm:$0xf]
        %v5072 = vld [vmem:[%s5049 + $0x58] sm:$0xf]
        %v5073 = vld [vmem:[%s5049 + $0x5c] sm:$0xf]
        %v5074 = vld [vmem:[%s5049 + $0x60] sm:$0xf]
        %v5075 = vld [vmem:[%s5049 + $0x64] sm:$0xf]
        %v5076 = vld [vmem:[%s5049 + $0x68] sm:$0xf]
        %v5077 = vld [vmem:[%s5049 + $0x6c] sm:$0xf]
        %v5078 = vld [vmem:[%s5049 + $0x70] sm:$0xf]
        %v5079 = vld [vmem:[%s5049 + $0x74] sm:$0xf]
        %v5080 = vld [vmem:[%s5049 + $0x78] sm:$0xf]
        %v5081 = vld [vmem:[%s5049 + $0x7c] sm:$0xf]
        %v5114 = vunpack.c.l.b16 %v5050
        %v5115 = vunpack.c.l.b16 %v5051
        %v5116 = vunpack.c.l.b16 %v5052
        %v5117 = vunpack.c.l.b16 %v5053
        %v5118 = vunpack.c.l.b16 %v5054
        %v5119 = vunpack.c.l.b16 %v5055
        %v5120 = vunpack.c.l.b16 %v5056
        %v5121 = vunpack.c.l.b16 %v5057
        %v5122 = vunpack.c.l.b16 %v5058
        %v5123 = vunpack.c.l.b16 %v5059
        %v5124 = vunpack.c.l.b16 %v5060
        %v5125 = vunpack.c.l.b16 %v5061
        %v5126 = vunpack.c.l.b16 %v5062
        %v5127 = vunpack.c.l.b16 %v5063
        %v5128 = vunpack.c.l.b16 %v5064
        %v5129 = vunpack.c.l.b16 %v5065
        %v5130 = vunpack.c.l.b16 %v5066
        %v5131 = vunpack.c.l.b16 %v5067
        %v5132 = vunpack.c.l.b16 %v5068
        %v5133 = vunpack.c.l.b16 %v5069
        %v5134 = vunpack.c.l.b16 %v5070
        %v5135 = vunpack.c.l.b16 %v5071
        %v5136 = vunpack.c.l.b16 %v5072
        %v5137 = vunpack.c.l.b16 %v5073
        %v5138 = vunpack.c.l.b16 %v5074
        %v5139 = vunpack.c.l.b16 %v5075
        %v5140 = vunpack.c.l.b16 %v5076
        %v5141 = vunpack.c.l.b16 %v5077
        %v5142 = vunpack.c.l.b16 %v5078
        %v5143 = vunpack.c.l.b16 %v5079
        %v5144 = vunpack.c.l.b16 %v5080
        %v5145 = vunpack.c.l.b16 %v5081
        %v5146 = vpack.c.b16 %v5115, %v5114
        %v5147 = vpack.c.b16 %v5117, %v5116
        %v5148 = vpack.c.b16 %v5119, %v5118
        %v5149 = vpack.c.b16 %v5121, %v5120
        %v5150 = vpack.c.b16 %v5123, %v5122
        %v5151 = vpack.c.b16 %v5125, %v5124
        %v5152 = vpack.c.b16 %v5127, %v5126
        %v5153 = vpack.c.b16 %v5129, %v5128
        %v5154 = vpack.c.b16 %v5131, %v5130
        %v5155 = vpack.c.b16 %v5133, %v5132
        %v5156 = vpack.c.b16 %v5135, %v5134
        %v5157 = vpack.c.b16 %v5137, %v5136
        %v5158 = vpack.c.b16 %v5139, %v5138
        %v5159 = vpack.c.b16 %v5141, %v5140
        %v5160 = vpack.c.b16 %v5143, %v5142
        %v5161 = vpack.c.b16 %v5145, %v5144
        %5178 = vmatprep.subr.bf16.mxu0 0
        %5179 = vmatpush1.bf16.msra.mxu0 %v5146
        %5180 = vmatprep.subr.bf16.mxu0 0
        %5181 = vmatpush1.bf16.msra.mxu0 %v5147
        %5182 = vmatprep.subr.bf16.mxu0 0
        %5183 = vmatpush1.bf16.msra.mxu0 %v5148
        %5184 = vmatprep.subr.bf16.mxu0 0
        %5185 = vmatpush1.bf16.msra.mxu0 %v5149
        %5186 = vmatprep.subr.bf16.mxu0 0
        %5187 = vmatpush1.bf16.msra.mxu0 %v5150
        %5188 = vmatprep.subr.bf16.mxu0 0
        %5189 = vmatpush1.bf16.msra.mxu0 %v5151
        %5190 = vmatprep.subr.bf16.mxu0 0
        %5191 = vmatpush1.bf16.msra.mxu0 %v5152
        %5192 = vmatprep.subr.bf16.mxu0 0
        %5193 = vmatpush1.bf16.msra.mxu0 %v5153
        %5194 = vmatprep.subr.bf16.mxu0 0
        %5195 = vmatpush1.bf16.msra.mxu0 %v5154
        %5196 = vmatprep.subr.bf16.mxu0 0
        %5197 = vmatpush1.bf16.msra.mxu0 %v5155
        %5198 = vmatprep.subr.bf16.mxu0 0
        %5199 = vmatpush1.bf16.msra.mxu0 %v5156
        %5200 = vmatprep.subr.bf16.mxu0 0
        %5201 = vmatpush1.bf16.msra.mxu0 %v5157
        %5202 = vmatprep.subr.bf16.mxu0 0
        %5203 = vmatpush1.bf16.msra.mxu0 %v5158
        %5204 = vmatprep.subr.bf16.mxu0 0
        %5205 = vmatpush1.bf16.msra.mxu0 %v5159
        %5206 = vmatprep.subr.bf16.mxu0 0
        %5207 = vmatpush1.bf16.msra.mxu0 %v5160
        %5208 = vmatprep.subr.bf16.mxu0 0
        %5209 = vmatpush1.bf16.msra.mxu0 %v5161
        %5210 = vmatprep.mubr.bf16.mxu0 %v5048
        %5211 = vmatmul.mubr.bf16.gmra.mrb[0].mxu0 %v5047
        %v5212 = vpop.f32.mrb[0].mxu0
        %v5213 = vadd.f32 0.0, %v5212
        %v5214 = vpop.f32.mrb[0].mxu0
        %v5215 = vpop.f32.mrb[0].mxu0
        %v5216 = vpop.f32.mrb[0].mxu0
        %5217 = vdwg.mxu0
        %v5250 = vunpack.c.l.b16 %v5015
        %v5251 = vunpack.c.l.b16 %v5016
        %v5252 = vunpack.c.l.b16 %v5017
        %v5253 = vunpack.c.l.b16 %v5018
        %v5254 = vunpack.c.l.b16 %v5019
        %v5255 = vunpack.c.l.b16 %v5020
        %v5256 = vunpack.c.l.b16 %v5021
        %v5257 = vunpack.c.l.b16 %v5022
        %v5258 = vunpack.c.l.b16 %v5023
        %v5259 = vunpack.c.l.b16 %v5024
        %v5260 = vunpack.c.l.b16 %v5025
        %v5261 = vunpack.c.l.b16 %v5026
        %v5262 = vunpack.c.l.b16 %v5027
        %v5263 = vunpack.c.l.b16 %v5028
        %v5264 = vunpack.c.l.b16 %v5029
        %v5265 = vunpack.c.l.b16 %v5030
        %v5266 = vunpack.c.l.b16 %v5031
        %v5267 = vunpack.c.l.b16 %v5032
        %v5268 = vunpack.c.l.b16 %v5033
        %v5269 = vunpack.c.l.b16 %v5034
        %v5270 = vunpack.c.l.b16 %v5035
        %v5271 = vunpack.c.l.b16 %v5036
        %v5272 = vunpack.c.l.b16 %v5037
        %v5273 = vunpack.c.l.b16 %v5038
        %v5274 = vunpack.c.l.b16 %v5039
        %v5275 = vunpack.c.l.b16 %v5040
        %v5276 = vunpack.c.l.b16 %v5041
        %v5277 = vunpack.c.l.b16 %v5042
        %v5278 = vunpack.c.l.b16 %v5043
        %v5279 = vunpack.c.l.b16 %v5044
        %v5280 = vunpack.c.l.b16 %v5045
        %v5281 = vunpack.c.l.b16 %v5046
        %v5282 = vpack.c.b16 %v5251, %v5250
        %v5283 = vpack.c.b16 %v5253, %v5252
        %v5284 = vpack.c.b16 %v5255, %v5254
        %v5285 = vpack.c.b16 %v5257, %v5256
        %v5286 = vpack.c.b16 %v5259, %v5258
        %v5287 = vpack.c.b16 %v5261, %v5260
        %v5288 = vpack.c.b16 %v5263, %v5262
        %v5289 = vpack.c.b16 %v5265, %v5264
        %v5290 = vpack.c.b16 %v5267, %v5266
        %v5291 = vpack.c.b16 %v5269, %v5268
        %v5292 = vpack.c.b16 %v5271, %v5270
        %v5293 = vpack.c.b16 %v5273, %v5272
        %v5294 = vpack.c.b16 %v5275, %v5274
        %v5295 = vpack.c.b16 %v5277, %v5276
        %v5296 = vpack.c.b16 %v5279, %v5278
        %v5297 = vpack.c.b16 %v5281, %v5280
        %5314 = vmatprep.subr.bf16.mxu0 0
        %5315 = vmatpush1.bf16.msra.mxu0 %v5282
        %5316 = vmatprep.subr.bf16.mxu0 0
        %5317 = vmatpush1.bf16.msra.mxu0 %v5283
        %5318 = vmatprep.subr.bf16.mxu0 0
        %5319 = vmatpush1.bf16.msra.mxu0 %v5284
        %5320 = vmatprep.subr.bf16.mxu0 0
        %5321 = vmatpush1.bf16.msra.mxu0 %v5285
        %5322 = vmatprep.subr.bf16.mxu0 0
        %5323 = vmatpush1.bf16.msra.mxu0 %v5286
        %5324 = vmatprep.subr.bf16.mxu0 0
        %5325 = vmatpush1.bf16.msra.mxu0 %v5287
        %5326 = vmatprep.subr.bf16.mxu0 0
        %5327 = vmatpush1.bf16.msra.mxu0 %v5288
        %5328 = vmatprep.subr.bf16.mxu0 0
        %5329 = vmatpush1.bf16.msra.mxu0 %v5289
        %5330 = vmatprep.subr.bf16.mxu0 0
        %5331 = vmatpush1.bf16.msra.mxu0 %v5290
        %5332 = vmatprep.subr.bf16.mxu0 0
        %5333 = vmatpush1.bf16.msra.mxu0 %v5291
        %5334 = vmatprep.subr.bf16.mxu0 0
        %5335 = vmatpush1.bf16.msra.mxu0 %v5292
        %5336 = vmatprep.subr.bf16.mxu0 0
        %5337 = vmatpush1.bf16.msra.mxu0 %v5293
        %5338 = vmatprep.subr.bf16.mxu0 0
        %5339 = vmatpush1.bf16.msra.mxu0 %v5294
        %5340 = vmatprep.subr.bf16.mxu0 0
        %5341 = vmatpush1.bf16.msra.mxu0 %v5295
        %5342 = vmatprep.subr.bf16.mxu0 0
        %5343 = vmatpush1.bf16.msra.mxu0 %v5296
        %5344 = vmatprep.subr.bf16.mxu0 0
        %5345 = vmatpush1.bf16.msra.mxu0 %v5297
        %5346 = vmatprep.mubr.bf16.mxu0 %v5014
        %5347 = vmatmul.mubr.bf16.gmra.mrb[0].mxu0 %v5013
        %v5348 = vpop.f32.mrb[0].mxu0
        %v5349 = vadd.f32 %v5213, %v5348
        %v5350 = vpop.f32.mrb[0].mxu0
        %v5351 = vpop.f32.mrb[0].mxu0
        %v5352 = vpop.f32.mrb[0].mxu0
        %5353 = vdwg.mxu0
        %v5354 = vpack.c.bf16 %v5003, %v5003
        %v5355 = vpack.c.bf16 %v5004, %v5004
        %s5356 = scalar_lea.vmem %s5, 256
        %v5357 = vld [vmem:[%s5356] sm:$0xf]
        %v5358 = vld [vmem:[%s5356 + $0x4] sm:$0xf]
        %v5359 = vld [vmem:[%s5356 + $0x8] sm:$0xf]
        %v5360 = vld [vmem:[%s5356 + $0xc] sm:$0xf]
        %v5361 = vld [vmem:[%s5356 + $0x10] sm:$0xf]
        %v5362 = vld [vmem:[%s5356 + $0x14] sm:$0xf]
        %v5363 = vld [vmem:[%s5356 + $0x18] sm:$0xf]
        %v5364 = vld [vmem:[%s5356 + $0x1c] sm:$0xf]
        %v5365 = vld [vmem:[%s5356 + $0x20] sm:$0xf]
        %v5366 = vld [vmem:[%s5356 + $0x24] sm:$0xf]
        %v5367 = vld [vmem:[%s5356 + $0x28] sm:$0xf]
        %v5368 = vld [vmem:[%s5356 + $0x2c] sm:$0xf]
        %v5369 = vld [vmem:[%s5356 + $0x30] sm:$0xf]
        %v5370 = vld [vmem:[%s5356 + $0x34] sm:$0xf]
        %v5371 = vld [vmem:[%s5356 + $0x38] sm:$0xf]
        %v5372 = vld [vmem:[%s5356 + $0x3c] sm:$0xf]
        %v5373 = vld [vmem:[%s5356 + $0x40] sm:$0xf]
        %v5374 = vld [vmem:[%s5356 + $0x44] sm:$0xf]
        %v5375 = vld [vmem:[%s5356 + $0x48] sm:$0xf]
        %v5376 = vld [vmem:[%s5356 + $0x4c] sm:$0xf]
        %v5377 = vld [vmem:[%s5356 + $0x50] sm:$0xf]
        %v5378 = vld [vmem:[%s5356 + $0x54] sm:$0xf]
        %v5379 = vld [vmem:[%s5356 + $0x58] sm:$0xf]
        %v5380 = vld [vmem:[%s5356 + $0x5c] sm:$0xf]
        %v5381 = vld [vmem:[%s5356 + $0x60] sm:$0xf]
        %v5382 = vld [vmem:[%s5356 + $0x64] sm:$0xf]
        %v5383 = vld [vmem:[%s5356 + $0x68] sm:$0xf]
        %v5384 = vld [vmem:[%s5356 + $0x6c] sm:$0xf]
        %v5385 = vld [vmem:[%s5356 + $0x70] sm:$0xf]
        %v5386 = vld [vmem:[%s5356 + $0x74] sm:$0xf]
        %v5387 = vld [vmem:[%s5356 + $0x78] sm:$0xf]
        %v5388 = vld [vmem:[%s5356 + $0x7c] sm:$0xf]
        %v5421 = vunpack.c.l.b16 %v5357
        %v5422 = vunpack.c.l.b16 %v5358
        %v5423 = vunpack.c.l.b16 %v5359
        %v5424 = vunpack.c.l.b16 %v5360
        %v5425 = vunpack.c.l.b16 %v5361
        %v5426 = vunpack.c.l.b16 %v5362
        %v5427 = vunpack.c.l.b16 %v5363
        %v5428 = vunpack.c.l.b16 %v5364
        %v5429 = vunpack.c.l.b16 %v5365
        %v5430 = vunpack.c.l.b16 %v5366
        %v5431 = vunpack.c.l.b16 %v5367
        %v5432 = vunpack.c.l.b16 %v5368
        %v5433 = vunpack.c.l.b16 %v5369
        %v5434 = vunpack.c.l.b16 %v5370
        %v5435 = vunpack.c.l.b16 %v5371
        %v5436 = vunpack.c.l.b16 %v5372
        %v5437 = vunpack.c.l.b16 %v5373
        %v5438 = vunpack.c.l.b16 %v5374
        %v5439 = vunpack.c.l.b16 %v5375
        %v5440 = vunpack.c.l.b16 %v5376
        %v5441 = vunpack.c.l.b16 %v5377
        %v5442 = vunpack.c.l.b16 %v5378
        %v5443 = vunpack.c.l.b16 %v5379
        %v5444 = vunpack.c.l.b16 %v5380
        %v5445 = vunpack.c.l.b16 %v5381
        %v5446 = vunpack.c.l.b16 %v5382
        %v5447 = vunpack.c.l.b16 %v5383
        %v5448 = vunpack.c.l.b16 %v5384
        %v5449 = vunpack.c.l.b16 %v5385
        %v5450 = vunpack.c.l.b16 %v5386
        %v5451 = vunpack.c.l.b16 %v5387
        %v5452 = vunpack.c.l.b16 %v5388
        %v5453 = vpack.c.b16 %v5422, %v5421
        %v5454 = vpack.c.b16 %v5424, %v5423
        %v5455 = vpack.c.b16 %v5426, %v5425
        %v5456 = vpack.c.b16 %v5428, %v5427
        %v5457 = vpack.c.b16 %v5430, %v5429
        %v5458 = vpack.c.b16 %v5432, %v5431
        %v5459 = vpack.c.b16 %v5434, %v5433
        %v5460 = vpack.c.b16 %v5436, %v5435
        %v5461 = vpack.c.b16 %v5438, %v5437
        %v5462 = vpack.c.b16 %v5440, %v5439
        %v5463 = vpack.c.b16 %v5442, %v5441
        %v5464 = vpack.c.b16 %v5444, %v5443
        %v5465 = vpack.c.b16 %v5446, %v5445
        %v5466 = vpack.c.b16 %v5448, %v5447
        %v5467 = vpack.c.b16 %v5450, %v5449
        %v5468 = vpack.c.b16 %v5452, %v5451
        %5485 = vmatprep.subr.bf16.mxu0 0
        %5486 = vmatpush1.bf16.msra.mxu0 %v5453
        %5487 = vmatprep.subr.bf16.mxu0 0
        %5488 = vmatpush1.bf16.msra.mxu0 %v5454
        %5489 = vmatprep.subr.bf16.mxu0 0
        %5490 = vmatpush1.bf16.msra.mxu0 %v5455
        %5491 = vmatprep.subr.bf16.mxu0 0
        %5492 = vmatpush1.bf16.msra.mxu0 %v5456
        %5493 = vmatprep.subr.bf16.mxu0 0
        %5494 = vmatpush1.bf16.msra.mxu0 %v5457
        %5495 = vmatprep.subr.bf16.mxu0 0
        %5496 = vmatpush1.bf16.msra.mxu0 %v5458
        %5497 = vmatprep.subr.bf16.mxu0 0
        %5498 = vmatpush1.bf16.msra.mxu0 %v5459
        %5499 = vmatprep.subr.bf16.mxu0 0
        %5500 = vmatpush1.bf16.msra.mxu0 %v5460
        %5501 = vmatprep.subr.bf16.mxu0 0
        %5502 = vmatpush1.bf16.msra.mxu0 %v5461
        %5503 = vmatprep.subr.bf16.mxu0 0
        %5504 = vmatpush1.bf16.msra.mxu0 %v5462
        %5505 = vmatprep.subr.bf16.mxu0 0
        %5506 = vmatpush1.bf16.msra.mxu0 %v5463
        %5507 = vmatprep.subr.bf16.mxu0 0
        %5508 = vmatpush1.bf16.msra.mxu0 %v5464
        %5509 = vmatprep.subr.bf16.mxu0 0
        %5510 = vmatpush1.bf16.msra.mxu0 %v5465
        %5511 = vmatprep.subr.bf16.mxu0 0
        %5512 = vmatpush1.bf16.msra.mxu0 %v5466
        %5513 = vmatprep.subr.bf16.mxu0 0
        %5514 = vmatpush1.bf16.msra.mxu0 %v5467
        %5515 = vmatprep.subr.bf16.mxu0 0
        %5516 = vmatpush1.bf16.msra.mxu0 %v5468
        %5517 = vmatprep.mubr.bf16.mxu0 %v5355
        %5518 = vmatmul.mubr.bf16.gmra.mrb[0].mxu0 %v5354
        %v5519 = vpop.f32.mrb[0].mxu0
        %v5520 = vadd.f32 0.0, %v5519
        %v5521 = vpop.f32.mrb[0].mxu0
        %v5522 = vpop.f32.mrb[0].mxu0
        %v5523 = vpop.f32.mrb[0].mxu0
        %5524 = vdwg.mxu0
        %v5525 = vadd.f32 %v5349, %v5520
        %v5526 = vpack.c.bf16 %v5005, %v5005
        %v5527 = vpack.c.bf16 %v5006, %v5006
        %s5528 = scalar_lea.vmem %s5, 384
        %v5529 = vld [vmem:[%s5528] sm:$0xf]
        %v5530 = vld [vmem:[%s5528 + $0x4] sm:$0xf]
        %v5531 = vld [vmem:[%s5528 + $0x8] sm:$0xf]
        %v5532 = vld [vmem:[%s5528 + $0xc] sm:$0xf]
        %v5533 = vld [vmem:[%s5528 + $0x10] sm:$0xf]
        %v5534 = vld [vmem:[%s5528 + $0x14] sm:$0xf]
        %v5535 = vld [vmem:[%s5528 + $0x18] sm:$0xf]
        %v5536 = vld [vmem:[%s5528 + $0x1c] sm:$0xf]
        %v5537 = vld [vmem:[%s5528 + $0x20] sm:$0xf]
        %v5538 = vld [vmem:[%s5528 + $0x24] sm:$0xf]
        %v5539 = vld [vmem:[%s5528 + $0x28] sm:$0xf]
        %v5540 = vld [vmem:[%s5528 + $0x2c] sm:$0xf]
        %v5541 = vld [vmem:[%s5528 + $0x30] sm:$0xf]
        %v5542 = vld [vmem:[%s5528 + $0x34] sm:$0xf]
        %v5543 = vld [vmem:[%s5528 + $0x38] sm:$0xf]
        %v5544 = vld [vmem:[%s5528 + $0x3c] sm:$0xf]
        %v5545 = vld [vmem:[%s5528 + $0x40] sm:$0xf]
        %v5546 = vld [vmem:[%s5528 + $0x44] sm:$0xf]
        %v5547 = vld [vmem:[%s5528 + $0x48] sm:$0xf]
        %v5548 = vld [vmem:[%s5528 + $0x4c] sm:$0xf]
        %v5549 = vld [vmem:[%s5528 + $0x50] sm:$0xf]
        %v5550 = vld [vmem:[%s5528 + $0x54] sm:$0xf]
        %v5551 = vld [vmem:[%s5528 + $0x58] sm:$0xf]
        %v5552 = vld [vmem:[%s5528 + $0x5c] sm:$0xf]
        %v5553 = vld [vmem:[%s5528 + $0x60] sm:$0xf]
        %v5554 = vld [vmem:[%s5528 + $0x64] sm:$0xf]
        %v5555 = vld [vmem:[%s5528 + $0x68] sm:$0xf]
        %v5556 = vld [vmem:[%s5528 + $0x6c] sm:$0xf]
        %v5557 = vld [vmem:[%s5528 + $0x70] sm:$0xf]
        %v5558 = vld [vmem:[%s5528 + $0x74] sm:$0xf]
        %v5559 = vld [vmem:[%s5528 + $0x78] sm:$0xf]
        %v5560 = vld [vmem:[%s5528 + $0x7c] sm:$0xf]
        %v5593 = vunpack.c.l.b16 %v5529
        %v5594 = vunpack.c.l.b16 %v5530
        %v5595 = vunpack.c.l.b16 %v5531
        %v5596 = vunpack.c.l.b16 %v5532
        %v5597 = vunpack.c.l.b16 %v5533
        %v5598 = vunpack.c.l.b16 %v5534
        %v5599 = vunpack.c.l.b16 %v5535
        %v5600 = vunpack.c.l.b16 %v5536
        %v5601 = vunpack.c.l.b16 %v5537
        %v5602 = vunpack.c.l.b16 %v5538
        %v5603 = vunpack.c.l.b16 %v5539
        %v5604 = vunpack.c.l.b16 %v5540
        %v5605 = vunpack.c.l.b16 %v5541
        %v5606 = vunpack.c.l.b16 %v5542
        %v5607 = vunpack.c.l.b16 %v5543
        %v5608 = vunpack.c.l.b16 %v5544
        %v5609 = vunpack.c.l.b16 %v5545
        %v5610 = vunpack.c.l.b16 %v5546
        %v5611 = vunpack.c.l.b16 %v5547
        %v5612 = vunpack.c.l.b16 %v5548
        %v5613 = vunpack.c.l.b16 %v5549
        %v5614 = vunpack.c.l.b16 %v5550
        %v5615 = vunpack.c.l.b16 %v5551
        %v5616 = vunpack.c.l.b16 %v5552
        %v5617 = vunpack.c.l.b16 %v5553
        %v5618 = vunpack.c.l.b16 %v5554
        %v5619 = vunpack.c.l.b16 %v5555
        %v5620 = vunpack.c.l.b16 %v5556
        %v5621 = vunpack.c.l.b16 %v5557
        %v5622 = vunpack.c.l.b16 %v5558
        %v5623 = vunpack.c.l.b16 %v5559
        %v5624 = vunpack.c.l.b16 %v5560
        %v5625 = vpack.c.b16 %v5594, %v5593
        %v5626 = vpack.c.b16 %v5596, %v5595
        %v5627 = vpack.c.b16 %v5598, %v5597
        %v5628 = vpack.c.b16 %v5600, %v5599
        %v5629 = vpack.c.b16 %v5602, %v5601
        %v5630 = vpack.c.b16 %v5604, %v5603
        %v5631 = vpack.c.b16 %v5606, %v5605
        %v5632 = vpack.c.b16 %v5608, %v5607
        %v5633 = vpack.c.b16 %v5610, %v5609
        %v5634 = vpack.c.b16 %v5612, %v5611
        %v5635 = vpack.c.b16 %v5614, %v5613
        %v5636 = vpack.c.b16 %v5616, %v5615
        %v5637 = vpack.c.b16 %v5618, %v5617
        %v5638 = vpack.c.b16 %v5620, %v5619
        %v5639 = vpack.c.b16 %v5622, %v5621
        %v5640 = vpack.c.b16 %v5624, %v5623
        %5657 = vmatprep.subr.bf16.mxu0 0
        %5658 = vmatpush1.bf16.msra.mxu0 %v5625
        %5659 = vmatprep.subr.bf16.mxu0 0
        %5660 = vmatpush1.bf16.msra.mxu0 %v5626
        %5661 = vmatprep.subr.bf16.mxu0 0
        %5662 = vmatpush1.bf16.msra.mxu0 %v5627
        %5663 = vmatprep.subr.bf16.mxu0 0
        %5664 = vmatpush1.bf16.msra.mxu0 %v5628
        %5665 = vmatprep.subr.bf16.mxu0 0
        %5666 = vmatpush1.bf16.msra.mxu0 %v5629
        %5667 = vmatprep.subr.bf16.mxu0 0
        %5668 = vmatpush1.bf16.msra.mxu0 %v5630
        %5669 = vmatprep.subr.bf16.mxu0 0
        %5670 = vmatpush1.bf16.msra.mxu0 %v5631
        %5671 = vmatprep.subr.bf16.mxu0 0
        %5672 = vmatpush1.bf16.msra.mxu0 %v5632
        %5673 = vmatprep.subr.bf16.mxu0 0
        %5674 = vmatpush1.bf16.msra.mxu0 %v5633
        %5675 = vmatprep.subr.bf16.mxu0 0
        %5676 = vmatpush1.bf16.msra.mxu0 %v5634
        %5677 = vmatprep.subr.bf16.mxu0 0
        %5678 = vmatpush1.bf16.msra.mxu0 %v5635
        %5679 = vmatprep.subr.bf16.mxu0 0
        %5680 = vmatpush1.bf16.msra.mxu0 %v5636
        %5681 = vmatprep.subr.bf16.mxu0 0
        %5682 = vmatpush1.bf16.msra.mxu0 %v5637
        %5683 = vmatprep.subr.bf16.mxu0 0
        %5684 = vmatpush1.bf16.msra.mxu0 %v5638
        %5685 = vmatprep.subr.bf16.mxu0 0
        %5686 = vmatpush1.bf16.msra.mxu0 %v5639
        %5687 = vmatprep.subr.bf16.mxu0 0
        %5688 = vmatpush1.bf16.msra.mxu0 %v5640
        %5689 = vmatprep.mubr.bf16.mxu0 %v5527
        %5690 = vmatmul.mubr.bf16.gmra.mrb[0].mxu0 %v5526
        %v5691 = vpop.f32.mrb[0].mxu0
        %v5692 = vadd.f32 0.0, %v5691
        %v5693 = vpop.f32.mrb[0].mxu0
        %v5694 = vpop.f32.mrb[0].mxu0
        %v5695 = vpop.f32.mrb[0].mxu0
        %5696 = vdwg.mxu0
        %v5697 = vadd.f32 %v5525, %v5692
        %v5698 = vpack.c.bf16 %v5007, %v5007
        %v5699 = vpack.c.bf16 %v5008, %v5008
        %s5700 = scalar_lea.vmem %s5, 512
        %v5701 = vld [vmem:[%s5700] sm:$0xf]
        %v5702 = vld [vmem:[%s5700 + $0x4] sm:$0xf]
        %v5703 = vld [vmem:[%s5700 + $0x8] sm:$0xf]
        %v5704 = vld [vmem:[%s5700 + $0xc] sm:$0xf]
        %v5705 = vld [vmem:[%s5700 + $0x10] sm:$0xf]
        %v5706 = vld [vmem:[%s5700 + $0x14] sm:$0xf]
        %v5707 = vld [vmem:[%s5700 + $0x18] sm:$0xf]
        %v5708 = vld [vmem:[%s5700 + $0x1c] sm:$0xf]
        %v5709 = vld [vmem:[%s5700 + $0x20] sm:$0xf]
        %v5710 = vld [vmem:[%s5700 + $0x24] sm:$0xf]
        %v5711 = vld [vmem:[%s5700 + $0x28] sm:$0xf]
        %v5712 = vld [vmem:[%s5700 + $0x2c] sm:$0xf]
        %v5713 = vld [vmem:[%s5700 + $0x30] sm:$0xf]
        %v5714 = vld [vmem:[%s5700 + $0x34] sm:$0xf]
        %v5715 = vld [vmem:[%s5700 + $0x38] sm:$0xf]
        %v5716 = vld [vmem:[%s5700 + $0x3c] sm:$0xf]
        %v5717 = vld [vmem:[%s5700 + $0x40] sm:$0xf]
        %v5718 = vld [vmem:[%s5700 + $0x44] sm:$0xf]
        %v5719 = vld [vmem:[%s5700 + $0x48] sm:$0xf]
        %v5720 = vld [vmem:[%s5700 + $0x4c] sm:$0xf]
        %v5721 = vld [vmem:[%s5700 + $0x50] sm:$0xf]
        %v5722 = vld [vmem:[%s5700 + $0x54] sm:$0xf]
        %v5723 = vld [vmem:[%s5700 + $0x58] sm:$0xf]
        %v5724 = vld [vmem:[%s5700 + $0x5c] sm:$0xf]
        %v5725 = vld [vmem:[%s5700 + $0x60] sm:$0xf]
        %v5726 = vld [vmem:[%s5700 + $0x64] sm:$0xf]
        %v5727 = vld [vmem:[%s5700 + $0x68] sm:$0xf]
        %v5728 = vld [vmem:[%s5700 + $0x6c] sm:$0xf]
        %v5729 = vld [vmem:[%s5700 + $0x70] sm:$0xf]
        %v5730 = vld [vmem:[%s5700 + $0x74] sm:$0xf]
        %v5731 = vld [vmem:[%s5700 + $0x78] sm:$0xf]
        %v5732 = vld [vmem:[%s5700 + $0x7c] sm:$0xf]
        %v5765 = vunpack.c.l.b16 %v5701
        %v5766 = vunpack.c.l.b16 %v5702
        %v5767 = vunpack.c.l.b16 %v5703
        %v5768 = vunpack.c.l.b16 %v5704
        %v5769 = vunpack.c.l.b16 %v5705
        %v5770 = vunpack.c.l.b16 %v5706
        %v5771 = vunpack.c.l.b16 %v5707
        %v5772 = vunpack.c.l.b16 %v5708
        %v5773 = vunpack.c.l.b16 %v5709
        %v5774 = vunpack.c.l.b16 %v5710
        %v5775 = vunpack.c.l.b16 %v5711
        %v5776 = vunpack.c.l.b16 %v5712
        %v5777 = vunpack.c.l.b16 %v5713
        %v5778 = vunpack.c.l.b16 %v5714
        %v5779 = vunpack.c.l.b16 %v5715
        %v5780 = vunpack.c.l.b16 %v5716
        %v5781 = vunpack.c.l.b16 %v5717
        %v5782 = vunpack.c.l.b16 %v5718
        %v5783 = vunpack.c.l.b16 %v5719
        %v5784 = vunpack.c.l.b16 %v5720
        %v5785 = vunpack.c.l.b16 %v5721
        %v5786 = vunpack.c.l.b16 %v5722
        %v5787 = vunpack.c.l.b16 %v5723
        %v5788 = vunpack.c.l.b16 %v5724
        %v5789 = vunpack.c.l.b16 %v5725
        %v5790 = vunpack.c.l.b16 %v5726
        %v5791 = vunpack.c.l.b16 %v5727
        %v5792 = vunpack.c.l.b16 %v5728
        %v5793 = vunpack.c.l.b16 %v5729
        %v5794 = vunpack.c.l.b16 %v5730
        %v5795 = vunpack.c.l.b16 %v5731
        %v5796 = vunpack.c.l.b16 %v5732
        %v5797 = vpack.c.b16 %v5766, %v5765
        %v5798 = vpack.c.b16 %v5768, %v5767
        %v5799 = vpack.c.b16 %v5770, %v5769
        %v5800 = vpack.c.b16 %v5772, %v5771
        %v5801 = vpack.c.b16 %v5774, %v5773
        %v5802 = vpack.c.b16 %v5776, %v5775
        %v5803 = vpack.c.b16 %v5778, %v5777
        %v5804 = vpack.c.b16 %v5780, %v5779
        %v5805 = vpack.c.b16 %v5782, %v5781
        %v5806 = vpack.c.b16 %v5784, %v5783
        %v5807 = vpack.c.b16 %v5786, %v5785
        %v5808 = vpack.c.b16 %v5788, %v5787
        %v5809 = vpack.c.b16 %v5790, %v5789
        %v5810 = vpack.c.b16 %v5792, %v5791
        %v5811 = vpack.c.b16 %v5794, %v5793
        %v5812 = vpack.c.b16 %v5796, %v5795
        %5829 = vmatprep.subr.bf16.mxu0 0
        %5830 = vmatpush1.bf16.msra.mxu0 %v5797
        %5831 = vmatprep.subr.bf16.mxu0 0
        %5832 = vmatpush1.bf16.msra.mxu0 %v5798
        %5833 = vmatprep.subr.bf16.mxu0 0
        %5834 = vmatpush1.bf16.msra.mxu0 %v5799
        %5835 = vmatprep.subr.bf16.mxu0 0
        %5836 = vmatpush1.bf16.msra.mxu0 %v5800
        %5837 = vmatprep.subr.bf16.mxu0 0
        %5838 = vmatpush1.bf16.msra.mxu0 %v5801
        %5839 = vmatprep.subr.bf16.mxu0 0
        %5840 = vmatpush1.bf16.msra.mxu0 %v5802
        %5841 = vmatprep.subr.bf16.mxu0 0
        %5842 = vmatpush1.bf16.msra.mxu0 %v5803
        %5843 = vmatprep.subr.bf16.mxu0 0
        %5844 = vmatpush1.bf16.msra.mxu0 %v5804
        %5845 = vmatprep.subr.bf16.mxu0 0
        %5846 = vmatpush1.bf16.msra.mxu0 %v5805
        %5847 = vmatprep.subr.bf16.mxu0 0
        %5848 = vmatpush1.bf16.msra.mxu0 %v5806
        %5849 = vmatprep.subr.bf16.mxu0 0
        %5850 = vmatpush1.bf16.msra.mxu0 %v5807
        %5851 = vmatprep.subr.bf16.mxu0 0
        %5852 = vmatpush1.bf16.msra.mxu0 %v5808
        %5853 = vmatprep.subr.bf16.mxu0 0
        %5854 = vmatpush1.bf16.msra.mxu0 %v5809
        %5855 = vmatprep.subr.bf16.mxu0 0
        %5856 = vmatpush1.bf16.msra.mxu0 %v5810
        %5857 = vmatprep.subr.bf16.mxu0 0
        %5858 = vmatpush1.bf16.msra.mxu0 %v5811
        %5859 = vmatprep.subr.bf16.mxu0 0
        %5860 = vmatpush1.bf16.msra.mxu0 %v5812
        %5861 = vmatprep.mubr.bf16.mxu0 %v5699
        %5862 = vmatmul.mubr.bf16.gmra.mrb[0].mxu0 %v5698
        %v5863 = vpop.f32.mrb[0].mxu0
        %v5864 = vadd.f32 0.0, %v5863
        %v5865 = vpop.f32.mrb[0].mxu0
        %v5866 = vpop.f32.mrb[0].mxu0
        %v5867 = vpop.f32.mrb[0].mxu0
        %5868 = vdwg.mxu0
        %v5869 = vadd.f32 %v5697, %v5864
        %v5870 = vpack.c.bf16 %v5009, %v5009
        %v5871 = vpack.c.bf16 %v5010, %v5010
        %s5872 = scalar_lea.vmem %s5, 640
        %v5873 = vld [vmem:[%s5872] sm:$0xf]
        %v5874 = vld [vmem:[%s5872 + $0x4] sm:$0xf]
        %v5875 = vld [vmem:[%s5872 + $0x8] sm:$0xf]
        %v5876 = vld [vmem:[%s5872 + $0xc] sm:$0xf]
        %v5877 = vld [vmem:[%s5872 + $0x10] sm:$0xf]
        %v5878 = vld [vmem:[%s5872 + $0x14] sm:$0xf]
        %v5879 = vld [vmem:[%s5872 + $0x18] sm:$0xf]
        %v5880 = vld [vmem:[%s5872 + $0x1c] sm:$0xf]
        %v5881 = vld [vmem:[%s5872 + $0x20] sm:$0xf]
        %v5882 = vld [vmem:[%s5872 + $0x24] sm:$0xf]
        %v5883 = vld [vmem:[%s5872 + $0x28] sm:$0xf]
        %v5884 = vld [vmem:[%s5872 + $0x2c] sm:$0xf]
        %v5885 = vld [vmem:[%s5872 + $0x30] sm:$0xf]
        %v5886 = vld [vmem:[%s5872 + $0x34] sm:$0xf]
        %v5887 = vld [vmem:[%s5872 + $0x38] sm:$0xf]
        %v5888 = vld [vmem:[%s5872 + $0x3c] sm:$0xf]
        %v5889 = vld [vmem:[%s5872 + $0x40] sm:$0xf]
        %v5890 = vld [vmem:[%s5872 + $0x44] sm:$0xf]
        %v5891 = vld [vmem:[%s5872 + $0x48] sm:$0xf]
        %v5892 = vld [vmem:[%s5872 + $0x4c] sm:$0xf]
        %v5893 = vld [vmem:[%s5872 + $0x50] sm:$0xf]
        %v5894 = vld [vmem:[%s5872 + $0x54] sm:$0xf]
        %v5895 = vld [vmem:[%s5872 + $0x58] sm:$0xf]
        %v5896 = vld [vmem:[%s5872 + $0x5c] sm:$0xf]
        %v5897 = vld [vmem:[%s5872 + $0x60] sm:$0xf]
        %v5898 = vld [vmem:[%s5872 + $0x64] sm:$0xf]
        %v5899 = vld [vmem:[%s5872 + $0x68] sm:$0xf]
        %v5900 = vld [vmem:[%s5872 + $0x6c] sm:$0xf]
        %v5901 = vld [vmem:[%s5872 + $0x70] sm:$0xf]
        %v5902 = vld [vmem:[%s5872 + $0x74] sm:$0xf]
        %v5903 = vld [vmem:[%s5872 + $0x78] sm:$0xf]
        %v5904 = vld [vmem:[%s5872 + $0x7c] sm:$0xf]
        %v5937 = vunpack.c.l.b16 %v5873
        %v5938 = vunpack.c.l.b16 %v5874
        %v5939 = vunpack.c.l.b16 %v5875
        %v5940 = vunpack.c.l.b16 %v5876
        %v5941 = vunpack.c.l.b16 %v5877
        %v5942 = vunpack.c.l.b16 %v5878
        %v5943 = vunpack.c.l.b16 %v5879
        %v5944 = vunpack.c.l.b16 %v5880
        %v5945 = vunpack.c.l.b16 %v5881
        %v5946 = vunpack.c.l.b16 %v5882
        %v5947 = vunpack.c.l.b16 %v5883
        %v5948 = vunpack.c.l.b16 %v5884
        %v5949 = vunpack.c.l.b16 %v5885
        %v5950 = vunpack.c.l.b16 %v5886
        %v5951 = vunpack.c.l.b16 %v5887
        %v5952 = vunpack.c.l.b16 %v5888
        %v5953 = vunpack.c.l.b16 %v5889
        %v5954 = vunpack.c.l.b16 %v5890
        %v5955 = vunpack.c.l.b16 %v5891
        %v5956 = vunpack.c.l.b16 %v5892
        %v5957 = vunpack.c.l.b16 %v5893
        %v5958 = vunpack.c.l.b16 %v5894
        %v5959 = vunpack.c.l.b16 %v5895
        %v5960 = vunpack.c.l.b16 %v5896
        %v5961 = vunpack.c.l.b16 %v5897
        %v5962 = vunpack.c.l.b16 %v5898
        %v5963 = vunpack.c.l.b16 %v5899
        %v5964 = vunpack.c.l.b16 %v5900
        %v5965 = vunpack.c.l.b16 %v5901
        %v5966 = vunpack.c.l.b16 %v5902
        %v5967 = vunpack.c.l.b16 %v5903
        %v5968 = vunpack.c.l.b16 %v5904
        %v5969 = vpack.c.b16 %v5938, %v5937
        %v5970 = vpack.c.b16 %v5940, %v5939
        %v5971 = vpack.c.b16 %v5942, %v5941
        %v5972 = vpack.c.b16 %v5944, %v5943
        %v5973 = vpack.c.b16 %v5946, %v5945
        %v5974 = vpack.c.b16 %v5948, %v5947
        %v5975 = vpack.c.b16 %v5950, %v5949
        %v5976 = vpack.c.b16 %v5952, %v5951
        %v5977 = vpack.c.b16 %v5954, %v5953
        %v5978 = vpack.c.b16 %v5956, %v5955
        %v5979 = vpack.c.b16 %v5958, %v5957
        %v5980 = vpack.c.b16 %v5960, %v5959
        %v5981 = vpack.c.b16 %v5962, %v5961
        %v5982 = vpack.c.b16 %v5964, %v5963
        %v5983 = vpack.c.b16 %v5966, %v5965
        %v5984 = vpack.c.b16 %v5968, %v5967
        %6001 = vmatprep.subr.bf16.mxu0 0
        %6002 = vmatpush1.bf16.msra.mxu0 %v5969
        %6003 = vmatprep.subr.bf16.mxu0 0
        %6004 = vmatpush1.bf16.msra.mxu0 %v5970
        %6005 = vmatprep.subr.bf16.mxu0 0
        %6006 = vmatpush1.bf16.msra.mxu0 %v5971
        %6007 = vmatprep.subr.bf16.mxu0 0
        %6008 = vmatpush1.bf16.msra.mxu0 %v5972
        %6009 = vmatprep.subr.bf16.mxu0 0
        %6010 = vmatpush1.bf16.msra.mxu0 %v5973
        %6011 = vmatprep.subr.bf16.mxu0 0
        %6012 = vmatpush1.bf16.msra.mxu0 %v5974
        %6013 = vmatprep.subr.bf16.mxu0 0
        %6014 = vmatpush1.bf16.msra.mxu0 %v5975
        %6015 = vmatprep.subr.bf16.mxu0 0
        %6016 = vmatpush1.bf16.msra.mxu0 %v5976
        %6017 = vmatprep.subr.bf16.mxu0 0
        %6018 = vmatpush1.bf16.msra.mxu0 %v5977
        %6019 = vmatprep.subr.bf16.mxu0 0
        %6020 = vmatpush1.bf16.msra.mxu0 %v5978
        %6021 = vmatprep.subr.bf16.mxu0 0
        %6022 = vmatpush1.bf16.msra.mxu0 %v5979
        %6023 = vmatprep.subr.bf16.mxu0 0
        %6024 = vmatpush1.bf16.msra.mxu0 %v5980
        %6025 = vmatprep.subr.bf16.mxu0 0
        %6026 = vmatpush1.bf16.msra.mxu0 %v5981
        %6027 = vmatprep.subr.bf16.mxu0 0
        %6028 = vmatpush1.bf16.msra.mxu0 %v5982
        %6029 = vmatprep.subr.bf16.mxu0 0
        %6030 = vmatpush1.bf16.msra.mxu0 %v5983
        %6031 = vmatprep.subr.bf16.mxu0 0
        %6032 = vmatpush1.bf16.msra.mxu0 %v5984
        %6033 = vmatprep.mubr.bf16.mxu0 %v5871
        %6034 = vmatmul.mubr.bf16.gmra.mrb[0].mxu0 %v5870
        %v6035 = vpop.f32.mrb[0].mxu0
        %v6036 = vadd.f32 0.0, %v6035
        %v6037 = vpop.f32.mrb[0].mxu0
        %v6038 = vpop.f32.mrb[0].mxu0
        %v6039 = vpop.f32.mrb[0].mxu0
        %6040 = vdwg.mxu0
        %v6041 = vadd.f32 %v5869, %v6036
        %v6042 = vpack.c.bf16 %v5011, %v5011
        %v6043 = vpack.c.bf16 %v5012, %v5012
        %s6044 = scalar_lea.vmem %s5, 768
        %v6045 = vld [vmem:[%s6044] sm:$0xf]
        %v6046 = vld [vmem:[%s6044 + $0x4] sm:$0xf]
        %v6047 = vld [vmem:[%s6044 + $0x8] sm:$0xf]
        %v6048 = vld [vmem:[%s6044 + $0xc] sm:$0xf]
        %v6049 = vld [vmem:[%s6044 + $0x10] sm:$0xf]
        %v6050 = vld [vmem:[%s6044 + $0x14] sm:$0xf]
        %v6051 = vld [vmem:[%s6044 + $0x18] sm:$0xf]
        %v6052 = vld [vmem:[%s6044 + $0x1c] sm:$0xf]
        %v6053 = vld [vmem:[%s6044 + $0x20] sm:$0xf]
        %v6054 = vld [vmem:[%s6044 + $0x24] sm:$0xf]
        %v6055 = vld [vmem:[%s6044 + $0x28] sm:$0xf]
        %v6056 = vld [vmem:[%s6044 + $0x2c] sm:$0xf]
        %v6057 = vld [vmem:[%s6044 + $0x30] sm:$0xf]
        %v6058 = vld [vmem:[%s6044 + $0x34] sm:$0xf]
        %v6059 = vld [vmem:[%s6044 + $0x38] sm:$0xf]
        %v6060 = vld [vmem:[%s6044 + $0x3c] sm:$0xf]
        %v6061 = vld [vmem:[%s6044 + $0x40] sm:$0xf]
        %v6062 = vld [vmem:[%s6044 + $0x44] sm:$0xf]
        %v6063 = vld [vmem:[%s6044 + $0x48] sm:$0xf]
        %v6064 = vld [vmem:[%s6044 + $0x4c] sm:$0xf]
        %v6065 = vld [vmem:[%s6044 + $0x50] sm:$0xf]
        %v6066 = vld [vmem:[%s6044 + $0x54] sm:$0xf]
        %v6067 = vld [vmem:[%s6044 + $0x58] sm:$0xf]
        %v6068 = vld [vmem:[%s6044 + $0x5c] sm:$0xf]
        %v6069 = vld [vmem:[%s6044 + $0x60] sm:$0xf]
        %v6070 = vld [vmem:[%s6044 + $0x64] sm:$0xf]
        %v6071 = vld [vmem:[%s6044 + $0x68] sm:$0xf]
        %v6072 = vld [vmem:[%s6044 + $0x6c] sm:$0xf]
        %v6073 = vld [vmem:[%s6044 + $0x70] sm:$0xf]
        %v6074 = vld [vmem:[%s6044 + $0x74] sm:$0xf]
        %v6075 = vld [vmem:[%s6044 + $0x78] sm:$0xf]
        %v6076 = vld [vmem:[%s6044 + $0x7c] sm:$0xf]
        %v6109 = vunpack.c.l.b16 %v6045
        %v6110 = vunpack.c.l.b16 %v6046
        %v6111 = vunpack.c.l.b16 %v6047
        %v6112 = vunpack.c.l.b16 %v6048
        %v6113 = vunpack.c.l.b16 %v6049
        %v6114 = vunpack.c.l.b16 %v6050
        %v6115 = vunpack.c.l.b16 %v6051
        %v6116 = vunpack.c.l.b16 %v6052
        %v6117 = vunpack.c.l.b16 %v6053
        %v6118 = vunpack.c.l.b16 %v6054
        %v6119 = vunpack.c.l.b16 %v6055
        %v6120 = vunpack.c.l.b16 %v6056
        %v6121 = vunpack.c.l.b16 %v6057
        %v6122 = vunpack.c.l.b16 %v6058
        %v6123 = vunpack.c.l.b16 %v6059
        %v6124 = vunpack.c.l.b16 %v6060
        %v6125 = vunpack.c.l.b16 %v6061
        %v6126 = vunpack.c.l.b16 %v6062
        %v6127 = vunpack.c.l.b16 %v6063
        %v6128 = vunpack.c.l.b16 %v6064
        %v6129 = vunpack.c.l.b16 %v6065
        %v6130 = vunpack.c.l.b16 %v6066
        %v6131 = vunpack.c.l.b16 %v6067
        %v6132 = vunpack.c.l.b16 %v6068
        %v6133 = vunpack.c.l.b16 %v6069
        %v6134 = vunpack.c.l.b16 %v6070
        %v6135 = vunpack.c.l.b16 %v6071
        %v6136 = vunpack.c.l.b16 %v6072
        %v6137 = vunpack.c.l.b16 %v6073
        %v6138 = vunpack.c.l.b16 %v6074
        %v6139 = vunpack.c.l.b16 %v6075
        %v6140 = vunpack.c.l.b16 %v6076
        %v6141 = vpack.c.b16 %v6110, %v6109
        %v6142 = vpack.c.b16 %v6112, %v6111
        %v6143 = vpack.c.b16 %v6114, %v6113
        %v6144 = vpack.c.b16 %v6116, %v6115
        %v6145 = vpack.c.b16 %v6118, %v6117
        %v6146 = vpack.c.b16 %v6120, %v6119
        %v6147 = vpack.c.b16 %v6122, %v6121
        %v6148 = vpack.c.b16 %v6124, %v6123
        %v6149 = vpack.c.b16 %v6126, %v6125
        %v6150 = vpack.c.b16 %v6128, %v6127
        %v6151 = vpack.c.b16 %v6130, %v6129
        %v6152 = vpack.c.b16 %v6132, %v6131
        %v6153 = vpack.c.b16 %v6134, %v6133
        %v6154 = vpack.c.b16 %v6136, %v6135
        %v6155 = vpack.c.b16 %v6138, %v6137
        %v6156 = vpack.c.b16 %v6140, %v6139
        %6173 = vmatprep.subr.bf16.mxu0 0
        %6174 = vmatpush1.bf16.msra.mxu0 %v6141
        %6175 = vmatprep.subr.bf16.mxu0 0
        %6176 = vmatpush1.bf16.msra.mxu0 %v6142
        %6177 = vmatprep.subr.bf16.mxu0 0
        %6178 = vmatpush1.bf16.msra.mxu0 %v6143
        %6179 = vmatprep.subr.bf16.mxu0 0
        %6180 = vmatpush1.bf16.msra.mxu0 %v6144
        %6181 = vmatprep.subr.bf16.mxu0 0
        %6182 = vmatpush1.bf16.msra.mxu0 %v6145
        %6183 = vmatprep.subr.bf16.mxu0 0
        %6184 = vmatpush1.bf16.msra.mxu0 %v6146
        %6185 = vmatprep.subr.bf16.mxu0 0
        %6186 = vmatpush1.bf16.msra.mxu0 %v6147
        %6187 = vmatprep.subr.bf16.mxu0 0
        %6188 = vmatpush1.bf16.msra.mxu0 %v6148
        %6189 = vmatprep.subr.bf16.mxu0 0
        %6190 = vmatpush1.bf16.msra.mxu0 %v6149
        %6191 = vmatprep.subr.bf16.mxu0 0
        %6192 = vmatpush1.bf16.msra.mxu0 %v6150
        %6193 = vmatprep.subr.bf16.mxu0 0
        %6194 = vmatpush1.bf16.msra.mxu0 %v6151
        %6195 = vmatprep.subr.bf16.mxu0 0
        %6196 = vmatpush1.bf16.msra.mxu0 %v6152
        %6197 = vmatprep.subr.bf16.mxu0 0
        %6198 = vmatpush1.bf16.msra.mxu0 %v6153
        %6199 = vmatprep.subr.bf16.mxu0 0
        %6200 = vmatpush1.bf16.msra.mxu0 %v6154
        %6201 = vmatprep.subr.bf16.mxu0 0
        %6202 = vmatpush1.bf16.msra.mxu0 %v6155
        %6203 = vmatprep.subr.bf16.mxu0 0
        %6204 = vmatpush1.bf16.msra.mxu0 %v6156
        %6205 = vmatprep.mubr.bf16.mxu0 %v6043
        %6206 = vmatmul.mubr.bf16.gmra.mrb[0].mxu0 %v6042
        %v6207 = vpop.f32.mrb[0].mxu0
        %v6208 = vadd.f32 0.0, %v6207
        %v6209 = vpop.f32.mrb[0].mxu0
        %v6210 = vpop.f32.mrb[0].mxu0
        %v6211 = vpop.f32.mrb[0].mxu0
        %6212 = vdwg.mxu0
        %v6213 = vadd.f32 %v6041, %v6208
        %v6214 = vld [vmem:[%s6] sm:$0x1]
        %v6216 = vlaneseq
        %v6217 = vshrl.u32 %v6216, 7
        %v6218 = vsub.s32 0, %v6217
        %v6219 = vrot.slane %v6214, %v6218
        %v6221 = vadd.f32 %v6213, %v6219
        %6222 = vst [vmem:[%s271] sm:$0xff] %v6221
        %s6223 = sand.u32 %s181, 1
        %s6224 = scalar_lea.sflag [#allocation3], %s6223
        %s6225 = sand.u32 %s181, 1
        %s6226 = smul.addr %s6225, 8
        %s6227 = scalar_lea.vmem [#allocation2], %s6226
        // Predicated region
        $region49: #{cnn_forward.1} parent=47 // pred_check
          %p6228 = pneg %p191
        $region50: #{cnn_forward.1} parent=47 // pred_check_branch
          %6230 = sbr.rel (%p6228) target = $region52
        $region51: #{cnn_forward.1} parent=47 // pred_region
          %s6232 = ssub.s32 128, 128
          %6233 = vsyncadd %s6224, %s6232
          %s6234 = smul.addr %s21, 128
          %s6235 = scalar_lea.hbm %s7, %s6234
          %s6237 = sshll.u32 %s6227, 4
          %s6238 = int_to_ptr.vmem [resolvable:$true] %s6237
          %6240 = dma.vmem_to_hbm [thread:$0]  %s6238, 128, %s6235, %s6224
        $region52: #{cnn_forward.1} parent=47 // pred_fallthru
          _
      $region48: #{cnn_forward.1} parent=5 // pred_fallthru
        _
      %p6241 = scmp.le.s32.totalorder 2, %s16
      // Predicated region
      $region53: #{cnn_forward.1} parent=5 // pred_check
        %p6242 = pneg %p6241
      $region54: #{cnn_forward.1} parent=5 // pred_check_branch
        %6244 = sbr.rel (%p6242) target = $region56
      $region55: #{cnn_forward.1} parent=5 // pred_region
        %s6245 = ssub.s32 %s16, 2
        // Predicated region
        $region57: #{cnn_forward.1} parent=55 // pred_check
          %p6246 = pneg %p197
        $region58: #{cnn_forward.1} parent=55 // pred_check_branch
          %6248 = sbr.rel (%p6246) target = $region60
        $region59: #{cnn_forward.1} parent=55 // pred_region
          %s6249 = sand.u32 %s182, 1
          %s6250 = scalar_lea.sflag [#allocation3], %s6249
          %s6251 = sand.u32 %s182, 1
          %s6252 = smul.addr %s6251, 8
          %s6253 = scalar_lea.vmem [#allocation2], %s6252
          %6254 = dma.done %s6250, 128
        $region60: #{cnn_forward.1} parent=55 // pred_fallthru
          _
      $region56: #{cnn_forward.1} parent=5 // pred_fallthru
        _
    $region6: #{cnn_forward.1} parent=1 // loop_footer
      %s20 = sadd.s32 1, %s16
    $region7: #{cnn_forward.1} parent=1 // loop_footer_branch
      %15 = sbr.rel target = $region3
    $region8: #{cnn_forward.1} parent=1 // loop_exit
      _
    %6255 = vsyncpa [#allocation3], 1
    %s6256 = scalar_lea.sflag [#allocation3], 1
    %6257 = vsyncpa %s6256, 1

</llo_original>
